<compile_context>
chip_gen: v5e
topology: v5e:2x2
jax: 0.10.0
libtpu: 0.0.40
codegen_flags: <defaults>
</compile_context>

<pallas_src>
import functools

import jax
import jax.numpy as jnp
from jax.experimental import pallas as pl
from jax.experimental.pallas import tpu as pltpu


def ccattn_kernel(x_ref, wq_ref, bq_ref, wk_ref, bk_ref, wv_ref, bv_ref,
                  gamma_ref, o_ref, *, H, W):
    C = x_ref.shape[1]
    P = H * W

    x_chw = x_ref[0]                           # (C, P) f32, NCHW flattened (lane-dense)
    x_pix = jnp.transpose(x_chw)               # (P, C) f32, pixel (i, j) at row i*W + j
    x_bf = x_pix.astype(jnp.bfloat16)

    def proj(w_ref, b_ref):                    # 1x1 conv == per-pixel matmul + bias
        return jnp.dot(x_bf, w_ref[...],
                       preferred_element_type=jnp.float32) + b_ref[...]

    qf = proj(wq_ref, bq_ref)                  # (P, Cq) f32
    kf = proj(wk_ref, bk_ref)                  # (P, Cq) f32
    vf = proj(wv_ref, bv_ref)                  # (P, C)  f32

    q_hw = qf.reshape(H, W, -1)                # [i, j, c]
    k_hw = kf.reshape(H, W, -1)
    v_hw = vf.reshape(H, W, C)
    # column-major (j-leading) views derived in-VMEM — no duplicate DMA / projections.
    q_wh = pltpu.einshape('ijc->jic', q_hw)    # (W, H, Cq)
    k_wh = pltpu.einshape('ijc->jic', k_hw)    # (W, H, Cq)
    v_wh = pltpu.einshape('ijc->jic', v_hw)    # (W, H, C)

    qb_hw = q_hw.astype(jnp.bfloat16)
    kb_hw = k_hw.astype(jnp.bfloat16)
    vb_hw = v_hw.astype(jnp.bfloat16)
    qb_wh = q_wh.astype(jnp.bfloat16)
    kb_wh = k_wh.astype(jnp.bfloat16)
    vb_wh = v_wh.astype(jnp.bfloat16)

    # H-direction (column) energies, kept in (W, H, H) 'jih' layout end-to-end.
    # e_h[j, i, h] = sum_c q[i,j,c] * k[h,j,c]
    e_h = jnp.einsum('jic,jhc->jih', qb_wh, kb_wh,
                     preferred_element_type=jnp.float32)       # (W, H, H) f32
    ii = jax.lax.broadcasted_iota(jnp.int32, (1, H, H), 1)
    hh = jax.lax.broadcasted_iota(jnp.int32, (1, H, H), 2)
    e_h = e_h + jnp.where(ii == hh, -1e30, 0.0)                # mask the "self" diagonal

    # W-direction (row) energies: e_w[i, j, w] = sum_c q[i,j,c] * k[i,w,c]
    e_w = jnp.einsum('ijc,iwc->ijw', qb_hw, kb_hw,
                     preferred_element_type=jnp.float32)       # (H, W, W) f32

    # joint softmax over the concatenated [H | W] axis; only the per-pixel statistics
    # (not the full 3-D tensors) cross between the two layouts.
    m_h = jnp.transpose(jnp.max(e_h, axis=-1))                 # (H, W)
    m_w = jnp.max(e_w, axis=-1)                                # (H, W)
    m = jnp.maximum(m_h, m_w)                                  # (H, W)
    m_t = jnp.transpose(m)                                     # (W, H)

    p_h = jnp.exp(e_h - m_t[:, :, None])                       # (W, H, H)
    p_w = jnp.exp(e_w - m[:, :, None])                         # (H, W, W)

    s_h = jnp.transpose(jnp.sum(p_h, axis=-1))                 # (H, W)
    s_w = jnp.sum(p_w, axis=-1)                                # (H, W)
    inv = pl.reciprocal(s_h + s_w, approx=True)                # (H, W)
    inv_t = jnp.transpose(inv)                                 # (W, H)

    att_h = (p_h * inv_t[:, :, None]).astype(jnp.bfloat16)     # (W, H, H)
    att_w = (p_w * inv[:, :, None]).astype(jnp.bfloat16)       # (H, W, W)

    # out_H[i,j,c] = sum_h att_h[j,i,h] * v[h,j,c]   (batched over column j)
    out_h = jnp.einsum('jih,jhc->jic', att_h, vb_wh,
                       preferred_element_type=jnp.float32)     # (W, H, C)
    out_h = pltpu.einshape('jic->ijc', out_h)                  # (H, W, C)
    # out_W[i,j,c] = sum_w att_w[i,j,w] * v[i,w,c]   (batched over row i)
    out_w = jnp.einsum('ijw,iwc->ijc', att_w, vb_hw,
                       preferred_element_type=jnp.float32)     # (H, W, C)

    gamma = gamma_ref[0, 0]
    out_sum = (out_h + out_w).reshape(P, C)                    # (P, C) f32
    # residual add + store in lane-dense (C, P) layout (matches NCHW output block)
    o_ref[0] = gamma * jnp.transpose(out_sum) + x_chw


def criss_cross_attention(x_nchw, params):
    """x_nchw: (B, C, H, W) float32, matching the PyTorch module."""
    wq, bq, wk, bk, wv, bv, gamma = params
    B, C, H, W = x_nchw.shape
    Cq = wq.shape[0]
    P = H * W

    x_flat = x_nchw.reshape(B, C, P)           # NCHW kept as-is; lane dim = H*W (dense)

    wq_t = jnp.transpose(wq).astype(jnp.bfloat16)   # (C, Cq)
    wk_t = jnp.transpose(wk).astype(jnp.bfloat16)   # (C, Cq)
    wv_t = jnp.transpose(wv).astype(jnp.bfloat16)   # (C, C)
    bq2 = bq.reshape(1, Cq).astype(jnp.float32)
    bk2 = bk.reshape(1, Cq).astype(jnp.float32)
    bv2 = bv.reshape(1, C).astype(jnp.float32)
    gamma_arr = jnp.reshape(gamma, (1, 1)).astype(jnp.float32)

    kernel = functools.partial(ccattn_kernel, H=H, W=W)

    out_flat = pl.pallas_call(
        kernel,
        out_shape=jax.ShapeDtypeStruct((B, C, P), jnp.float32),
        grid_spec=pltpu.PrefetchScalarGridSpec(
            num_scalar_prefetch=0,
            grid=(B,),
            in_specs=[
                pl.BlockSpec((1, C, P), lambda b: (b, 0, 0)),
                pl.BlockSpec((C, Cq), lambda b: (0, 0)),
                pl.BlockSpec((1, Cq), lambda b: (0, 0)),
                pl.BlockSpec((C, Cq), lambda b: (0, 0)),
                pl.BlockSpec((1, Cq), lambda b: (0, 0)),
                pl.BlockSpec((C, C), lambda b: (0, 0)),
                pl.BlockSpec((1, C), lambda b: (0, 0)),
                pl.BlockSpec(memory_space=pltpu.MemorySpace.SMEM),
            ],
            out_specs=pl.BlockSpec((1, C, P), lambda b: (b, 0, 0)),
        ),
        compiler_params=pltpu.CompilerParams(
            dimension_semantics=("parallel",),
            vmem_limit_bytes=32 * 1024 * 1024,
        ),
    )(x_flat, wq_t, bq2, wk_t, bk2, wv_t, bv2, gamma_arr)

    return out_flat.reshape(B, C, H, W)


def init_params(key, in_dim):
    """Deterministic synthetic init; shapes follow CrissCrossAttention.__init__."""
    cq = in_dim // 8
    k1, k2, k3, k4, k5, k6 = jax.random.split(key, 6)
    s = 0.1
    wq = jax.random.normal(k1, (cq, in_dim), jnp.float32) * s     # conv weight (Cout, Cin) [1x1]
    bq = jax.random.normal(k2, (cq,), jnp.float32) * s
    wk = jax.random.normal(k3, (cq, in_dim), jnp.float32) * s
    bk = jax.random.normal(k4, (cq,), jnp.float32) * s
    wv = jax.random.normal(k5, (in_dim, in_dim), jnp.float32) * s
    bv = jax.random.normal(k6, (in_dim,), jnp.float32) * s
    # module inits gamma to 0 (output == x); use 0.5 so the attention path is exercised.
    gamma = jnp.float32(0.5)
    return wq, bq, wk, bk, wv, bv, gamma


def reference(x, wq, bq, wk, bk, wv, bv, gamma):
    """Literal pure-JAX port of the PyTorch forward (f32, HIGHEST), for verification."""
    hi = jax.lax.Precision.HIGHEST
    B, C, H, W = x.shape

    def conv1x1(inp, w, b):
        return jnp.einsum('bchw,oc->bohw', inp, w, precision=hi) + b[None, :, None, None]

    q = conv1x1(x, wq, bq)
    k = conv1x1(x, wk, bk)
    v = conv1x1(x, wv, bv)
    Cq = q.shape[1]

    q_H = q.transpose(0, 3, 1, 2).reshape(B * W, Cq, H).transpose(0, 2, 1)
    q_W = q.transpose(0, 2, 1, 3).reshape(B * H, Cq, W).transpose(0, 2, 1)
    k_H = k.transpose(0, 3, 1, 2).reshape(B * W, Cq, H)
    k_W = k.transpose(0, 2, 1, 3).reshape(B * H, Cq, W)
    v_H = v.transpose(0, 3, 1, 2).reshape(B * W, C, H)
    v_W = v.transpose(0, 2, 1, 3).reshape(B * H, C, W)

    inf_mask = jnp.where(jnp.eye(H, dtype=bool), -jnp.inf, 0.0)[None]
    energy_H = (jnp.einsum('bic,bch->bih', q_H, k_H, precision=hi) + inf_mask)
    energy_H = energy_H.reshape(B, W, H, H).transpose(0, 2, 1, 3)
    energy_W = jnp.einsum('bjc,bcw->bjw', q_W, k_W, precision=hi).reshape(B, H, W, W)
    concate = jax.nn.softmax(jnp.concatenate([energy_H, energy_W], axis=3), axis=3)
    att_H = concate[:, :, :, 0:H].transpose(0, 2, 1, 3).reshape(B * W, H, H)
    att_W = concate[:, :, :, H:H + W].reshape(B * H, W, W)
    out_H = jnp.einsum('bch,bih->bci', v_H, att_H, precision=hi)
    out_H = out_H.reshape(B, W, C, H).transpose(0, 2, 3, 1)
    out_W = jnp.einsum('bcw,bjw->bcj', v_W, att_W, precision=hi)
    out_W = out_W.reshape(B, H, C, W).transpose(0, 2, 1, 3)
    return gamma * (out_H + out_W) + x


if __name__ == "__main__":
    key = jax.random.PRNGKey(0)
    kx, kp = jax.random.split(key)
    B, C, H, W = 2, 32, 16, 16                    # in_dim=32 -> query/key channels = 4
    x = jax.random.normal(kx, (B, C, H, W), jnp.float32)
    params = init_params(kp, C)

    out = jax.jit(criss_cross_attention)(x, params)
    out = jax.block_until_ready(out)

    ref = reference(x, *params)
    assert out.shape == x.shape and out.dtype == jnp.float32
    # bf16 MXU inputs (f32 accumulation) vs the f32/HIGHEST reference
    max_err = float(jnp.max(jnp.abs(out - ref)))
    assert max_err < 2e-2, f"mismatch vs reference: max abs err = {max_err}"
    print("KERNEL_OK")
</pallas_src>

<mosaic_0001>
module attributes {stable_mosaic.version = 11 : i64} {
  func.func @ccattn_kernel(%arg0: i32, %arg1: memref<1x32x256xf32, #tpu.memory_space<vmem>>, %arg2: memref<32x4xbf16, #tpu.memory_space<vmem>>, %arg3: memref<1x4xf32, #tpu.memory_space<vmem>>, %arg4: memref<32x4xbf16, #tpu.memory_space<vmem>>, %arg5: memref<1x4xf32, #tpu.memory_space<vmem>>, %arg6: memref<32x32xbf16, #tpu.memory_space<vmem>>, %arg7: memref<1x32xf32, #tpu.memory_space<vmem>>, %arg8: memref<1x1xf32, #tpu.memory_space<smem>>, %arg9: memref<1x32x256xf32, #tpu.memory_space<vmem>>) attributes {dimension_semantics = [#tpu.dimension_semantics<parallel>], iteration_bounds = array<i64: 2>, scalar_prefetch = 0 : i64, scratch_operands = 0 : i64, tpu.core_type = #tpu.core_type<tc>, window_params = [{transform_indices = @transform_0, window_bounds = array<i64: 1, 32, 256>}, {pipeline_mode = #tpu.pipeline_mode<synchronous>, transform_indices = @transform_1, window_bounds = array<i64: 32, 4>}, {pipeline_mode = #tpu.pipeline_mode<synchronous>, transform_indices = @transform_2, window_bounds = array<i64: 1, 4>}, {pipeline_mode = #tpu.pipeline_mode<synchronous>, transform_indices = @transform_3, window_bounds = array<i64: 32, 4>}, {pipeline_mode = #tpu.pipeline_mode<synchronous>, transform_indices = @transform_4, window_bounds = array<i64: 1, 4>}, {pipeline_mode = #tpu.pipeline_mode<synchronous>, transform_indices = @transform_5, window_bounds = array<i64: 32, 32>}, {pipeline_mode = #tpu.pipeline_mode<synchronous>, transform_indices = @transform_6, window_bounds = array<i64: 1, 32>}, {transform_indices = @transform_7, window_bounds = array<i64: 1, 1>}, {transform_indices = @transform_8, window_bounds = array<i64: 1, 32, 256>}]} {
    %c0 = arith.constant 0 : index
    %c0_0 = arith.constant 0 : index
    %c0_1 = arith.constant 0 : index
    %0 = vector.load %arg1[%c0, %c0_0, %c0_1] : memref<1x32x256xf32, #tpu.memory_space<vmem>>, vector<1x32x256xf32>
    %1 = vector.shape_cast %0 : vector<1x32x256xf32> to vector<32x256xf32>
    %2 = tpu.transpose %1, [1, 0] : vector<32x256xf32> -> vector<256x32xf32>
    %3 = arith.truncf %2 : vector<256x32xf32> to vector<256x32xbf16>
    %c0_2 = arith.constant 0 : index
    %c0_3 = arith.constant 0 : index
    %4 = vector.load %arg2[%c0_2, %c0_3] : memref<32x4xbf16, #tpu.memory_space<vmem>>, vector<32x4xbf16>
    %cst = arith.constant dense<0.000000e+00> : vector<256x4xf32>
    %5 = tpu.matmul %3, %4, %cst {dimension_numbers = #tpu.dot_dimension_numbers<[1], [0], [0], [1], [0, 0, 1, 1], [], []>} : vector<256x32xbf16>, vector<32x4xbf16>, vector<256x4xf32> -> vector<256x4xf32>
    %c0_4 = arith.constant 0 : index
    %c0_5 = arith.constant 0 : index
    %6 = vector.load %arg3[%c0_4, %c0_5] : memref<1x4xf32, #tpu.memory_space<vmem>>, vector<1x4xf32>
    %7 = vector.broadcast %6 : vector<1x4xf32> to vector<256x4xf32>
    %8 = arith.addf %5, %7 : vector<256x4xf32>
    %c0_6 = arith.constant 0 : index
    %c0_7 = arith.constant 0 : index
    %9 = vector.load %arg4[%c0_6, %c0_7] : memref<32x4xbf16, #tpu.memory_space<vmem>>, vector<32x4xbf16>
    %cst_8 = arith.constant dense<0.000000e+00> : vector<256x4xf32>
    %10 = tpu.matmul %3, %9, %cst_8 {dimension_numbers = #tpu.dot_dimension_numbers<[1], [0], [0], [1], [0, 0, 1, 1], [], []>} : vector<256x32xbf16>, vector<32x4xbf16>, vector<256x4xf32> -> vector<256x4xf32>
    %c0_9 = arith.constant 0 : index
    %c0_10 = arith.constant 0 : index
    %11 = vector.load %arg5[%c0_9, %c0_10] : memref<1x4xf32, #tpu.memory_space<vmem>>, vector<1x4xf32>
    %12 = vector.broadcast %11 : vector<1x4xf32> to vector<256x4xf32>
    %13 = arith.addf %10, %12 : vector<256x4xf32>
    %c0_11 = arith.constant 0 : index
    %c0_12 = arith.constant 0 : index
    %14 = vector.load %arg6[%c0_11, %c0_12] : memref<32x32xbf16, #tpu.memory_space<vmem>>, vector<32x32xbf16>
    %cst_13 = arith.constant dense<0.000000e+00> : vector<256x32xf32>
    %15 = tpu.matmul %3, %14, %cst_13 {dimension_numbers = #tpu.dot_dimension_numbers<[1], [0], [0], [1], [0, 0, 1, 1], [], []>} : vector<256x32xbf16>, vector<32x32xbf16>, vector<256x32xf32> -> vector<256x32xf32>
    %c0_14 = arith.constant 0 : index
    %c0_15 = arith.constant 0 : index
    %16 = vector.load %arg7[%c0_14, %c0_15] : memref<1x32xf32, #tpu.memory_space<vmem>>, vector<1x32xf32>
    %17 = vector.broadcast %16 : vector<1x32xf32> to vector<256x32xf32>
    %18 = arith.addf %15, %17 : vector<256x32xf32>
    %19 = vector.shape_cast %8 : vector<256x4xf32> to vector<16x16x4xf32>
    %20 = vector.shape_cast %13 : vector<256x4xf32> to vector<16x16x4xf32>
    %21 = vector.shape_cast %18 : vector<256x32xf32> to vector<16x16x32xf32>
    %22 = tpu.transpose %19, [1, 0, 2] : vector<16x16x4xf32> -> vector<16x16x4xf32>
    %23 = tpu.transpose %20, [1, 0, 2] : vector<16x16x4xf32> -> vector<16x16x4xf32>
    %24 = tpu.transpose %21, [1, 0, 2] : vector<16x16x32xf32> -> vector<16x16x32xf32>
    %25 = arith.truncf %19 : vector<16x16x4xf32> to vector<16x16x4xbf16>
    %26 = arith.truncf %20 : vector<16x16x4xf32> to vector<16x16x4xbf16>
    %27 = arith.truncf %21 : vector<16x16x32xf32> to vector<16x16x32xbf16>
    %28 = arith.truncf %22 : vector<16x16x4xf32> to vector<16x16x4xbf16>
    %29 = arith.truncf %23 : vector<16x16x4xf32> to vector<16x16x4xbf16>
    %30 = arith.truncf %24 : vector<16x16x32xf32> to vector<16x16x32xbf16>
    "tpu.trace_start"() <{level = 10 : i32, message = "jic,jhc->jih"}> : () -> ()
    %cst_16 = arith.constant dense<0.000000e+00> : vector<16x16x16xf32>
    %31 = tpu.matmul %28, %29, %cst_16 {dimension_numbers = #tpu.dot_dimension_numbers<[2], [2], [1], [1], [0, 0, 0, 1, 1, 1], [0], [0]>} : vector<16x16x4xbf16>, vector<16x16x4xbf16>, vector<16x16x16xf32> -> vector<16x16x16xf32>
    "tpu.trace_stop"() : () -> ()
    %32 = tpu.iota {dimensions = array<i32: 1>} : vector<1x16x16xi32>
    %33 = tpu.iota {dimensions = array<i32: 2>} : vector<1x16x16xi32>
    %34 = arith.cmpi eq, %32, %33 : vector<1x16x16xi32>
    %cst_17 = arith.constant -1.000000e+30 : f32
    %cst_18 = arith.constant 0.000000e+00 : f32
    %35 = vector.broadcast %cst_17 : f32 to vector<1x16x16xf32>
    %36 = vector.broadcast %cst_18 : f32 to vector<1x16x16xf32>
    %37 = arith.select %34, %35, %36 : vector<1x16x16xi1>, vector<1x16x16xf32>
    %38 = vector.broadcast %37 : vector<1x16x16xf32> to vector<16x16x16xf32>
    %39 = arith.addf %31, %38 : vector<16x16x16xf32>
    "tpu.trace_start"() <{level = 10 : i32, message = "ijc,iwc->ijw"}> : () -> ()
    %cst_19 = arith.constant dense<0.000000e+00> : vector<16x16x16xf32>
    %40 = tpu.matmul %25, %26, %cst_19 {dimension_numbers = #tpu.dot_dimension_numbers<[2], [2], [1], [1], [0, 0, 0, 1, 1, 1], [0], [0]>} : vector<16x16x4xbf16>, vector<16x16x4xbf16>, vector<16x16x16xf32> -> vector<16x16x16xf32>
    "tpu.trace_stop"() : () -> ()
    %cst_20 = arith.constant dense<0xFF800000> : vector<16x16xf32>
    %41 = vector.multi_reduction <maximumf>, %39, %cst_20 [2] : vector<16x16x16xf32> to vector<16x16xf32>
    %42 = tpu.transpose %41, [1, 0] : vector<16x16xf32> -> vector<16x16xf32>
    %cst_21 = arith.constant dense<0xFF800000> : vector<16x16xf32>
    %43 = vector.multi_reduction <maximumf>, %40, %cst_21 [2] : vector<16x16x16xf32> to vector<16x16xf32>
    %44 = arith.maximumf %42, %43 : vector<16x16xf32>
    %45 = tpu.transpose %44, [1, 0] : vector<16x16xf32> -> vector<16x16xf32>
    %46 = vector.shape_cast %45 : vector<16x16xf32> to vector<16x16x1xf32>
    %47 = vector.broadcast %46 : vector<16x16x1xf32> to vector<16x16x16xf32>
    %48 = arith.subf %39, %47 : vector<16x16x16xf32>
    %49 = math.exp %48 : vector<16x16x16xf32>
    %50 = vector.shape_cast %44 : vector<16x16xf32> to vector<16x16x1xf32>
    %51 = vector.broadcast %50 : vector<16x16x1xf32> to vector<16x16x16xf32>
    %52 = arith.subf %40, %51 : vector<16x16x16xf32>
    %53 = math.exp %52 : vector<16x16x16xf32>
    %cst_22 = arith.constant dense<0.000000e+00> : vector<16x16xf32>
    %54 = vector.multi_reduction <add>, %49, %cst_22 [2] : vector<16x16x16xf32> to vector<16x16xf32>
    %55 = tpu.transpose %54, [1, 0] : vector<16x16xf32> -> vector<16x16xf32>
    %cst_23 = arith.constant dense<0.000000e+00> : vector<16x16xf32>
    %56 = vector.multi_reduction <add>, %53, %cst_23 [2] : vector<16x16x16xf32> to vector<16x16xf32>
    %57 = arith.addf %55, %56 : vector<16x16xf32>
    %58 = tpu.reciprocal %57 {approx = true} : vector<16x16xf32> -> vector<16x16xf32>
    %59 = tpu.transpose %58, [1, 0] : vector<16x16xf32> -> vector<16x16xf32>
    %60 = vector.shape_cast %59 : vector<16x16xf32> to vector<16x16x1xf32>
    %61 = vector.broadcast %60 : vector<16x16x1xf32> to vector<16x16x16xf32>
    %62 = arith.mulf %49, %61 : vector<16x16x16xf32>
    %63 = arith.truncf %62 : vector<16x16x16xf32> to vector<16x16x16xbf16>
    %64 = vector.shape_cast %58 : vector<16x16xf32> to vector<16x16x1xf32>
    %65 = vector.broadcast %64 : vector<16x16x1xf32> to vector<16x16x16xf32>
    %66 = arith.mulf %53, %65 : vector<16x16x16xf32>
    %67 = arith.truncf %66 : vector<16x16x16xf32> to vector<16x16x16xbf16>
    "tpu.trace_start"() <{level = 10 : i32, message = "jih,jhc->jic"}> : () -> ()
    %cst_24 = arith.constant dense<0.000000e+00> : vector<16x16x32xf32>
    %68 = tpu.matmul %63, %30, %cst_24 {dimension_numbers = #tpu.dot_dimension_numbers<[2], [1], [1], [2], [0, 0, 0, 1, 1, 2], [0], [0]>} : vector<16x16x16xbf16>, vector<16x16x32xbf16>, vector<16x16x32xf32> -> vector<16x16x32xf32>
    "tpu.trace_stop"() : () -> ()
    %69 = tpu.transpose %68, [1, 0, 2] : vector<16x16x32xf32> -> vector<16x16x32xf32>
    "tpu.trace_start"() <{level = 10 : i32, message = "ijw,iwc->ijc"}> : () -> ()
    %cst_25 = arith.constant dense<0.000000e+00> : vector<16x16x32xf32>
    %70 = tpu.matmul %67, %27, %cst_25 {dimension_numbers = #tpu.dot_dimension_numbers<[2], [1], [1], [2], [0, 0, 0, 1, 1, 2], [0], [0]>} : vector<16x16x16xbf16>, vector<16x16x32xbf16>, vector<16x16x32xf32> -> vector<16x16x32xf32>
    "tpu.trace_stop"() : () -> ()
    %c0_26 = arith.constant 0 : index
    %c0_27 = arith.constant 0 : index
    %71 = memref.load %arg8[%c0_26, %c0_27] : memref<1x1xf32, #tpu.memory_space<smem>>
    %72 = arith.addf %69, %70 : vector<16x16x32xf32>
    %73 = vector.shape_cast %72 : vector<16x16x32xf32> to vector<256x32xf32>
    %74 = tpu.transpose %73, [1, 0] : vector<256x32xf32> -> vector<32x256xf32>
    %75 = vector.broadcast %71 : f32 to vector<32x256xf32>
    %76 = arith.mulf %75, %74 : vector<32x256xf32>
    %77 = arith.addf %76, %1 : vector<32x256xf32>
    %c0_28 = arith.constant 0 : index
    %c0_29 = arith.constant 0 : index
    %c0_30 = arith.constant 0 : index
    %78 = vector.load %arg9[%c0_28, %c0_29, %c0_30] : memref<1x32x256xf32, #tpu.memory_space<vmem>>, vector<1x32x256xf32>
    %79 = vector.shape_cast %78 : vector<1x32x256xf32> to vector<32x256xf32>
    %80 = vector.shape_cast %77 : vector<32x256xf32> to vector<1x32x256xf32>
    tpu.vector_store %arg9[%c0_28, %c0_29, %c0_30], %80 {strides = array<i32>} : memref<1x32x256xf32, #tpu.memory_space<vmem>>, vector<1x32x256xf32>,
    return
  }
  func.func @transform_0(%arg0: i32) -> (i32, i32, i32) {
    %c0_i32 = arith.constant 0 : i32
    %c0_i32_0 = arith.constant 0 : i32
    %c0_i32_1 = arith.constant 0 : i32
    return %arg0, %c0_i32, %c0_i32_0 : i32, i32, i32
  }
  func.func @transform_1(%arg0: i32) -> (i32, i32) {
    %c0_i32 = arith.constant 0 : i32
    %c0_i32_0 = arith.constant 0 : i32
    %c0_i32_1 = arith.constant 0 : i32
    return %c0_i32, %c0_i32_0 : i32, i32
  }
  func.func @transform_2(%arg0: i32) -> (i32, i32) {
    %c0_i32 = arith.constant 0 : i32
    %c0_i32_0 = arith.constant 0 : i32
    %c0_i32_1 = arith.constant 0 : i32
    return %c0_i32, %c0_i32_0 : i32, i32
  }
  func.func @transform_3(%arg0: i32) -> (i32, i32) {
    %c0_i32 = arith.constant 0 : i32
    %c0_i32_0 = arith.constant 0 : i32
    %c0_i32_1 = arith.constant 0 : i32
    return %c0_i32, %c0_i32_0 : i32, i32
  }
  func.func @transform_4(%arg0: i32) -> (i32, i32) {
    %c0_i32 = arith.constant 0 : i32
    %c0_i32_0 = arith.constant 0 : i32
    %c0_i32_1 = arith.constant 0 : i32
    return %c0_i32, %c0_i32_0 : i32, i32
  }
  func.func @transform_5(%arg0: i32) -> (i32, i32) {
    %c0_i32 = arith.constant 0 : i32
    %c0_i32_0 = arith.constant 0 : i32
    %c0_i32_1 = arith.constant 0 : i32
    return %c0_i32, %c0_i32_0 : i32, i32
  }
  func.func @transform_6(%arg0: i32) -> (i32, i32) {
    %c0_i32 = arith.constant 0 : i32
    %c0_i32_0 = arith.constant 0 : i32
    %c0_i32_1 = arith.constant 0 : i32
    return %c0_i32, %c0_i32_0 : i32, i32
  }
  func.func @transform_7(%arg0: i32) -> (i32, i32) {
    %c0_i32 = arith.constant 0 : i32
    %c0_i32_0 = arith.constant 0 : i32
    %c0_i32_1 = arith.constant 0 : i32
    return %c0_i32, %c0_i32_0 : i32, i32
  }
  func.func @transform_8(%arg0: i32) -> (i32, i32, i32) {
    %c0_i32 = arith.constant 0 : i32
    %c0_i32_0 = arith.constant 0 : i32
    %c0_i32_1 = arith.constant 0 : i32
    return %arg0, %c0_i32, %c0_i32_0 : i32, i32, i32
  }
}

</mosaic_0001>

<llo_original>
// kernel: criss_cross_attention.1
$region0: #{criss_cross_attention.1}
  #allocation0 [shape = 'u32[]', space=smem, size = 0x4, offset = 0x4, fixed_abs, tag = 'smem constant byte address 0x4 - core index']
  #allocation1 [shape = 'u32[72,128]{1,0:T(1,128)}', space=vmem, size = 0x9000, scoped, tag = 'internal scratch']
  #allocation2 [shape = 'f32[1,1]{1,0:T(1,128)S(6)}', space=smem, size = 0x200, scoped, tag = 'scoped memory for criss_cross_attention.1']
  %s0 = inlined_call_operand.vmem [shape: f32[2,32,256], index: 0, kind: input, shape index: {}]
  %s1 = inlined_call_operand.vmem [shape: bf16[32,4], index: 1, kind: input, shape index: {}]
  %s2 = inlined_call_operand.vmem [shape: f32[1,4], index: 2, kind: input, shape index: {}]
  %s3 = inlined_call_operand.vmem [shape: bf16[32,4], index: 3, kind: input, shape index: {}]
  %s4 = inlined_call_operand.vmem [shape: f32[1,4], index: 4, kind: input, shape index: {}]
  %s5 = inlined_call_operand.vmem [shape: bf16[32,32], index: 5, kind: input, shape index: {}]
  %s6 = inlined_call_operand.vmem [shape: f32[1,32], index: 6, kind: input, shape index: {}]
  %s7 = inlined_call_operand.<no memory space> [shape: f32[1,1], index: 7, kind: input, shape index: {}]
  %s8 = inlined_call_operand.vmem [shape: f32[2,32,256], index: 8, kind: output, shape index: {}]
  %s9 = sld [smem:[#allocation0]]
  $region65: #{criss_cross_attention.1} parent=0
    _
  %s11 = ssub.s32 1, %s9
  %s12 = scalar_select 0, %s11, %s9
  %13 = sst [smem:[#allocation2]] %s7
  loop: start=0, step=1, limit=4
  $region2: #{criss_cross_attention.1} parent=0 // loop_pre_header
    _
  $region3: #{criss_cross_attention.1} parent=0 // loop_header
    %s15 = sphi 0, %s19
    %p16 = scmp.ge.s32.totalorder %s15, 4
    %s25 = sphi 0, %s27
    %s28 = sphi 0, %s25
    %s29 = sphi 0, %s28
    %s45 = sphi 0, %s29
    %s49 = sphi 0, %s49
    %s51 = sphi 0, %s49
    %s52 = sphi 0, %s51
    %s66 = sphi 0, %s52
    %s70 = sphi 0, %s70
    %s72 = sphi 0, %s70
    %s73 = sphi 0, %s72
    %s87 = sphi 0, %s73
    %s91 = sphi 0, %s91
    %s93 = sphi 0, %s91
    %s94 = sphi 0, %s93
    %s108 = sphi 0, %s94
    %s112 = sphi 0, %s112
    %s114 = sphi 0, %s112
    %s115 = sphi 0, %s114
    %s129 = sphi 0, %s115
    %s133 = sphi 0, %s133
    %s135 = sphi 0, %s133
    %s136 = sphi 0, %s135
    %s150 = sphi 0, %s136
    %s154 = sphi 0, %s154
    %s156 = sphi 0, %s154
    %s157 = sphi 0, %s156
    %s171 = sphi 0, %s157
    %s175 = sphi 0, %s175
    %s177 = sphi 0, %s175
    %s178 = sphi 0, %s177
    %s192 = sphi 0, %s178
    %s198 = sphi 0, %s200
    %s201 = sphi 0, %s198
    %s202 = sphi 0, %s201
    %s218 = sphi 0, %s202
  $region4: #{criss_cross_attention.1} parent=0 // loop_header_branch
    %18 = sbr.rel (%p16) target = $region8
  $region5: #{criss_cross_attention.1} parent=0 // loop_body
    %s20 = ssub.s32 %s15, 1
    %s21 = ssub.s32 %s15, 2
    %s22 = sadd.s32 %s15, 1
    %s23 = ssub.s32 %s15, %s22
    %p24 = scmp.eq.s32.totalorder %s23, 0
    %s26 = sadd.s32 %s25, 1
    %s27 = scalar_select %p24, %s25, %s26
    %p30 = pneg %p24
    %p31 = scmp.eq.s32.totalorder %s15, 1
    %p32 = por %p30, %p31
    %p33 = scmp.ne.s32.totalorder %s25, %s28
    %p34 = scmp.eq.s32.totalorder %s15, 0
    %p35 = por %p33, %p34
    %p36 = scmp.ne.s32.totalorder %s25, %s28
    %p37 = scmp.eq.s32.totalorder %s20, 1
    %p38 = por %p36, %p37
    %p39 = scmp.ne.s32.totalorder %s28, %s29
    %p40 = scmp.eq.s32.totalorder %s20, 0
    %p41 = por %p39, %p40
    %p42 = scmp.ne.s32.totalorder %s28, %s29
    %p43 = scmp.eq.s32.totalorder %s21, 1
    %p44 = por %p42, %p43
    %p46 = scmp.ne.s32.totalorder %s29, %s45
    %p47 = scmp.eq.s32.totalorder %s21, 0
    %p48 = por %p46, %p47
    %s50 = sadd.s32 %s49, 1
    %p53 = scmp.eq.s32.totalorder %s15, 1
    %p54 = scmp.ne.s32.totalorder %s49, %s51
    %p55 = scmp.eq.s32.totalorder %s15, 0
    %p56 = por %p54, %p55
    %p57 = scmp.ne.s32.totalorder %s49, %s51
    %p58 = scmp.eq.s32.totalorder %s20, 1
    %p59 = por %p57, %p58
    %p60 = scmp.ne.s32.totalorder %s51, %s52
    %p61 = scmp.eq.s32.totalorder %s20, 0
    %p62 = por %p60, %p61
    %p63 = scmp.ne.s32.totalorder %s51, %s52
    %p64 = scmp.eq.s32.totalorder %s21, 1
    %p65 = por %p63, %p64
    %p67 = scmp.ne.s32.totalorder %s52, %s66
    %p68 = scmp.eq.s32.totalorder %s21, 0
    %p69 = por %p67, %p68
    %s71 = sadd.s32 %s70, 1
    %p74 = scmp.eq.s32.totalorder %s15, 1
    %p75 = scmp.ne.s32.totalorder %s70, %s72
    %p76 = scmp.eq.s32.totalorder %s15, 0
    %p77 = por %p75, %p76
    %p78 = scmp.ne.s32.totalorder %s70, %s72
    %p79 = scmp.eq.s32.totalorder %s20, 1
    %p80 = por %p78, %p79
    %p81 = scmp.ne.s32.totalorder %s72, %s73
    %p82 = scmp.eq.s32.totalorder %s20, 0
    %p83 = por %p81, %p82
    %p84 = scmp.ne.s32.totalorder %s72, %s73
    %p85 = scmp.eq.s32.totalorder %s21, 1
    %p86 = por %p84, %p85
    %p88 = scmp.ne.s32.totalorder %s73, %s87
    %p89 = scmp.eq.s32.totalorder %s21, 0
    %p90 = por %p88, %p89
    %s92 = sadd.s32 %s91, 1
    %p95 = scmp.eq.s32.totalorder %s15, 1
    %p96 = scmp.ne.s32.totalorder %s91, %s93
    %p97 = scmp.eq.s32.totalorder %s15, 0
    %p98 = por %p96, %p97
    %p99 = scmp.ne.s32.totalorder %s91, %s93
    %p100 = scmp.eq.s32.totalorder %s20, 1
    %p101 = por %p99, %p100
    %p102 = scmp.ne.s32.totalorder %s93, %s94
    %p103 = scmp.eq.s32.totalorder %s20, 0
    %p104 = por %p102, %p103
    %p105 = scmp.ne.s32.totalorder %s93, %s94
    %p106 = scmp.eq.s32.totalorder %s21, 1
    %p107 = por %p105, %p106
    %p109 = scmp.ne.s32.totalorder %s94, %s108
    %p110 = scmp.eq.s32.totalorder %s21, 0
    %p111 = por %p109, %p110
    %s113 = sadd.s32 %s112, 1
    %p116 = scmp.eq.s32.totalorder %s15, 1
    %p117 = scmp.ne.s32.totalorder %s112, %s114
    %p118 = scmp.eq.s32.totalorder %s15, 0
    %p119 = por %p117, %p118
    %p120 = scmp.ne.s32.totalorder %s112, %s114
    %p121 = scmp.eq.s32.totalorder %s20, 1
    %p122 = por %p120, %p121
    %p123 = scmp.ne.s32.totalorder %s114, %s115
    %p124 = scmp.eq.s32.totalorder %s20, 0
    %p125 = por %p123, %p124
    %p126 = scmp.ne.s32.totalorder %s114, %s115
    %p127 = scmp.eq.s32.totalorder %s21, 1
    %p128 = por %p126, %p127
    %p130 = scmp.ne.s32.totalorder %s115, %s129
    %p131 = scmp.eq.s32.totalorder %s21, 0
    %p132 = por %p130, %p131
    %s134 = sadd.s32 %s133, 1
    %p137 = scmp.eq.s32.totalorder %s15, 1
    %p138 = scmp.ne.s32.totalorder %s133, %s135
    %p139 = scmp.eq.s32.totalorder %s15, 0
    %p140 = por %p138, %p139
    %p141 = scmp.ne.s32.totalorder %s133, %s135
    %p142 = scmp.eq.s32.totalorder %s20, 1
    %p143 = por %p141, %p142
    %p144 = scmp.ne.s32.totalorder %s135, %s136
    %p145 = scmp.eq.s32.totalorder %s20, 0
    %p146 = por %p144, %p145
    %p147 = scmp.ne.s32.totalorder %s135, %s136
    %p148 = scmp.eq.s32.totalorder %s21, 1
    %p149 = por %p147, %p148
    %p151 = scmp.ne.s32.totalorder %s136, %s150
    %p152 = scmp.eq.s32.totalorder %s21, 0
    %p153 = por %p151, %p152
    %s155 = sadd.s32 %s154, 1
    %p158 = scmp.eq.s32.totalorder %s15, 1
    %p159 = scmp.ne.s32.totalorder %s154, %s156
    %p160 = scmp.eq.s32.totalorder %s15, 0
    %p161 = por %p159, %p160
    %p162 = scmp.ne.s32.totalorder %s154, %s156
    %p163 = scmp.eq.s32.totalorder %s20, 1
    %p164 = por %p162, %p163
    %p165 = scmp.ne.s32.totalorder %s156, %s157
    %p166 = scmp.eq.s32.totalorder %s20, 0
    %p167 = por %p165, %p166
    %p168 = scmp.ne.s32.totalorder %s156, %s157
    %p169 = scmp.eq.s32.totalorder %s21, 1
    %p170 = por %p168, %p169
    %p172 = scmp.ne.s32.totalorder %s157, %s171
    %p173 = scmp.eq.s32.totalorder %s21, 0
    %p174 = por %p172, %p173
    %s176 = sadd.s32 %s175, 1
    %p179 = scmp.eq.s32.totalorder %s15, 1
    %p180 = scmp.ne.s32.totalorder %s175, %s177
    %p181 = scmp.eq.s32.totalorder %s15, 0
    %p182 = por %p180, %p181
    %p183 = scmp.ne.s32.totalorder %s175, %s177
    %p184 = scmp.eq.s32.totalorder %s20, 1
    %p185 = por %p183, %p184
    %p186 = scmp.ne.s32.totalorder %s177, %s178
    %p187 = scmp.eq.s32.totalorder %s20, 0
    %p188 = por %p186, %p187
    %p189 = scmp.ne.s32.totalorder %s177, %s178
    %p190 = scmp.eq.s32.totalorder %s21, 1
    %p191 = por %p189, %p190
    %p193 = scmp.ne.s32.totalorder %s178, %s192
    %p194 = scmp.eq.s32.totalorder %s21, 0
    %p195 = por %p193, %p194
    %s196 = ssub.s32 %s15, %s22
    %p197 = scmp.eq.s32.totalorder %s196, 0
    %s199 = sadd.s32 %s198, 1
    %s200 = scalar_select %p197, %s198, %s199
    %p203 = pneg %p197
    %p204 = scmp.eq.s32.totalorder %s15, 1
    %p205 = por %p203, %p204
    %p206 = scmp.ne.s32.totalorder %s198, %s201
    %p207 = scmp.eq.s32.totalorder %s15, 0
    %p208 = por %p206, %p207
    %p209 = scmp.ne.s32.totalorder %s198, %s201
    %p210 = scmp.eq.s32.totalorder %s20, 1
    %p211 = por %p209, %p210
    %p212 = scmp.ne.s32.totalorder %s201, %s202
    %p213 = scmp.eq.s32.totalorder %s20, 0
    %p214 = por %p212, %p213
    %p215 = scmp.ne.s32.totalorder %s201, %s202
    %p216 = scmp.eq.s32.totalorder %s21, 1
    %p217 = por %p215, %p216
    %p219 = scmp.ne.s32.totalorder %s202, %s218
    %p220 = scmp.eq.s32.totalorder %s21, 0
    %p221 = por %p219, %p220
    %p222 = scmp.le.s32.totalorder 1, %s15
    %p223 = scmp.lt.s32.totalorder %s15, 3
    %p224 = pnand %p222, %p223
    %p225 = pneg %p224
    // Predicated region
    $region9: #{criss_cross_attention.1} parent=5 // pred_check
      _
    $region10: #{criss_cross_attention.1} parent=5 // pred_check_branch
      %227 = sbr.rel (%p224) target = $region12
    $region11: #{criss_cross_attention.1} parent=5 // pred_region
      %s228 = ssub.s32 %s15, 1
      // Predicated region
      $region13: #{criss_cross_attention.1} parent=11 // pred_check
        %p229 = pneg %p62
      $region14: #{criss_cross_attention.1} parent=11 // pred_check_branch
        %231 = sbr.rel (%p229) target = $region16
      $region15: #{criss_cross_attention.1} parent=11 // pred_region
        _
      $region16: #{criss_cross_attention.1} parent=11 // pred_fallthru
        _
      // Predicated region
      $region17: #{criss_cross_attention.1} parent=11 // pred_check
        %p232 = pneg %p83
      $region18: #{criss_cross_attention.1} parent=11 // pred_check_branch
        %234 = sbr.rel (%p232) target = $region20
      $region19: #{criss_cross_attention.1} parent=11 // pred_region
        _
      $region20: #{criss_cross_attention.1} parent=11 // pred_fallthru
        _
      // Predicated region
      $region21: #{criss_cross_attention.1} parent=11 // pred_check
        %p235 = pneg %p104
      $region22: #{criss_cross_attention.1} parent=11 // pred_check_branch
        %237 = sbr.rel (%p235) target = $region24
      $region23: #{criss_cross_attention.1} parent=11 // pred_region
        _
      $region24: #{criss_cross_attention.1} parent=11 // pred_fallthru
        _
      // Predicated region
      $region25: #{criss_cross_attention.1} parent=11 // pred_check
        %p238 = pneg %p125
      $region26: #{criss_cross_attention.1} parent=11 // pred_check_branch
        %240 = sbr.rel (%p238) target = $region28
      $region27: #{criss_cross_attention.1} parent=11 // pred_region
        _
      $region28: #{criss_cross_attention.1} parent=11 // pred_fallthru
        _
      // Predicated region
      $region29: #{criss_cross_attention.1} parent=11 // pred_check
        %p241 = pneg %p146
      $region30: #{criss_cross_attention.1} parent=11 // pred_check_branch
        %243 = sbr.rel (%p241) target = $region32
      $region31: #{criss_cross_attention.1} parent=11 // pred_region
        _
      $region32: #{criss_cross_attention.1} parent=11 // pred_fallthru
        _
      // Predicated region
      $region33: #{criss_cross_attention.1} parent=11 // pred_check
        %p244 = pneg %p167
      $region34: #{criss_cross_attention.1} parent=11 // pred_check_branch
        %246 = sbr.rel (%p244) target = $region36
      $region35: #{criss_cross_attention.1} parent=11 // pred_region
        _
      $region36: #{criss_cross_attention.1} parent=11 // pred_fallthru
        _
      // Predicated region
      $region37: #{criss_cross_attention.1} parent=11 // pred_check
        %p247 = pneg %p188
      $region38: #{criss_cross_attention.1} parent=11 // pred_check_branch
        %249 = sbr.rel (%p247) target = $region40
      $region39: #{criss_cross_attention.1} parent=11 // pred_region
        _
      $region40: #{criss_cross_attention.1} parent=11 // pred_fallthru
        _
    $region12: #{criss_cross_attention.1} parent=5 // pred_fallthru
      _
    %p250 = scmp.lt.s32.totalorder %s15, 2
    // Predicated region
    $region41: #{criss_cross_attention.1} parent=5 // pred_check
      %p251 = pneg %p250
    $region42: #{criss_cross_attention.1} parent=5 // pred_check_branch
      %253 = sbr.rel (%p251) target = $region44
    $region43: #{criss_cross_attention.1} parent=5 // pred_region
      // Predicated region
      $region45: #{criss_cross_attention.1} parent=43 // pred_check
        %p254 = pneg %p35
      $region46: #{criss_cross_attention.1} parent=43 // pred_check_branch
        %256 = sbr.rel (%p254) target = $region48
      $region47: #{criss_cross_attention.1} parent=43 // pred_region
        %p257 = scmp.lt.s32.totalorder %s15, 1
        %s258 = scalar_select %p257, %s15, 1
        %s259 = smul.addr %s258, 8
        %s260 = smul.addr %s259, 8
        %s261 = scalar_lea.vmem %s0, %s260
      $region48: #{criss_cross_attention.1} parent=43 // pred_fallthru
        _
    $region44: #{criss_cross_attention.1} parent=5 // pred_fallthru
      _
    %p262 = scmp.le.s32.totalorder 1, %s15
    %p263 = scmp.lt.s32.totalorder %s15, 3
    %p264 = pnand %p262, %p263
    %p265 = pneg %p264
    // Predicated region
    $region49: #{criss_cross_attention.1} parent=5 // pred_check
      _
    $region50: #{criss_cross_attention.1} parent=5 // pred_check_branch
      %267 = sbr.rel (%p264) target = $region52
    $region51: #{criss_cross_attention.1} parent=5 // pred_region
      %s268 = ssub.s32 %s15, 1
      %p269 = scmp.lt.s32.totalorder %s20, 1
      %s270 = scalar_select %p269, %s20, 1
      %s271 = smul.addr %s270, 8
      %s272 = smul.addr %s271, 8
      %s273 = scalar_lea.vmem %s0, %s272
      %p274 = pneg %p41
      %p275 = pneg %p38
      %p276 = pneg %p62
      %p277 = pneg %p59
      %p278 = pneg %p83
      %p279 = pneg %p80
      %p280 = pneg %p104
      %p281 = pneg %p101
      %p282 = pneg %p125
      %p283 = pneg %p122
      %p284 = pneg %p146
      %p285 = pneg %p143
      %p286 = pneg %p167
      %p287 = pneg %p164
      %p288 = pneg %p188
      %p289 = pneg %p185
      %p290 = pneg %p214
      %p291 = pneg %p211
      %p292 = scmp.lt.s32.totalorder %s20, 1
      %s293 = scalar_select %p292, %s20, 1
      %s294 = smul.addr %s293, 8
      %s295 = smul.addr %s294, 8
      %s296 = scalar_lea.vmem %s8, %s295
      %p297 = scmp.lt.s32.totalorder %s20, 1
      %s298 = scalar_select %p297, %s20, 1
      %s299 = smul.addr %s298, 8
      %s300 = smul.addr %s299, 8
      %s301 = scalar_lea.vmem %s0, %s300
      %p302 = scmp.lt.s32.totalorder %s20, 1
      %s303 = scalar_select %p302, %s20, 1
      %s304 = smul.addr %s303, 8
      %s305 = smul.addr %s304, 8
      %s306 = scalar_lea.vmem %s8, %s305
      %v308 = vld [vmem:[%s301] sm:$0xff]
      %v309 = vld [vmem:[%s301 + $0x8] sm:$0xff]
      %v310 = vld [vmem:[%s301 + $0x10] sm:$0xff]
      %v311 = vld [vmem:[%s301 + $0x18] sm:$0xff]
      %v312 = vld [vmem:[%s301 + $0x20] sm:$0xff]
      %v313 = vld [vmem:[%s301 + $0x28] sm:$0xff]
      %v314 = vld [vmem:[%s301 + $0x30] sm:$0xff]
      %v315 = vld [vmem:[%s301 + $0x38] sm:$0xff]
      %316 = vxpose.xlu0.b32.start [1/16] %v308, 128
      %317 = vxpose.xlu0.b32.cont [2/16] %v310, 128
      %318 = vxpose.xlu0.b32.cont [3/16] %v312, 128
      %319 = vxpose.xlu0.b32.cont [4/16] %v314, 128
      %320 = vxpose.xlu0.b32.cont [5/16] 0.0, 128
      %321 = vxpose.xlu0.b32.cont [6/16] 0.0, 128
      %322 = vxpose.xlu0.b32.cont [7/16] 0.0, 128
      %323 = vxpose.xlu0.b32.cont [8/16] 0.0, 128
      %324 = vxpose.xlu0.b32.cont [9/16] 0.0, 128
      %325 = vxpose.xlu0.b32.cont [10/16] 0.0, 128
      %326 = vxpose.xlu0.b32.cont [11/16] 0.0, 128
      %327 = vxpose.xlu0.b32.cont [12/16] 0.0, 128
      %328 = vxpose.xlu0.b32.cont [13/16] 0.0, 128
      %329 = vxpose.xlu0.b32.cont [14/16] 0.0, 128
      %330 = vxpose.xlu0.b32.cont [15/16] 0.0, 128
      %331 = vxpose.xlu0.b32.end [16/16] 0.0, 128
      %v332 = vpop.trf.xlu0
      %v333 = vpop.trf.xlu0
      %v334 = vpop.trf.xlu0
      %v335 = vpop.trf.xlu0
      %v336 = vpop.trf.xlu0
      %v337 = vpop.trf.xlu0
      %v338 = vpop.trf.xlu0
      %v339 = vpop.trf.xlu0
      %v340 = vpop.trf.xlu0
      %v341 = vpop.trf.xlu0
      %v342 = vpop.trf.xlu0
      %v343 = vpop.trf.xlu0
      %v344 = vpop.trf.xlu0
      %v345 = vpop.trf.xlu0
      %v346 = vpop.trf.xlu0
      %v347 = vpop.trf.xlu0
      %348 = vxpose.xlu0.b32.start [1/16] %v309, 128
      %349 = vxpose.xlu0.b32.cont [2/16] %v311, 128
      %350 = vxpose.xlu0.b32.cont [3/16] %v313, 128
      %351 = vxpose.xlu0.b32.cont [4/16] %v315, 128
      %352 = vxpose.xlu0.b32.cont [5/16] 0.0, 128
      %353 = vxpose.xlu0.b32.cont [6/16] 0.0, 128
      %354 = vxpose.xlu0.b32.cont [7/16] 0.0, 128
      %355 = vxpose.xlu0.b32.cont [8/16] 0.0, 128
      %356 = vxpose.xlu0.b32.cont [9/16] 0.0, 128
      %357 = vxpose.xlu0.b32.cont [10/16] 0.0, 128
      %358 = vxpose.xlu0.b32.cont [11/16] 0.0, 128
      %359 = vxpose.xlu0.b32.cont [12/16] 0.0, 128
      %360 = vxpose.xlu0.b32.cont [13/16] 0.0, 128
      %361 = vxpose.xlu0.b32.cont [14/16] 0.0, 128
      %362 = vxpose.xlu0.b32.cont [15/16] 0.0, 128
      %363 = vxpose.xlu0.b32.end [16/16] 0.0, 128
      %v364 = vpop.trf.xlu0
      %v365 = vpop.trf.xlu0
      %v366 = vpop.trf.xlu0
      %v367 = vpop.trf.xlu0
      %v368 = vpop.trf.xlu0
      %v369 = vpop.trf.xlu0
      %v370 = vpop.trf.xlu0
      %v371 = vpop.trf.xlu0
      %v372 = vpop.trf.xlu0
      %v373 = vpop.trf.xlu0
      %v374 = vpop.trf.xlu0
      %v375 = vpop.trf.xlu0
      %v376 = vpop.trf.xlu0
      %v377 = vpop.trf.xlu0
      %v378 = vpop.trf.xlu0
      %v379 = vpop.trf.xlu0
      %v380 = vpack.c.bf16 %v333, %v332
      %v381 = vpack.c.bf16 %v335, %v334
      %v382 = vpack.c.bf16 %v337, %v336
      %v383 = vpack.c.bf16 %v339, %v338
      %v384 = vpack.c.bf16 %v341, %v340
      %v385 = vpack.c.bf16 %v343, %v342
      %v386 = vpack.c.bf16 %v345, %v344
      %v387 = vpack.c.bf16 %v347, %v346
      %v388 = vpack.c.bf16 %v365, %v364
      %v389 = vpack.c.bf16 %v367, %v366
      %v390 = vpack.c.bf16 %v369, %v368
      %v391 = vpack.c.bf16 %v371, %v370
      %v392 = vpack.c.bf16 %v373, %v372
      %v393 = vpack.c.bf16 %v375, %v374
      %v394 = vpack.c.bf16 %v377, %v376
      %v395 = vpack.c.bf16 %v379, %v378
      %v396 = vld [vmem:[%s1] sm:$0xf]
      %v397 = vld [vmem:[%s1 + $0x4] sm:$0xf]
      %v398 = vld [vmem:[%s1 + $0x8] sm:$0xf]
      %v399 = vld [vmem:[%s1 + $0xc] sm:$0xf]
      %v400 = vld [vmem:[%s2] sm:$0x1]
      %v402 = vperm.slane %v400, 0
      %v408 = vunpack.c.l.b16 %v396
      %v409 = vunpack.c.l.b16 %v397
      %v410 = vunpack.c.l.b16 %v398
      %v411 = vunpack.c.l.b16 %v399
      %v412 = vpack.c.b16 %v409, %v408
      %v413 = vpack.c.b16 %v411, %v410
      %vm416 = vcmask 261120
      %v418 = vsel %vm416, %v380, 0
      %v421 = vsel %vm416, %v381, 0
      %v424 = vsel %vm416, %v382, 0
      %v427 = vsel %vm416, %v383, 0
      %v430 = vsel %vm416, %v384, 0
      %v433 = vsel %vm416, %v385, 0
      %v436 = vsel %vm416, %v386, 0
      %v439 = vsel %vm416, %v387, 0
      %v442 = vsel %vm416, %v388, 0
      %v445 = vsel %vm416, %v389, 0
      %v448 = vsel %vm416, %v390, 0
      %v451 = vsel %vm416, %v391, 0
      %v454 = vsel %vm416, %v392, 0
      %v457 = vsel %vm416, %v393, 0
      %v460 = vsel %vm416, %v394, 0
      %v463 = vsel %vm416, %v395, 0
      %465 = vmatpush.bf16.msra.mxu0 0
      %466 = vmatpush.bf16.msra.mxu0 0
      %467 = vmatpush.bf16.msra.mxu0 0
      %468 = vmatpush.bf16.msra.mxu0 0
      %469 = vmatpush.bf16.msra.mxu0 0
      %470 = vmatpush.bf16.msra.mxu0 0
      %471 = vmatpush.bf16.msra.mxu0 %v413
      %472 = vmatpush.bf16.msra.mxu0 %v412
      %473 = vmatmul.bf16.gmra.mxu0 %v418
      %v474 = vpop.f32.mrf.mxu0
      %v475 = vadd.f32 %v402, %v474
      %v476 = vpop.f32.mrf.mxu0
      %v477 = vadd.f32 %v402, %v476
      %478 = vmatmul.bf16.gmra.mxu0 %v421
      %v479 = vpop.f32.mrf.mxu0
      %v480 = vadd.f32 %v402, %v479
      %v481 = vpop.f32.mrf.mxu0
      %v482 = vadd.f32 %v402, %v481
      %483 = vmatmul.bf16.gmra.mxu0 %v424
      %v484 = vpop.f32.mrf.mxu0
      %v485 = vadd.f32 %v402, %v484
      %v486 = vpop.f32.mrf.mxu0
      %v487 = vadd.f32 %v402, %v486
      %488 = vmatmul.bf16.gmra.mxu0 %v427
      %v489 = vpop.f32.mrf.mxu0
      %v490 = vadd.f32 %v402, %v489
      %v491 = vpop.f32.mrf.mxu0
      %v492 = vadd.f32 %v402, %v491
      %493 = vmatmul.bf16.gmra.mxu0 %v430
      %v494 = vpop.f32.mrf.mxu0
      %v495 = vadd.f32 %v402, %v494
      %v496 = vpop.f32.mrf.mxu0
      %v497 = vadd.f32 %v402, %v496
      %498 = vmatmul.bf16.gmra.mxu0 %v433
      %v499 = vpop.f32.mrf.mxu0
      %v500 = vadd.f32 %v402, %v499
      %v501 = vpop.f32.mrf.mxu0
      %v502 = vadd.f32 %v402, %v501
      %503 = vmatmul.bf16.gmra.mxu0 %v436
      %v504 = vpop.f32.mrf.mxu0
      %v505 = vadd.f32 %v402, %v504
      %v506 = vpop.f32.mrf.mxu0
      %v507 = vadd.f32 %v402, %v506
      %508 = vmatmul.bf16.gmra.mxu0 %v439
      %v509 = vpop.f32.mrf.mxu0
      %v510 = vadd.f32 %v402, %v509
      %v511 = vpop.f32.mrf.mxu0
      %v512 = vadd.f32 %v402, %v511
      %513 = vmatmul.bf16.gmra.mxu0 %v442
      %v514 = vpop.f32.mrf.mxu0
      %v515 = vadd.f32 %v402, %v514
      %v516 = vpop.f32.mrf.mxu0
      %v517 = vadd.f32 %v402, %v516
      %518 = vmatmul.bf16.gmra.mxu0 %v445
      %v519 = vpop.f32.mrf.mxu0
      %v520 = vadd.f32 %v402, %v519
      %v521 = vpop.f32.mrf.mxu0
      %v522 = vadd.f32 %v402, %v521
      %523 = vmatmul.bf16.gmra.mxu0 %v448
      %v524 = vpop.f32.mrf.mxu0
      %v525 = vadd.f32 %v402, %v524
      %v526 = vpop.f32.mrf.mxu0
      %v527 = vadd.f32 %v402, %v526
      %528 = vmatmul.bf16.gmra.mxu0 %v451
      %v529 = vpop.f32.mrf.mxu0
      %v530 = vadd.f32 %v402, %v529
      %v531 = vpop.f32.mrf.mxu0
      %v532 = vadd.f32 %v402, %v531
      %533 = vmatmul.bf16.gmra.mxu0 %v454
      %v534 = vpop.f32.mrf.mxu0
      %v535 = vadd.f32 %v402, %v534
      %v536 = vpop.f32.mrf.mxu0
      %v537 = vadd.f32 %v402, %v536
      %538 = vmatmul.bf16.gmra.mxu0 %v457
      %v539 = vpop.f32.mrf.mxu0
      %v540 = vadd.f32 %v402, %v539
      %v541 = vpop.f32.mrf.mxu0
      %v542 = vadd.f32 %v402, %v541
      %543 = vmatmul.bf16.gmra.mxu0 %v460
      %v544 = vpop.f32.mrf.mxu0
      %v545 = vadd.f32 %v402, %v544
      %v546 = vpop.f32.mrf.mxu0
      %v547 = vadd.f32 %v402, %v546
      %548 = vmatmul.bf16.gmra.mxu0 %v463
      %v549 = vpop.f32.mrf.mxu0
      %v550 = vadd.f32 %v402, %v549
      %v551 = vpop.f32.mrf.mxu0
      %v552 = vadd.f32 %v402, %v551
      %553 = vdwg.mxu0
      %v554 = vld [vmem:[%s3] sm:$0xf]
      %v555 = vld [vmem:[%s3 + $0x4] sm:$0xf]
      %v556 = vld [vmem:[%s3 + $0x8] sm:$0xf]
      %v557 = vld [vmem:[%s3 + $0xc] sm:$0xf]
      %v558 = vld [vmem:[%s4] sm:$0x1]
      %v560 = vperm.slane %v558, 0
      %v566 = vunpack.c.l.b16 %v554
      %v567 = vunpack.c.l.b16 %v555
      %v568 = vunpack.c.l.b16 %v556
      %v569 = vunpack.c.l.b16 %v557
      %v570 = vpack.c.b16 %v567, %v566
      %v571 = vpack.c.b16 %v569, %v568
      %574 = vmatpush.bf16.msra.mxu0 0
      %575 = vmatpush.bf16.msra.mxu0 0
      %576 = vmatpush.bf16.msra.mxu0 0
      %577 = vmatpush.bf16.msra.mxu0 0
      %578 = vmatpush.bf16.msra.mxu0 0
      %579 = vmatpush.bf16.msra.mxu0 0
      %580 = vmatpush.bf16.msra.mxu0 %v571
      %581 = vmatpush.bf16.msra.mxu0 %v570
      %582 = vmatmul.bf16.gmra.mxu0 %v418
      %v583 = vpop.f32.mrf.mxu0
      %v584 = vadd.f32 %v560, %v583
      %v585 = vpop.f32.mrf.mxu0
      %v586 = vadd.f32 %v560, %v585
      %587 = vmatmul.bf16.gmra.mxu0 %v421
      %v588 = vpop.f32.mrf.mxu0
      %v589 = vadd.f32 %v560, %v588
      %v590 = vpop.f32.mrf.mxu0
      %v591 = vadd.f32 %v560, %v590
      %592 = vmatmul.bf16.gmra.mxu0 %v424
      %v593 = vpop.f32.mrf.mxu0
      %v594 = vadd.f32 %v560, %v593
      %v595 = vpop.f32.mrf.mxu0
      %v596 = vadd.f32 %v560, %v595
      %597 = vmatmul.bf16.gmra.mxu0 %v427
      %v598 = vpop.f32.mrf.mxu0
      %v599 = vadd.f32 %v560, %v598
      %v600 = vpop.f32.mrf.mxu0
      %v601 = vadd.f32 %v560, %v600
      %602 = vmatmul.bf16.gmra.mxu0 %v430
      %v603 = vpop.f32.mrf.mxu0
      %v604 = vadd.f32 %v560, %v603
      %v605 = vpop.f32.mrf.mxu0
      %v606 = vadd.f32 %v560, %v605
      %607 = vmatmul.bf16.gmra.mxu0 %v433
      %v608 = vpop.f32.mrf.mxu0
      %v609 = vadd.f32 %v560, %v608
      %v610 = vpop.f32.mrf.mxu0
      %v611 = vadd.f32 %v560, %v610
      %612 = vmatmul.bf16.gmra.mxu0 %v436
      %v613 = vpop.f32.mrf.mxu0
      %v614 = vadd.f32 %v560, %v613
      %v615 = vpop.f32.mrf.mxu0
      %v616 = vadd.f32 %v560, %v615
      %617 = vmatmul.bf16.gmra.mxu0 %v439
      %v618 = vpop.f32.mrf.mxu0
      %v619 = vadd.f32 %v560, %v618
      %v620 = vpop.f32.mrf.mxu0
      %v621 = vadd.f32 %v560, %v620
      %622 = vmatmul.bf16.gmra.mxu0 %v442
      %v623 = vpop.f32.mrf.mxu0
      %v624 = vadd.f32 %v560, %v623
      %v625 = vpop.f32.mrf.mxu0
      %v626 = vadd.f32 %v560, %v625
      %627 = vmatmul.bf16.gmra.mxu0 %v445
      %v628 = vpop.f32.mrf.mxu0
      %v629 = vadd.f32 %v560, %v628
      %v630 = vpop.f32.mrf.mxu0
      %v631 = vadd.f32 %v560, %v630
      %632 = vmatmul.bf16.gmra.mxu0 %v448
      %v633 = vpop.f32.mrf.mxu0
      %v634 = vadd.f32 %v560, %v633
      %v635 = vpop.f32.mrf.mxu0
      %v636 = vadd.f32 %v560, %v635
      %637 = vmatmul.bf16.gmra.mxu0 %v451
      %v638 = vpop.f32.mrf.mxu0
      %v639 = vadd.f32 %v560, %v638
      %v640 = vpop.f32.mrf.mxu0
      %v641 = vadd.f32 %v560, %v640
      %642 = vmatmul.bf16.gmra.mxu0 %v454
      %v643 = vpop.f32.mrf.mxu0
      %v644 = vadd.f32 %v560, %v643
      %v645 = vpop.f32.mrf.mxu0
      %v646 = vadd.f32 %v560, %v645
      %647 = vmatmul.bf16.gmra.mxu0 %v457
      %v648 = vpop.f32.mrf.mxu0
      %v649 = vadd.f32 %v560, %v648
      %v650 = vpop.f32.mrf.mxu0
      %v651 = vadd.f32 %v560, %v650
      %652 = vmatmul.bf16.gmra.mxu0 %v460
      %v653 = vpop.f32.mrf.mxu0
      %v654 = vadd.f32 %v560, %v653
      %v655 = vpop.f32.mrf.mxu0
      %v656 = vadd.f32 %v560, %v655
      %657 = vmatmul.bf16.gmra.mxu0 %v463
      %v658 = vpop.f32.mrf.mxu0
      %v659 = vadd.f32 %v560, %v658
      %v660 = vpop.f32.mrf.mxu0
      %v661 = vadd.f32 %v560, %v660
      %662 = vdwg.mxu0
      %v663 = vld [vmem:[%s5] sm:$0xf]
      %v664 = vld [vmem:[%s5 + $0x4] sm:$0xf]
      %v665 = vld [vmem:[%s5 + $0x8] sm:$0xf]
      %v666 = vld [vmem:[%s5 + $0xc] sm:$0xf]
      %v667 = vld [vmem:[%s6] sm:$0x1]
      %v669 = vperm.slane %v667, 0
      %v675 = vunpack.c.l.b16 %v663
      %v676 = vunpack.c.l.b16 %v664
      %v677 = vunpack.c.l.b16 %v665
      %v678 = vunpack.c.l.b16 %v666
      %v679 = vpack.c.b16 %v676, %v675
      %v680 = vpack.c.b16 %v678, %v677
      %683 = vmatpush.bf16.msra.mxu0 0
      %684 = vmatpush.bf16.msra.mxu0 0
      %685 = vmatpush.bf16.msra.mxu0 0
      %686 = vmatpush.bf16.msra.mxu0 0
      %687 = vmatpush.bf16.msra.mxu0 0
      %688 = vmatpush.bf16.msra.mxu0 0
      %689 = vmatpush.bf16.msra.mxu0 %v680
      %690 = vmatpush.bf16.msra.mxu0 %v679
      %691 = vmatmul.bf16.gmra.mxu0 %v418
      %v692 = vpop.f32.mrf.mxu0
      %v693 = vadd.f32 %v669, %v692
      %v694 = vpop.f32.mrf.mxu0
      %v695 = vadd.f32 %v669, %v694
      %696 = vmatmul.bf16.gmra.mxu0 %v421
      %v697 = vpop.f32.mrf.mxu0
      %v698 = vadd.f32 %v669, %v697
      %v699 = vpop.f32.mrf.mxu0
      %v700 = vadd.f32 %v669, %v699
      %701 = vmatmul.bf16.gmra.mxu0 %v424
      %v702 = vpop.f32.mrf.mxu0
      %v703 = vadd.f32 %v669, %v702
      %v704 = vpop.f32.mrf.mxu0
      %v705 = vadd.f32 %v669, %v704
      %706 = vmatmul.bf16.gmra.mxu0 %v427
      %v707 = vpop.f32.mrf.mxu0
      %v708 = vadd.f32 %v669, %v707
      %v709 = vpop.f32.mrf.mxu0
      %v710 = vadd.f32 %v669, %v709
      %711 = vmatmul.bf16.gmra.mxu0 %v430
      %v712 = vpop.f32.mrf.mxu0
      %v713 = vadd.f32 %v669, %v712
      %v714 = vpop.f32.mrf.mxu0
      %v715 = vadd.f32 %v669, %v714
      %716 = vmatmul.bf16.gmra.mxu0 %v433
      %v717 = vpop.f32.mrf.mxu0
      %v718 = vadd.f32 %v669, %v717
      %v719 = vpop.f32.mrf.mxu0
      %v720 = vadd.f32 %v669, %v719
      %721 = vmatmul.bf16.gmra.mxu0 %v436
      %v722 = vpop.f32.mrf.mxu0
      %v723 = vadd.f32 %v669, %v722
      %v724 = vpop.f32.mrf.mxu0
      %v725 = vadd.f32 %v669, %v724
      %726 = vmatmul.bf16.gmra.mxu0 %v439
      %v727 = vpop.f32.mrf.mxu0
      %v728 = vadd.f32 %v669, %v727
      %v729 = vpop.f32.mrf.mxu0
      %v730 = vadd.f32 %v669, %v729
      %731 = vmatmul.bf16.gmra.mxu0 %v442
      %v732 = vpop.f32.mrf.mxu0
      %v733 = vadd.f32 %v669, %v732
      %v734 = vpop.f32.mrf.mxu0
      %v735 = vadd.f32 %v669, %v734
      %736 = vmatmul.bf16.gmra.mxu0 %v445
      %v737 = vpop.f32.mrf.mxu0
      %v738 = vadd.f32 %v669, %v737
      %v739 = vpop.f32.mrf.mxu0
      %v740 = vadd.f32 %v669, %v739
      %741 = vmatmul.bf16.gmra.mxu0 %v448
      %v742 = vpop.f32.mrf.mxu0
      %v743 = vadd.f32 %v669, %v742
      %v744 = vpop.f32.mrf.mxu0
      %v745 = vadd.f32 %v669, %v744
      %746 = vmatmul.bf16.gmra.mxu0 %v451
      %v747 = vpop.f32.mrf.mxu0
      %v748 = vadd.f32 %v669, %v747
      %v749 = vpop.f32.mrf.mxu0
      %v750 = vadd.f32 %v669, %v749
      %751 = vmatmul.bf16.gmra.mxu0 %v454
      %v752 = vpop.f32.mrf.mxu0
      %v753 = vadd.f32 %v669, %v752
      %v754 = vpop.f32.mrf.mxu0
      %v755 = vadd.f32 %v669, %v754
      %756 = vmatmul.bf16.gmra.mxu0 %v457
      %v757 = vpop.f32.mrf.mxu0
      %v758 = vadd.f32 %v669, %v757
      %v759 = vpop.f32.mrf.mxu0
      %v760 = vadd.f32 %v669, %v759
      %761 = vmatmul.bf16.gmra.mxu0 %v460
      %v762 = vpop.f32.mrf.mxu0
      %v763 = vadd.f32 %v669, %v762
      %v764 = vpop.f32.mrf.mxu0
      %v765 = vadd.f32 %v669, %v764
      %766 = vmatmul.bf16.gmra.mxu0 %v463
      %v767 = vpop.f32.mrf.mxu0
      %v768 = vadd.f32 %v669, %v767
      %v769 = vpop.f32.mrf.mxu0
      %v770 = vadd.f32 %v669, %v769
      %771 = vdwg.mxu0
      %v772 = vrot.slane %v485, 4
      %vm773 = vcmask 1047556
      %v774 = vsel %vm773, %v772, %v475
      %v775 = vrot.slane %v475, 4
      %v776 = vsel %vm773, %v485, %v775
      %v778 = vunpack.c.l.s4 1983009808
      %v779 = vunpack.c.0.s8 %v778
      %v780 = vperm.slane %v774, %v779
      %v782 = vunpack.c.l.s4 1983009808
      %v783 = vunpack.c.0.s8 %v782
      %v784 = vperm.slane %v776, %v783
      %v785 = vrot.slane %v490, 4
      %v786 = vsel %vm773, %v785, %v480
      %v787 = vrot.slane %v480, 4
      %v788 = vsel %vm773, %v490, %v787
      %v790 = vunpack.c.l.s4 1983009808
      %v791 = vunpack.c.0.s8 %v790
      %v792 = vperm.slane %v786, %v791
      %v794 = vunpack.c.l.s4 1983009808
      %v795 = vunpack.c.0.s8 %v794
      %v796 = vperm.slane %v788, %v795
      %v797 = vrot.slane %v505, 4
      %v798 = vsel %vm773, %v797, %v495
      %v799 = vrot.slane %v495, 4
      %v800 = vsel %vm773, %v505, %v799
      %v802 = vunpack.c.l.s4 1983009808
      %v803 = vunpack.c.0.s8 %v802
      %v804 = vperm.slane %v798, %v803
      %v806 = vunpack.c.l.s4 1983009808
      %v807 = vunpack.c.0.s8 %v806
      %v808 = vperm.slane %v800, %v807
      %v809 = vrot.slane %v510, 4
      %v810 = vsel %vm773, %v809, %v500
      %v811 = vrot.slane %v500, 4
      %v812 = vsel %vm773, %v510, %v811
      %v814 = vunpack.c.l.s4 1983009808
      %v815 = vunpack.c.0.s8 %v814
      %v816 = vperm.slane %v810, %v815
      %v818 = vunpack.c.l.s4 1983009808
      %v819 = vunpack.c.0.s8 %v818
      %v820 = vperm.slane %v812, %v819
      %v821 = vrot.slane %v792, 4
      %v822 = vsel %vm773, %v821, %v780
      %v823 = vrot.slane %v780, 4
      %v824 = vsel %vm773, %v792, %v823
      %v826 = vunpack.c.l.s4 1934713408
      %v827 = vunpack.c.0.s8 %v826
      %v828 = vperm.slane %v822, %v827
      %v830 = vunpack.c.l.s4 1934713408
      %v831 = vunpack.c.0.s8 %v830
      %v832 = vperm.slane %v824, %v831
      %v833 = vrot.slane %v796, 4
      %v834 = vsel %vm773, %v833, %v784
      %v835 = vrot.slane %v784, 4
      %v836 = vsel %vm773, %v796, %v835
      %v838 = vunpack.c.l.s4 1934713408
      %v839 = vunpack.c.0.s8 %v838
      %v840 = vperm.slane %v834, %v839
      %v842 = vunpack.c.l.s4 1934713408
      %v843 = vunpack.c.0.s8 %v842
      %v844 = vperm.slane %v836, %v843
      %v845 = vrot.slane %v816, 4
      %v846 = vsel %vm773, %v845, %v804
      %v847 = vrot.slane %v804, 4
      %v848 = vsel %vm773, %v816, %v847
      %v850 = vunpack.c.l.s4 1934713408
      %v851 = vunpack.c.0.s8 %v850
      %v852 = vperm.slane %v846, %v851
      %v854 = vunpack.c.l.s4 1934713408
      %v855 = vunpack.c.0.s8 %v854
      %v856 = vperm.slane %v848, %v855
      %v857 = vrot.slane %v820, 4
      %v858 = vsel %vm773, %v857, %v808
      %v859 = vrot.slane %v808, 4
      %v860 = vsel %vm773, %v820, %v859
      %v862 = vunpack.c.l.s4 1934713408
      %v863 = vunpack.c.0.s8 %v862
      %v864 = vperm.slane %v858, %v863
      %v866 = vunpack.c.l.s4 1934713408
      %v867 = vunpack.c.0.s8 %v866
      %v868 = vperm.slane %v860, %v867
      %v869 = vrot.slane %v852, 4
      %v870 = vsel %vm773, %v869, %v828
      %v871 = vrot.slane %v828, 4
      %v872 = vsel %vm773, %v852, %v871
      %v873 = vrot.slane %v856, 4
      %v874 = vsel %vm773, %v873, %v832
      %v875 = vrot.slane %v832, 4
      %v876 = vsel %vm773, %v856, %v875
      %v877 = vrot.slane %v864, 4
      %v878 = vsel %vm773, %v877, %v840
      %v879 = vrot.slane %v840, 4
      %v880 = vsel %vm773, %v864, %v879
      %v881 = vrot.slane %v868, 4
      %v882 = vsel %vm773, %v881, %v844
      %v883 = vrot.slane %v844, 4
      %v884 = vsel %vm773, %v868, %v883
      %v885 = vrot.slane %v525, 4
      %v886 = vsel %vm773, %v885, %v515
      %v887 = vrot.slane %v515, 4
      %v888 = vsel %vm773, %v525, %v887
      %v890 = vunpack.c.l.s4 1983009808
      %v891 = vunpack.c.0.s8 %v890
      %v892 = vperm.slane %v886, %v891
      %v894 = vunpack.c.l.s4 1983009808
      %v895 = vunpack.c.0.s8 %v894
      %v896 = vperm.slane %v888, %v895
      %v897 = vrot.slane %v530, 4
      %v898 = vsel %vm773, %v897, %v520
      %v899 = vrot.slane %v520, 4
      %v900 = vsel %vm773, %v530, %v899
      %v902 = vunpack.c.l.s4 1983009808
      %v903 = vunpack.c.0.s8 %v902
      %v904 = vperm.slane %v898, %v903
      %v906 = vunpack.c.l.s4 1983009808
      %v907 = vunpack.c.0.s8 %v906
      %v908 = vperm.slane %v900, %v907
      %v909 = vrot.slane %v545, 4
      %v910 = vsel %vm773, %v909, %v535
      %v911 = vrot.slane %v535, 4
      %v912 = vsel %vm773, %v545, %v911
      %v914 = vunpack.c.l.s4 1983009808
      %v915 = vunpack.c.0.s8 %v914
      %v916 = vperm.slane %v910, %v915
      %v918 = vunpack.c.l.s4 1983009808
      %v919 = vunpack.c.0.s8 %v918
      %v920 = vperm.slane %v912, %v919
      %v921 = vrot.slane %v550, 4
      %v922 = vsel %vm773, %v921, %v540
      %v923 = vrot.slane %v540, 4
      %v924 = vsel %vm773, %v550, %v923
      %v926 = vunpack.c.l.s4 1983009808
      %v927 = vunpack.c.0.s8 %v926
      %v928 = vperm.slane %v922, %v927
      %v930 = vunpack.c.l.s4 1983009808
      %v931 = vunpack.c.0.s8 %v930
      %v932 = vperm.slane %v924, %v931
      %v933 = vrot.slane %v904, 4
      %v934 = vsel %vm773, %v933, %v892
      %v935 = vrot.slane %v892, 4
      %v936 = vsel %vm773, %v904, %v935
      %v938 = vunpack.c.l.s4 1934713408
      %v939 = vunpack.c.0.s8 %v938
      %v940 = vperm.slane %v934, %v939
      %v942 = vunpack.c.l.s4 1934713408
      %v943 = vunpack.c.0.s8 %v942
      %v944 = vperm.slane %v936, %v943
      %v945 = vrot.slane %v908, 4
      %v946 = vsel %vm773, %v945, %v896
      %v947 = vrot.slane %v896, 4
      %v948 = vsel %vm773, %v908, %v947
      %v950 = vunpack.c.l.s4 1934713408
      %v951 = vunpack.c.0.s8 %v950
      %v952 = vperm.slane %v946, %v951
      %v954 = vunpack.c.l.s4 1934713408
      %v955 = vunpack.c.0.s8 %v954
      %v956 = vperm.slane %v948, %v955
      %v957 = vrot.slane %v928, 4
      %v958 = vsel %vm773, %v957, %v916
      %v959 = vrot.slane %v916, 4
      %v960 = vsel %vm773, %v928, %v959
      %v962 = vunpack.c.l.s4 1934713408
      %v963 = vunpack.c.0.s8 %v962
      %v964 = vperm.slane %v958, %v963
      %v966 = vunpack.c.l.s4 1934713408
      %v967 = vunpack.c.0.s8 %v966
      %v968 = vperm.slane %v960, %v967
      %v969 = vrot.slane %v932, 4
      %v970 = vsel %vm773, %v969, %v920
      %v971 = vrot.slane %v920, 4
      %v972 = vsel %vm773, %v932, %v971
      %v974 = vunpack.c.l.s4 1934713408
      %v975 = vunpack.c.0.s8 %v974
      %v976 = vperm.slane %v970, %v975
      %v978 = vunpack.c.l.s4 1934713408
      %v979 = vunpack.c.0.s8 %v978
      %v980 = vperm.slane %v972, %v979
      %v981 = vrot.slane %v964, 4
      %v982 = vsel %vm773, %v981, %v940
      %v983 = vrot.slane %v940, 4
      %v984 = vsel %vm773, %v964, %v983
      %v985 = vrot.slane %v968, 4
      %v986 = vsel %vm773, %v985, %v944
      %v987 = vrot.slane %v944, 4
      %v988 = vsel %vm773, %v968, %v987
      %v989 = vrot.slane %v976, 4
      %v990 = vsel %vm773, %v989, %v952
      %v991 = vrot.slane %v952, 4
      %v992 = vsel %vm773, %v976, %v991
      %v993 = vrot.slane %v980, 4
      %v994 = vsel %vm773, %v993, %v956
      %v995 = vrot.slane %v956, 4
      %v996 = vsel %vm773, %v980, %v995
      %v997 = vrot.slane %v487, 4
      %v998 = vsel %vm773, %v997, %v477
      %v999 = vrot.slane %v477, 4
      %v1000 = vsel %vm773, %v487, %v999
      %v1002 = vunpack.c.l.s4 1983009808
      %v1003 = vunpack.c.0.s8 %v1002
      %v1004 = vperm.slane %v998, %v1003
      %v1006 = vunpack.c.l.s4 1983009808
      %v1007 = vunpack.c.0.s8 %v1006
      %v1008 = vperm.slane %v1000, %v1007
      %v1009 = vrot.slane %v492, 4
      %v1010 = vsel %vm773, %v1009, %v482
      %v1011 = vrot.slane %v482, 4
      %v1012 = vsel %vm773, %v492, %v1011
      %v1014 = vunpack.c.l.s4 1983009808
      %v1015 = vunpack.c.0.s8 %v1014
      %v1016 = vperm.slane %v1010, %v1015
      %v1018 = vunpack.c.l.s4 1983009808
      %v1019 = vunpack.c.0.s8 %v1018
      %v1020 = vperm.slane %v1012, %v1019
      %v1021 = vrot.slane %v507, 4
      %v1022 = vsel %vm773, %v1021, %v497
      %v1023 = vrot.slane %v497, 4
      %v1024 = vsel %vm773, %v507, %v1023
      %v1026 = vunpack.c.l.s4 1983009808
      %v1027 = vunpack.c.0.s8 %v1026
      %v1028 = vperm.slane %v1022, %v1027
      %v1030 = vunpack.c.l.s4 1983009808
      %v1031 = vunpack.c.0.s8 %v1030
      %v1032 = vperm.slane %v1024, %v1031
      %v1033 = vrot.slane %v512, 4
      %v1034 = vsel %vm773, %v1033, %v502
      %v1035 = vrot.slane %v502, 4
      %v1036 = vsel %vm773, %v512, %v1035
      %v1038 = vunpack.c.l.s4 1983009808
      %v1039 = vunpack.c.0.s8 %v1038
      %v1040 = vperm.slane %v1034, %v1039
      %v1042 = vunpack.c.l.s4 1983009808
      %v1043 = vunpack.c.0.s8 %v1042
      %v1044 = vperm.slane %v1036, %v1043
      %v1045 = vrot.slane %v1016, 4
      %v1046 = vsel %vm773, %v1045, %v1004
      %v1047 = vrot.slane %v1004, 4
      %v1048 = vsel %vm773, %v1016, %v1047
      %v1050 = vunpack.c.l.s4 1934713408
      %v1051 = vunpack.c.0.s8 %v1050
      %v1052 = vperm.slane %v1046, %v1051
      %v1054 = vunpack.c.l.s4 1934713408
      %v1055 = vunpack.c.0.s8 %v1054
      %v1056 = vperm.slane %v1048, %v1055
      %v1057 = vrot.slane %v1020, 4
      %v1058 = vsel %vm773, %v1057, %v1008
      %v1059 = vrot.slane %v1008, 4
      %v1060 = vsel %vm773, %v1020, %v1059
      %v1062 = vunpack.c.l.s4 1934713408
      %v1063 = vunpack.c.0.s8 %v1062
      %v1064 = vperm.slane %v1058, %v1063
      %v1066 = vunpack.c.l.s4 1934713408
      %v1067 = vunpack.c.0.s8 %v1066
      %v1068 = vperm.slane %v1060, %v1067
      %v1069 = vrot.slane %v1040, 4
      %v1070 = vsel %vm773, %v1069, %v1028
      %v1071 = vrot.slane %v1028, 4
      %v1072 = vsel %vm773, %v1040, %v1071
      %v1074 = vunpack.c.l.s4 1934713408
      %v1075 = vunpack.c.0.s8 %v1074
      %v1076 = vperm.slane %v1070, %v1075
      %v1078 = vunpack.c.l.s4 1934713408
      %v1079 = vunpack.c.0.s8 %v1078
      %v1080 = vperm.slane %v1072, %v1079
      %v1081 = vrot.slane %v1044, 4
      %v1082 = vsel %vm773, %v1081, %v1032
      %v1083 = vrot.slane %v1032, 4
      %v1084 = vsel %vm773, %v1044, %v1083
      %v1086 = vunpack.c.l.s4 1934713408
      %v1087 = vunpack.c.0.s8 %v1086
      %v1088 = vperm.slane %v1082, %v1087
      %v1090 = vunpack.c.l.s4 1934713408
      %v1091 = vunpack.c.0.s8 %v1090
      %v1092 = vperm.slane %v1084, %v1091
      %v1093 = vrot.slane %v1076, 4
      %v1094 = vsel %vm773, %v1093, %v1052
      %v1095 = vrot.slane %v1052, 4
      %v1096 = vsel %vm773, %v1076, %v1095
      %v1097 = vrot.slane %v1080, 4
      %v1098 = vsel %vm773, %v1097, %v1056
      %v1099 = vrot.slane %v1056, 4
      %v1100 = vsel %vm773, %v1080, %v1099
      %v1101 = vrot.slane %v1088, 4
      %v1102 = vsel %vm773, %v1101, %v1064
      %v1103 = vrot.slane %v1064, 4
      %v1104 = vsel %vm773, %v1088, %v1103
      %v1105 = vrot.slane %v1092, 4
      %v1106 = vsel %vm773, %v1105, %v1068
      %v1107 = vrot.slane %v1068, 4
      %v1108 = vsel %vm773, %v1092, %v1107
      %v1109 = vrot.slane %v527, 4
      %v1110 = vsel %vm773, %v1109, %v517
      %v1111 = vrot.slane %v517, 4
      %v1112 = vsel %vm773, %v527, %v1111
      %v1114 = vunpack.c.l.s4 1983009808
      %v1115 = vunpack.c.0.s8 %v1114
      %v1116 = vperm.slane %v1110, %v1115
      %v1118 = vunpack.c.l.s4 1983009808
      %v1119 = vunpack.c.0.s8 %v1118
      %v1120 = vperm.slane %v1112, %v1119
      %v1121 = vrot.slane %v532, 4
      %v1122 = vsel %vm773, %v1121, %v522
      %v1123 = vrot.slane %v522, 4
      %v1124 = vsel %vm773, %v532, %v1123
      %v1126 = vunpack.c.l.s4 1983009808
      %v1127 = vunpack.c.0.s8 %v1126
      %v1128 = vperm.slane %v1122, %v1127
      %v1130 = vunpack.c.l.s4 1983009808
      %v1131 = vunpack.c.0.s8 %v1130
      %v1132 = vperm.slane %v1124, %v1131
      %v1133 = vrot.slane %v547, 4
      %v1134 = vsel %vm773, %v1133, %v537
      %v1135 = vrot.slane %v537, 4
      %v1136 = vsel %vm773, %v547, %v1135
      %v1138 = vunpack.c.l.s4 1983009808
      %v1139 = vunpack.c.0.s8 %v1138
      %v1140 = vperm.slane %v1134, %v1139
      %v1142 = vunpack.c.l.s4 1983009808
      %v1143 = vunpack.c.0.s8 %v1142
      %v1144 = vperm.slane %v1136, %v1143
      %v1145 = vrot.slane %v552, 4
      %v1146 = vsel %vm773, %v1145, %v542
      %v1147 = vrot.slane %v542, 4
      %v1148 = vsel %vm773, %v552, %v1147
      %v1150 = vunpack.c.l.s4 1983009808
      %v1151 = vunpack.c.0.s8 %v1150
      %v1152 = vperm.slane %v1146, %v1151
      %v1154 = vunpack.c.l.s4 1983009808
      %v1155 = vunpack.c.0.s8 %v1154
      %v1156 = vperm.slane %v1148, %v1155
      %v1157 = vrot.slane %v1128, 4
      %v1158 = vsel %vm773, %v1157, %v1116
      %v1159 = vrot.slane %v1116, 4
      %v1160 = vsel %vm773, %v1128, %v1159
      %v1162 = vunpack.c.l.s4 1934713408
      %v1163 = vunpack.c.0.s8 %v1162
      %v1164 = vperm.slane %v1158, %v1163
      %v1166 = vunpack.c.l.s4 1934713408
      %v1167 = vunpack.c.0.s8 %v1166
      %v1168 = vperm.slane %v1160, %v1167
      %v1169 = vrot.slane %v1132, 4
      %v1170 = vsel %vm773, %v1169, %v1120
      %v1171 = vrot.slane %v1120, 4
      %v1172 = vsel %vm773, %v1132, %v1171
      %v1174 = vunpack.c.l.s4 1934713408
      %v1175 = vunpack.c.0.s8 %v1174
      %v1176 = vperm.slane %v1170, %v1175
      %v1178 = vunpack.c.l.s4 1934713408
      %v1179 = vunpack.c.0.s8 %v1178
      %v1180 = vperm.slane %v1172, %v1179
      %v1181 = vrot.slane %v1152, 4
      %v1182 = vsel %vm773, %v1181, %v1140
      %v1183 = vrot.slane %v1140, 4
      %v1184 = vsel %vm773, %v1152, %v1183
      %v1186 = vunpack.c.l.s4 1934713408
      %v1187 = vunpack.c.0.s8 %v1186
      %v1188 = vperm.slane %v1182, %v1187
      %v1190 = vunpack.c.l.s4 1934713408
      %v1191 = vunpack.c.0.s8 %v1190
      %v1192 = vperm.slane %v1184, %v1191
      %v1193 = vrot.slane %v1156, 4
      %v1194 = vsel %vm773, %v1193, %v1144
      %v1195 = vrot.slane %v1144, 4
      %v1196 = vsel %vm773, %v1156, %v1195
      %v1198 = vunpack.c.l.s4 1934713408
      %v1199 = vunpack.c.0.s8 %v1198
      %v1200 = vperm.slane %v1194, %v1199
      %v1202 = vunpack.c.l.s4 1934713408
      %v1203 = vunpack.c.0.s8 %v1202
      %v1204 = vperm.slane %v1196, %v1203
      %v1205 = vrot.slane %v1188, 4
      %v1206 = vsel %vm773, %v1205, %v1164
      %v1207 = vrot.slane %v1164, 4
      %v1208 = vsel %vm773, %v1188, %v1207
      %v1209 = vrot.slane %v1192, 4
      %v1210 = vsel %vm773, %v1209, %v1168
      %v1211 = vrot.slane %v1168, 4
      %v1212 = vsel %vm773, %v1192, %v1211
      %v1213 = vrot.slane %v1200, 4
      %v1214 = vsel %vm773, %v1213, %v1176
      %v1215 = vrot.slane %v1176, 4
      %v1216 = vsel %vm773, %v1200, %v1215
      %v1217 = vrot.slane %v1204, 4
      %v1218 = vsel %vm773, %v1217, %v1180
      %v1219 = vrot.slane %v1180, 4
      %v1220 = vsel %vm773, %v1204, %v1219
      %v1221 = vrot.slane %v594, 4
      %v1222 = vsel %vm773, %v1221, %v584
      %v1223 = vrot.slane %v584, 4
      %v1224 = vsel %vm773, %v594, %v1223
      %v1226 = vunpack.c.l.s4 1983009808
      %v1227 = vunpack.c.0.s8 %v1226
      %v1228 = vperm.slane %v1222, %v1227
      %v1230 = vunpack.c.l.s4 1983009808
      %v1231 = vunpack.c.0.s8 %v1230
      %v1232 = vperm.slane %v1224, %v1231
      %v1233 = vrot.slane %v599, 4
      %v1234 = vsel %vm773, %v1233, %v589
      %v1235 = vrot.slane %v589, 4
      %v1236 = vsel %vm773, %v599, %v1235
      %v1238 = vunpack.c.l.s4 1983009808
      %v1239 = vunpack.c.0.s8 %v1238
      %v1240 = vperm.slane %v1234, %v1239
      %v1242 = vunpack.c.l.s4 1983009808
      %v1243 = vunpack.c.0.s8 %v1242
      %v1244 = vperm.slane %v1236, %v1243
      %v1245 = vrot.slane %v614, 4
      %v1246 = vsel %vm773, %v1245, %v604
      %v1247 = vrot.slane %v604, 4
      %v1248 = vsel %vm773, %v614, %v1247
      %v1250 = vunpack.c.l.s4 1983009808
      %v1251 = vunpack.c.0.s8 %v1250
      %v1252 = vperm.slane %v1246, %v1251
      %v1254 = vunpack.c.l.s4 1983009808
      %v1255 = vunpack.c.0.s8 %v1254
      %v1256 = vperm.slane %v1248, %v1255
      %v1257 = vrot.slane %v619, 4
      %v1258 = vsel %vm773, %v1257, %v609
      %v1259 = vrot.slane %v609, 4
      %v1260 = vsel %vm773, %v619, %v1259
      %v1262 = vunpack.c.l.s4 1983009808
      %v1263 = vunpack.c.0.s8 %v1262
      %v1264 = vperm.slane %v1258, %v1263
      %v1266 = vunpack.c.l.s4 1983009808
      %v1267 = vunpack.c.0.s8 %v1266
      %v1268 = vperm.slane %v1260, %v1267
      %v1269 = vrot.slane %v1240, 4
      %v1270 = vsel %vm773, %v1269, %v1228
      %v1271 = vrot.slane %v1228, 4
      %v1272 = vsel %vm773, %v1240, %v1271
      %v1274 = vunpack.c.l.s4 1934713408
      %v1275 = vunpack.c.0.s8 %v1274
      %v1276 = vperm.slane %v1270, %v1275
      %v1278 = vunpack.c.l.s4 1934713408
      %v1279 = vunpack.c.0.s8 %v1278
      %v1280 = vperm.slane %v1272, %v1279
      %v1281 = vrot.slane %v1244, 4
      %v1282 = vsel %vm773, %v1281, %v1232
      %v1283 = vrot.slane %v1232, 4
      %v1284 = vsel %vm773, %v1244, %v1283
      %v1286 = vunpack.c.l.s4 1934713408
      %v1287 = vunpack.c.0.s8 %v1286
      %v1288 = vperm.slane %v1282, %v1287
      %v1290 = vunpack.c.l.s4 1934713408
      %v1291 = vunpack.c.0.s8 %v1290
      %v1292 = vperm.slane %v1284, %v1291
      %v1293 = vrot.slane %v1264, 4
      %v1294 = vsel %vm773, %v1293, %v1252
      %v1295 = vrot.slane %v1252, 4
      %v1296 = vsel %vm773, %v1264, %v1295
      %v1298 = vunpack.c.l.s4 1934713408
      %v1299 = vunpack.c.0.s8 %v1298
      %v1300 = vperm.slane %v1294, %v1299
      %v1302 = vunpack.c.l.s4 1934713408
      %v1303 = vunpack.c.0.s8 %v1302
      %v1304 = vperm.slane %v1296, %v1303
      %v1305 = vrot.slane %v1268, 4
      %v1306 = vsel %vm773, %v1305, %v1256
      %v1307 = vrot.slane %v1256, 4
      %v1308 = vsel %vm773, %v1268, %v1307
      %v1310 = vunpack.c.l.s4 1934713408
      %v1311 = vunpack.c.0.s8 %v1310
      %v1312 = vperm.slane %v1306, %v1311
      %v1314 = vunpack.c.l.s4 1934713408
      %v1315 = vunpack.c.0.s8 %v1314
      %v1316 = vperm.slane %v1308, %v1315
      %v1317 = vrot.slane %v1300, 4
      %v1318 = vsel %vm773, %v1317, %v1276
      %v1319 = vrot.slane %v1276, 4
      %v1320 = vsel %vm773, %v1300, %v1319
      %v1321 = vrot.slane %v1304, 4
      %v1322 = vsel %vm773, %v1321, %v1280
      %v1323 = vrot.slane %v1280, 4
      %v1324 = vsel %vm773, %v1304, %v1323
      %v1325 = vrot.slane %v1312, 4
      %v1326 = vsel %vm773, %v1325, %v1288
      %v1327 = vrot.slane %v1288, 4
      %v1328 = vsel %vm773, %v1312, %v1327
      %v1329 = vrot.slane %v1316, 4
      %v1330 = vsel %vm773, %v1329, %v1292
      %v1331 = vrot.slane %v1292, 4
      %v1332 = vsel %vm773, %v1316, %v1331
      %v1333 = vrot.slane %v634, 4
      %v1334 = vsel %vm773, %v1333, %v624
      %v1335 = vrot.slane %v624, 4
      %v1336 = vsel %vm773, %v634, %v1335
      %v1338 = vunpack.c.l.s4 1983009808
      %v1339 = vunpack.c.0.s8 %v1338
      %v1340 = vperm.slane %v1334, %v1339
      %v1342 = vunpack.c.l.s4 1983009808
      %v1343 = vunpack.c.0.s8 %v1342
      %v1344 = vperm.slane %v1336, %v1343
      %v1345 = vrot.slane %v639, 4
      %v1346 = vsel %vm773, %v1345, %v629
      %v1347 = vrot.slane %v629, 4
      %v1348 = vsel %vm773, %v639, %v1347
      %v1350 = vunpack.c.l.s4 1983009808
      %v1351 = vunpack.c.0.s8 %v1350
      %v1352 = vperm.slane %v1346, %v1351
      %v1354 = vunpack.c.l.s4 1983009808
      %v1355 = vunpack.c.0.s8 %v1354
      %v1356 = vperm.slane %v1348, %v1355
      %v1357 = vrot.slane %v654, 4
      %v1358 = vsel %vm773, %v1357, %v644
      %v1359 = vrot.slane %v644, 4
      %v1360 = vsel %vm773, %v654, %v1359
      %v1362 = vunpack.c.l.s4 1983009808
      %v1363 = vunpack.c.0.s8 %v1362
      %v1364 = vperm.slane %v1358, %v1363
      %v1366 = vunpack.c.l.s4 1983009808
      %v1367 = vunpack.c.0.s8 %v1366
      %v1368 = vperm.slane %v1360, %v1367
      %v1369 = vrot.slane %v659, 4
      %v1370 = vsel %vm773, %v1369, %v649
      %v1371 = vrot.slane %v649, 4
      %v1372 = vsel %vm773, %v659, %v1371
      %v1374 = vunpack.c.l.s4 1983009808
      %v1375 = vunpack.c.0.s8 %v1374
      %v1376 = vperm.slane %v1370, %v1375
      %v1378 = vunpack.c.l.s4 1983009808
      %v1379 = vunpack.c.0.s8 %v1378
      %v1380 = vperm.slane %v1372, %v1379
      %v1381 = vrot.slane %v1352, 4
      %v1382 = vsel %vm773, %v1381, %v1340
      %v1383 = vrot.slane %v1340, 4
      %v1384 = vsel %vm773, %v1352, %v1383
      %v1386 = vunpack.c.l.s4 1934713408
      %v1387 = vunpack.c.0.s8 %v1386
      %v1388 = vperm.slane %v1382, %v1387
      %v1390 = vunpack.c.l.s4 1934713408
      %v1391 = vunpack.c.0.s8 %v1390
      %v1392 = vperm.slane %v1384, %v1391
      %v1393 = vrot.slane %v1356, 4
      %v1394 = vsel %vm773, %v1393, %v1344
      %v1395 = vrot.slane %v1344, 4
      %v1396 = vsel %vm773, %v1356, %v1395
      %v1398 = vunpack.c.l.s4 1934713408
      %v1399 = vunpack.c.0.s8 %v1398
      %v1400 = vperm.slane %v1394, %v1399
      %v1402 = vunpack.c.l.s4 1934713408
      %v1403 = vunpack.c.0.s8 %v1402
      %v1404 = vperm.slane %v1396, %v1403
      %v1405 = vrot.slane %v1376, 4
      %v1406 = vsel %vm773, %v1405, %v1364
      %v1407 = vrot.slane %v1364, 4
      %v1408 = vsel %vm773, %v1376, %v1407
      %v1410 = vunpack.c.l.s4 1934713408
      %v1411 = vunpack.c.0.s8 %v1410
      %v1412 = vperm.slane %v1406, %v1411
      %v1414 = vunpack.c.l.s4 1934713408
      %v1415 = vunpack.c.0.s8 %v1414
      %v1416 = vperm.slane %v1408, %v1415
      %v1417 = vrot.slane %v1380, 4
      %v1418 = vsel %vm773, %v1417, %v1368
      %v1419 = vrot.slane %v1368, 4
      %v1420 = vsel %vm773, %v1380, %v1419
      %v1422 = vunpack.c.l.s4 1934713408
      %v1423 = vunpack.c.0.s8 %v1422
      %v1424 = vperm.slane %v1418, %v1423
      %v1426 = vunpack.c.l.s4 1934713408
      %v1427 = vunpack.c.0.s8 %v1426
      %v1428 = vperm.slane %v1420, %v1427
      %v1429 = vrot.slane %v1412, 4
      %v1430 = vsel %vm773, %v1429, %v1388
      %v1431 = vrot.slane %v1388, 4
      %v1432 = vsel %vm773, %v1412, %v1431
      %v1433 = vrot.slane %v1416, 4
      %v1434 = vsel %vm773, %v1433, %v1392
      %v1435 = vrot.slane %v1392, 4
      %v1436 = vsel %vm773, %v1416, %v1435
      %v1437 = vrot.slane %v1424, 4
      %v1438 = vsel %vm773, %v1437, %v1400
      %v1439 = vrot.slane %v1400, 4
      %v1440 = vsel %vm773, %v1424, %v1439
      %v1441 = vrot.slane %v1428, 4
      %v1442 = vsel %vm773, %v1441, %v1404
      %v1443 = vrot.slane %v1404, 4
      %v1444 = vsel %vm773, %v1428, %v1443
      %v1445 = vrot.slane %v596, 4
      %v1446 = vsel %vm773, %v1445, %v586
      %v1447 = vrot.slane %v586, 4
      %v1448 = vsel %vm773, %v596, %v1447
      %v1450 = vunpack.c.l.s4 1983009808
      %v1451 = vunpack.c.0.s8 %v1450
      %v1452 = vperm.slane %v1446, %v1451
      %v1454 = vunpack.c.l.s4 1983009808
      %v1455 = vunpack.c.0.s8 %v1454
      %v1456 = vperm.slane %v1448, %v1455
      %v1457 = vrot.slane %v601, 4
      %v1458 = vsel %vm773, %v1457, %v591
      %v1459 = vrot.slane %v591, 4
      %v1460 = vsel %vm773, %v601, %v1459
      %v1462 = vunpack.c.l.s4 1983009808
      %v1463 = vunpack.c.0.s8 %v1462
      %v1464 = vperm.slane %v1458, %v1463
      %v1466 = vunpack.c.l.s4 1983009808
      %v1467 = vunpack.c.0.s8 %v1466
      %v1468 = vperm.slane %v1460, %v1467
      %v1469 = vrot.slane %v616, 4
      %v1470 = vsel %vm773, %v1469, %v606
      %v1471 = vrot.slane %v606, 4
      %v1472 = vsel %vm773, %v616, %v1471
      %v1474 = vunpack.c.l.s4 1983009808
      %v1475 = vunpack.c.0.s8 %v1474
      %v1476 = vperm.slane %v1470, %v1475
      %v1478 = vunpack.c.l.s4 1983009808
      %v1479 = vunpack.c.0.s8 %v1478
      %v1480 = vperm.slane %v1472, %v1479
      %v1481 = vrot.slane %v621, 4
      %v1482 = vsel %vm773, %v1481, %v611
      %v1483 = vrot.slane %v611, 4
      %v1484 = vsel %vm773, %v621, %v1483
      %v1486 = vunpack.c.l.s4 1983009808
      %v1487 = vunpack.c.0.s8 %v1486
      %v1488 = vperm.slane %v1482, %v1487
      %v1490 = vunpack.c.l.s4 1983009808
      %v1491 = vunpack.c.0.s8 %v1490
      %v1492 = vperm.slane %v1484, %v1491
      %v1493 = vrot.slane %v1464, 4
      %v1494 = vsel %vm773, %v1493, %v1452
      %v1495 = vrot.slane %v1452, 4
      %v1496 = vsel %vm773, %v1464, %v1495
      %v1498 = vunpack.c.l.s4 1934713408
      %v1499 = vunpack.c.0.s8 %v1498
      %v1500 = vperm.slane %v1494, %v1499
      %v1502 = vunpack.c.l.s4 1934713408
      %v1503 = vunpack.c.0.s8 %v1502
      %v1504 = vperm.slane %v1496, %v1503
      %v1505 = vrot.slane %v1468, 4
      %v1506 = vsel %vm773, %v1505, %v1456
      %v1507 = vrot.slane %v1456, 4
      %v1508 = vsel %vm773, %v1468, %v1507
      %v1510 = vunpack.c.l.s4 1934713408
      %v1511 = vunpack.c.0.s8 %v1510
      %v1512 = vperm.slane %v1506, %v1511
      %v1514 = vunpack.c.l.s4 1934713408
      %v1515 = vunpack.c.0.s8 %v1514
      %v1516 = vperm.slane %v1508, %v1515
      %v1517 = vrot.slane %v1488, 4
      %v1518 = vsel %vm773, %v1517, %v1476
      %v1519 = vrot.slane %v1476, 4
      %v1520 = vsel %vm773, %v1488, %v1519
      %v1522 = vunpack.c.l.s4 1934713408
      %v1523 = vunpack.c.0.s8 %v1522
      %v1524 = vperm.slane %v1518, %v1523
      %v1526 = vunpack.c.l.s4 1934713408
      %v1527 = vunpack.c.0.s8 %v1526
      %v1528 = vperm.slane %v1520, %v1527
      %v1529 = vrot.slane %v1492, 4
      %v1530 = vsel %vm773, %v1529, %v1480
      %v1531 = vrot.slane %v1480, 4
      %v1532 = vsel %vm773, %v1492, %v1531
      %v1534 = vunpack.c.l.s4 1934713408
      %v1535 = vunpack.c.0.s8 %v1534
      %v1536 = vperm.slane %v1530, %v1535
      %v1538 = vunpack.c.l.s4 1934713408
      %v1539 = vunpack.c.0.s8 %v1538
      %v1540 = vperm.slane %v1532, %v1539
      %v1541 = vrot.slane %v1524, 4
      %v1542 = vsel %vm773, %v1541, %v1500
      %v1543 = vrot.slane %v1500, 4
      %v1544 = vsel %vm773, %v1524, %v1543
      %v1545 = vrot.slane %v1528, 4
      %v1546 = vsel %vm773, %v1545, %v1504
      %v1547 = vrot.slane %v1504, 4
      %v1548 = vsel %vm773, %v1528, %v1547
      %v1549 = vrot.slane %v1536, 4
      %v1550 = vsel %vm773, %v1549, %v1512
      %v1551 = vrot.slane %v1512, 4
      %v1552 = vsel %vm773, %v1536, %v1551
      %v1553 = vrot.slane %v1540, 4
      %v1554 = vsel %vm773, %v1553, %v1516
      %v1555 = vrot.slane %v1516, 4
      %v1556 = vsel %vm773, %v1540, %v1555
      %v1557 = vrot.slane %v636, 4
      %v1558 = vsel %vm773, %v1557, %v626
      %v1559 = vrot.slane %v626, 4
      %v1560 = vsel %vm773, %v636, %v1559
      %v1562 = vunpack.c.l.s4 1983009808
      %v1563 = vunpack.c.0.s8 %v1562
      %v1564 = vperm.slane %v1558, %v1563
      %v1566 = vunpack.c.l.s4 1983009808
      %v1567 = vunpack.c.0.s8 %v1566
      %v1568 = vperm.slane %v1560, %v1567
      %v1569 = vrot.slane %v641, 4
      %v1570 = vsel %vm773, %v1569, %v631
      %v1571 = vrot.slane %v631, 4
      %v1572 = vsel %vm773, %v641, %v1571
      %v1574 = vunpack.c.l.s4 1983009808
      %v1575 = vunpack.c.0.s8 %v1574
      %v1576 = vperm.slane %v1570, %v1575
      %v1578 = vunpack.c.l.s4 1983009808
      %v1579 = vunpack.c.0.s8 %v1578
      %v1580 = vperm.slane %v1572, %v1579
      %v1581 = vrot.slane %v656, 4
      %v1582 = vsel %vm773, %v1581, %v646
      %v1583 = vrot.slane %v646, 4
      %v1584 = vsel %vm773, %v656, %v1583
      %v1586 = vunpack.c.l.s4 1983009808
      %v1587 = vunpack.c.0.s8 %v1586
      %v1588 = vperm.slane %v1582, %v1587
      %v1590 = vunpack.c.l.s4 1983009808
      %v1591 = vunpack.c.0.s8 %v1590
      %v1592 = vperm.slane %v1584, %v1591
      %v1593 = vrot.slane %v661, 4
      %v1594 = vsel %vm773, %v1593, %v651
      %v1595 = vrot.slane %v651, 4
      %v1596 = vsel %vm773, %v661, %v1595
      %v1598 = vunpack.c.l.s4 1983009808
      %v1599 = vunpack.c.0.s8 %v1598
      %v1600 = vperm.slane %v1594, %v1599
      %v1602 = vunpack.c.l.s4 1983009808
      %v1603 = vunpack.c.0.s8 %v1602
      %v1604 = vperm.slane %v1596, %v1603
      %v1605 = vrot.slane %v1576, 4
      %v1606 = vsel %vm773, %v1605, %v1564
      %v1607 = vrot.slane %v1564, 4
      %v1608 = vsel %vm773, %v1576, %v1607
      %v1610 = vunpack.c.l.s4 1934713408
      %v1611 = vunpack.c.0.s8 %v1610
      %v1612 = vperm.slane %v1606, %v1611
      %v1614 = vunpack.c.l.s4 1934713408
      %v1615 = vunpack.c.0.s8 %v1614
      %v1616 = vperm.slane %v1608, %v1615
      %v1617 = vrot.slane %v1580, 4
      %v1618 = vsel %vm773, %v1617, %v1568
      %v1619 = vrot.slane %v1568, 4
      %v1620 = vsel %vm773, %v1580, %v1619
      %v1622 = vunpack.c.l.s4 1934713408
      %v1623 = vunpack.c.0.s8 %v1622
      %v1624 = vperm.slane %v1618, %v1623
      %v1626 = vunpack.c.l.s4 1934713408
      %v1627 = vunpack.c.0.s8 %v1626
      %v1628 = vperm.slane %v1620, %v1627
      %v1629 = vrot.slane %v1600, 4
      %v1630 = vsel %vm773, %v1629, %v1588
      %v1631 = vrot.slane %v1588, 4
      %v1632 = vsel %vm773, %v1600, %v1631
      %v1634 = vunpack.c.l.s4 1934713408
      %v1635 = vunpack.c.0.s8 %v1634
      %v1636 = vperm.slane %v1630, %v1635
      %v1638 = vunpack.c.l.s4 1934713408
      %v1639 = vunpack.c.0.s8 %v1638
      %v1640 = vperm.slane %v1632, %v1639
      %v1641 = vrot.slane %v1604, 4
      %v1642 = vsel %vm773, %v1641, %v1592
      %v1643 = vrot.slane %v1592, 4
      %v1644 = vsel %vm773, %v1604, %v1643
      %v1646 = vunpack.c.l.s4 1934713408
      %v1647 = vunpack.c.0.s8 %v1646
      %v1648 = vperm.slane %v1642, %v1647
      %v1650 = vunpack.c.l.s4 1934713408
      %v1651 = vunpack.c.0.s8 %v1650
      %v1652 = vperm.slane %v1644, %v1651
      %v1653 = vrot.slane %v1636, 4
      %v1654 = vsel %vm773, %v1653, %v1612
      %v1655 = vrot.slane %v1612, 4
      %v1656 = vsel %vm773, %v1636, %v1655
      %v1657 = vrot.slane %v1640, 4
      %v1658 = vsel %vm773, %v1657, %v1616
      %v1659 = vrot.slane %v1616, 4
      %v1660 = vsel %vm773, %v1640, %v1659
      %v1661 = vrot.slane %v1648, 4
      %v1662 = vsel %vm773, %v1661, %v1624
      %v1663 = vrot.slane %v1624, 4
      %v1664 = vsel %vm773, %v1648, %v1663
      %v1665 = vrot.slane %v1652, 4
      %v1666 = vsel %vm773, %v1665, %v1628
      %v1667 = vrot.slane %v1628, 4
      %v1668 = vsel %vm773, %v1652, %v1667
      %v1669 = vrot.slane %v703, 4
      %v1670 = vsel %vm773, %v1669, %v693
      %v1671 = vrot.slane %v693, 4
      %v1672 = vsel %vm773, %v703, %v1671
      %v1674 = vunpack.c.l.s4 1983009808
      %v1675 = vunpack.c.0.s8 %v1674
      %v1676 = vperm.slane %v1670, %v1675
      %v1678 = vunpack.c.l.s4 1983009808
      %v1679 = vunpack.c.0.s8 %v1678
      %v1680 = vperm.slane %v1672, %v1679
      %v1681 = vrot.slane %v708, 4
      %v1682 = vsel %vm773, %v1681, %v698
      %v1683 = vrot.slane %v698, 4
      %v1684 = vsel %vm773, %v708, %v1683
      %v1686 = vunpack.c.l.s4 1983009808
      %v1687 = vunpack.c.0.s8 %v1686
      %v1688 = vperm.slane %v1682, %v1687
      %v1690 = vunpack.c.l.s4 1983009808
      %v1691 = vunpack.c.0.s8 %v1690
      %v1692 = vperm.slane %v1684, %v1691
      %v1693 = vrot.slane %v723, 4
      %v1694 = vsel %vm773, %v1693, %v713
      %v1695 = vrot.slane %v713, 4
      %v1696 = vsel %vm773, %v723, %v1695
      %v1698 = vunpack.c.l.s4 1983009808
      %v1699 = vunpack.c.0.s8 %v1698
      %v1700 = vperm.slane %v1694, %v1699
      %v1702 = vunpack.c.l.s4 1983009808
      %v1703 = vunpack.c.0.s8 %v1702
      %v1704 = vperm.slane %v1696, %v1703
      %v1705 = vrot.slane %v728, 4
      %v1706 = vsel %vm773, %v1705, %v718
      %v1707 = vrot.slane %v718, 4
      %v1708 = vsel %vm773, %v728, %v1707
      %v1710 = vunpack.c.l.s4 1983009808
      %v1711 = vunpack.c.0.s8 %v1710
      %v1712 = vperm.slane %v1706, %v1711
      %v1714 = vunpack.c.l.s4 1983009808
      %v1715 = vunpack.c.0.s8 %v1714
      %v1716 = vperm.slane %v1708, %v1715
      %v1717 = vrot.slane %v1688, 4
      %v1718 = vsel %vm773, %v1717, %v1676
      %v1719 = vrot.slane %v1676, 4
      %v1720 = vsel %vm773, %v1688, %v1719
      %v1722 = vunpack.c.l.s4 1934713408
      %v1723 = vunpack.c.0.s8 %v1722
      %v1724 = vperm.slane %v1718, %v1723
      %v1726 = vunpack.c.l.s4 1934713408
      %v1727 = vunpack.c.0.s8 %v1726
      %v1728 = vperm.slane %v1720, %v1727
      %v1729 = vrot.slane %v1692, 4
      %v1730 = vsel %vm773, %v1729, %v1680
      %v1731 = vrot.slane %v1680, 4
      %v1732 = vsel %vm773, %v1692, %v1731
      %v1734 = vunpack.c.l.s4 1934713408
      %v1735 = vunpack.c.0.s8 %v1734
      %v1736 = vperm.slane %v1730, %v1735
      %v1738 = vunpack.c.l.s4 1934713408
      %v1739 = vunpack.c.0.s8 %v1738
      %v1740 = vperm.slane %v1732, %v1739
      %v1741 = vrot.slane %v1712, 4
      %v1742 = vsel %vm773, %v1741, %v1700
      %v1743 = vrot.slane %v1700, 4
      %v1744 = vsel %vm773, %v1712, %v1743
      %v1746 = vunpack.c.l.s4 1934713408
      %v1747 = vunpack.c.0.s8 %v1746
      %v1748 = vperm.slane %v1742, %v1747
      %v1750 = vunpack.c.l.s4 1934713408
      %v1751 = vunpack.c.0.s8 %v1750
      %v1752 = vperm.slane %v1744, %v1751
      %v1753 = vrot.slane %v1716, 4
      %v1754 = vsel %vm773, %v1753, %v1704
      %v1755 = vrot.slane %v1704, 4
      %v1756 = vsel %vm773, %v1716, %v1755
      %v1758 = vunpack.c.l.s4 1934713408
      %v1759 = vunpack.c.0.s8 %v1758
      %v1760 = vperm.slane %v1754, %v1759
      %v1762 = vunpack.c.l.s4 1934713408
      %v1763 = vunpack.c.0.s8 %v1762
      %v1764 = vperm.slane %v1756, %v1763
      %v1765 = vrot.slane %v1748, 4
      %v1766 = vsel %vm773, %v1765, %v1724
      %v1767 = vrot.slane %v1724, 4
      %v1768 = vsel %vm773, %v1748, %v1767
      %v1769 = vrot.slane %v1752, 4
      %v1770 = vsel %vm773, %v1769, %v1728
      %v1771 = vrot.slane %v1728, 4
      %v1772 = vsel %vm773, %v1752, %v1771
      %v1773 = vrot.slane %v1760, 4
      %v1774 = vsel %vm773, %v1773, %v1736
      %v1775 = vrot.slane %v1736, 4
      %v1776 = vsel %vm773, %v1760, %v1775
      %v1777 = vrot.slane %v1764, 4
      %v1778 = vsel %vm773, %v1777, %v1740
      %v1779 = vrot.slane %v1740, 4
      %v1780 = vsel %vm773, %v1764, %v1779
      %v1781 = vrot.slane %v743, 4
      %v1782 = vsel %vm773, %v1781, %v733
      %v1783 = vrot.slane %v733, 4
      %v1784 = vsel %vm773, %v743, %v1783
      %v1786 = vunpack.c.l.s4 1983009808
      %v1787 = vunpack.c.0.s8 %v1786
      %v1788 = vperm.slane %v1782, %v1787
      %v1790 = vunpack.c.l.s4 1983009808
      %v1791 = vunpack.c.0.s8 %v1790
      %v1792 = vperm.slane %v1784, %v1791
      %v1793 = vrot.slane %v748, 4
      %v1794 = vsel %vm773, %v1793, %v738
      %v1795 = vrot.slane %v738, 4
      %v1796 = vsel %vm773, %v748, %v1795
      %v1798 = vunpack.c.l.s4 1983009808
      %v1799 = vunpack.c.0.s8 %v1798
      %v1800 = vperm.slane %v1794, %v1799
      %v1802 = vunpack.c.l.s4 1983009808
      %v1803 = vunpack.c.0.s8 %v1802
      %v1804 = vperm.slane %v1796, %v1803
      %v1805 = vrot.slane %v763, 4
      %v1806 = vsel %vm773, %v1805, %v753
      %v1807 = vrot.slane %v753, 4
      %v1808 = vsel %vm773, %v763, %v1807
      %v1810 = vunpack.c.l.s4 1983009808
      %v1811 = vunpack.c.0.s8 %v1810
      %v1812 = vperm.slane %v1806, %v1811
      %v1814 = vunpack.c.l.s4 1983009808
      %v1815 = vunpack.c.0.s8 %v1814
      %v1816 = vperm.slane %v1808, %v1815
      %v1817 = vrot.slane %v768, 4
      %v1818 = vsel %vm773, %v1817, %v758
      %v1819 = vrot.slane %v758, 4
      %v1820 = vsel %vm773, %v768, %v1819
      %v1822 = vunpack.c.l.s4 1983009808
      %v1823 = vunpack.c.0.s8 %v1822
      %v1824 = vperm.slane %v1818, %v1823
      %v1826 = vunpack.c.l.s4 1983009808
      %v1827 = vunpack.c.0.s8 %v1826
      %v1828 = vperm.slane %v1820, %v1827
      %v1829 = vrot.slane %v1800, 4
      %v1830 = vsel %vm773, %v1829, %v1788
      %v1831 = vrot.slane %v1788, 4
      %v1832 = vsel %vm773, %v1800, %v1831
      %v1834 = vunpack.c.l.s4 1934713408
      %v1835 = vunpack.c.0.s8 %v1834
      %v1836 = vperm.slane %v1830, %v1835
      %v1838 = vunpack.c.l.s4 1934713408
      %v1839 = vunpack.c.0.s8 %v1838
      %v1840 = vperm.slane %v1832, %v1839
      %v1841 = vrot.slane %v1804, 4
      %v1842 = vsel %vm773, %v1841, %v1792
      %v1843 = vrot.slane %v1792, 4
      %v1844 = vsel %vm773, %v1804, %v1843
      %v1846 = vunpack.c.l.s4 1934713408
      %v1847 = vunpack.c.0.s8 %v1846
      %v1848 = vperm.slane %v1842, %v1847
      %v1850 = vunpack.c.l.s4 1934713408
      %v1851 = vunpack.c.0.s8 %v1850
      %v1852 = vperm.slane %v1844, %v1851
      %v1853 = vrot.slane %v1824, 4
      %v1854 = vsel %vm773, %v1853, %v1812
      %v1855 = vrot.slane %v1812, 4
      %v1856 = vsel %vm773, %v1824, %v1855
      %v1858 = vunpack.c.l.s4 1934713408
      %v1859 = vunpack.c.0.s8 %v1858
      %v1860 = vperm.slane %v1854, %v1859
      %v1862 = vunpack.c.l.s4 1934713408
      %v1863 = vunpack.c.0.s8 %v1862
      %v1864 = vperm.slane %v1856, %v1863
      %v1865 = vrot.slane %v1828, 4
      %v1866 = vsel %vm773, %v1865, %v1816
      %v1867 = vrot.slane %v1816, 4
      %v1868 = vsel %vm773, %v1828, %v1867
      %v1870 = vunpack.c.l.s4 1934713408
      %v1871 = vunpack.c.0.s8 %v1870
      %v1872 = vperm.slane %v1866, %v1871
      %v1874 = vunpack.c.l.s4 1934713408
      %v1875 = vunpack.c.0.s8 %v1874
      %v1876 = vperm.slane %v1868, %v1875
      %v1877 = vrot.slane %v1860, 4
      %v1878 = vsel %vm773, %v1877, %v1836
      %v1879 = vrot.slane %v1836, 4
      %v1880 = vsel %vm773, %v1860, %v1879
      %v1881 = vrot.slane %v1864, 4
      %v1882 = vsel %vm773, %v1881, %v1840
      %v1883 = vrot.slane %v1840, 4
      %v1884 = vsel %vm773, %v1864, %v1883
      %v1885 = vrot.slane %v1872, 4
      %v1886 = vsel %vm773, %v1885, %v1848
      %v1887 = vrot.slane %v1848, 4
      %v1888 = vsel %vm773, %v1872, %v1887
      %v1889 = vrot.slane %v1876, 4
      %v1890 = vsel %vm773, %v1889, %v1852
      %v1891 = vrot.slane %v1852, 4
      %v1892 = vsel %vm773, %v1876, %v1891
      %v1893 = vrot.slane %v705, 4
      %v1894 = vsel %vm773, %v1893, %v695
      %v1895 = vrot.slane %v695, 4
      %v1896 = vsel %vm773, %v705, %v1895
      %v1898 = vunpack.c.l.s4 1983009808
      %v1899 = vunpack.c.0.s8 %v1898
      %v1900 = vperm.slane %v1894, %v1899
      %v1902 = vunpack.c.l.s4 1983009808
      %v1903 = vunpack.c.0.s8 %v1902
      %v1904 = vperm.slane %v1896, %v1903
      %v1905 = vrot.slane %v710, 4
      %v1906 = vsel %vm773, %v1905, %v700
      %v1907 = vrot.slane %v700, 4
      %v1908 = vsel %vm773, %v710, %v1907
      %v1910 = vunpack.c.l.s4 1983009808
      %v1911 = vunpack.c.0.s8 %v1910
      %v1912 = vperm.slane %v1906, %v1911
      %v1914 = vunpack.c.l.s4 1983009808
      %v1915 = vunpack.c.0.s8 %v1914
      %v1916 = vperm.slane %v1908, %v1915
      %v1917 = vrot.slane %v725, 4
      %v1918 = vsel %vm773, %v1917, %v715
      %v1919 = vrot.slane %v715, 4
      %v1920 = vsel %vm773, %v725, %v1919
      %v1922 = vunpack.c.l.s4 1983009808
      %v1923 = vunpack.c.0.s8 %v1922
      %v1924 = vperm.slane %v1918, %v1923
      %v1926 = vunpack.c.l.s4 1983009808
      %v1927 = vunpack.c.0.s8 %v1926
      %v1928 = vperm.slane %v1920, %v1927
      %v1929 = vrot.slane %v730, 4
      %v1930 = vsel %vm773, %v1929, %v720
      %v1931 = vrot.slane %v720, 4
      %v1932 = vsel %vm773, %v730, %v1931
      %v1934 = vunpack.c.l.s4 1983009808
      %v1935 = vunpack.c.0.s8 %v1934
      %v1936 = vperm.slane %v1930, %v1935
      %v1938 = vunpack.c.l.s4 1983009808
      %v1939 = vunpack.c.0.s8 %v1938
      %v1940 = vperm.slane %v1932, %v1939
      %v1941 = vrot.slane %v1912, 4
      %v1942 = vsel %vm773, %v1941, %v1900
      %v1943 = vrot.slane %v1900, 4
      %v1944 = vsel %vm773, %v1912, %v1943
      %v1946 = vunpack.c.l.s4 1934713408
      %v1947 = vunpack.c.0.s8 %v1946
      %v1948 = vperm.slane %v1942, %v1947
      %v1950 = vunpack.c.l.s4 1934713408
      %v1951 = vunpack.c.0.s8 %v1950
      %v1952 = vperm.slane %v1944, %v1951
      %v1953 = vrot.slane %v1916, 4
      %v1954 = vsel %vm773, %v1953, %v1904
      %v1955 = vrot.slane %v1904, 4
      %v1956 = vsel %vm773, %v1916, %v1955
      %v1958 = vunpack.c.l.s4 1934713408
      %v1959 = vunpack.c.0.s8 %v1958
      %v1960 = vperm.slane %v1954, %v1959
      %v1962 = vunpack.c.l.s4 1934713408
      %v1963 = vunpack.c.0.s8 %v1962
      %v1964 = vperm.slane %v1956, %v1963
      %v1965 = vrot.slane %v1936, 4
      %v1966 = vsel %vm773, %v1965, %v1924
      %v1967 = vrot.slane %v1924, 4
      %v1968 = vsel %vm773, %v1936, %v1967
      %v1970 = vunpack.c.l.s4 1934713408
      %v1971 = vunpack.c.0.s8 %v1970
      %v1972 = vperm.slane %v1966, %v1971
      %v1974 = vunpack.c.l.s4 1934713408
      %v1975 = vunpack.c.0.s8 %v1974
      %v1976 = vperm.slane %v1968, %v1975
      %v1977 = vrot.slane %v1940, 4
      %v1978 = vsel %vm773, %v1977, %v1928
      %v1979 = vrot.slane %v1928, 4
      %v1980 = vsel %vm773, %v1940, %v1979
      %v1982 = vunpack.c.l.s4 1934713408
      %v1983 = vunpack.c.0.s8 %v1982
      %v1984 = vperm.slane %v1978, %v1983
      %v1986 = vunpack.c.l.s4 1934713408
      %v1987 = vunpack.c.0.s8 %v1986
      %v1988 = vperm.slane %v1980, %v1987
      %v1989 = vrot.slane %v1972, 4
      %v1990 = vsel %vm773, %v1989, %v1948
      %v1991 = vrot.slane %v1948, 4
      %v1992 = vsel %vm773, %v1972, %v1991
      %v1993 = vrot.slane %v1976, 4
      %v1994 = vsel %vm773, %v1993, %v1952
      %v1995 = vrot.slane %v1952, 4
      %v1996 = vsel %vm773, %v1976, %v1995
      %v1997 = vrot.slane %v1984, 4
      %v1998 = vsel %vm773, %v1997, %v1960
      %v1999 = vrot.slane %v1960, 4
      %v2000 = vsel %vm773, %v1984, %v1999
      %v2001 = vrot.slane %v1988, 4
      %v2002 = vsel %vm773, %v2001, %v1964
      %v2003 = vrot.slane %v1964, 4
      %v2004 = vsel %vm773, %v1988, %v2003
      %v2005 = vrot.slane %v745, 4
      %v2006 = vsel %vm773, %v2005, %v735
      %v2007 = vrot.slane %v735, 4
      %v2008 = vsel %vm773, %v745, %v2007
      %v2010 = vunpack.c.l.s4 1983009808
      %v2011 = vunpack.c.0.s8 %v2010
      %v2012 = vperm.slane %v2006, %v2011
      %v2014 = vunpack.c.l.s4 1983009808
      %v2015 = vunpack.c.0.s8 %v2014
      %v2016 = vperm.slane %v2008, %v2015
      %v2017 = vrot.slane %v750, 4
      %v2018 = vsel %vm773, %v2017, %v740
      %v2019 = vrot.slane %v740, 4
      %v2020 = vsel %vm773, %v750, %v2019
      %v2022 = vunpack.c.l.s4 1983009808
      %v2023 = vunpack.c.0.s8 %v2022
      %v2024 = vperm.slane %v2018, %v2023
      %v2026 = vunpack.c.l.s4 1983009808
      %v2027 = vunpack.c.0.s8 %v2026
      %v2028 = vperm.slane %v2020, %v2027
      %v2029 = vrot.slane %v765, 4
      %v2030 = vsel %vm773, %v2029, %v755
      %v2031 = vrot.slane %v755, 4
      %v2032 = vsel %vm773, %v765, %v2031
      %v2034 = vunpack.c.l.s4 1983009808
      %v2035 = vunpack.c.0.s8 %v2034
      %v2036 = vperm.slane %v2030, %v2035
      %v2038 = vunpack.c.l.s4 1983009808
      %v2039 = vunpack.c.0.s8 %v2038
      %v2040 = vperm.slane %v2032, %v2039
      %v2041 = vrot.slane %v770, 4
      %v2042 = vsel %vm773, %v2041, %v760
      %v2043 = vrot.slane %v760, 4
      %v2044 = vsel %vm773, %v770, %v2043
      %v2046 = vunpack.c.l.s4 1983009808
      %v2047 = vunpack.c.0.s8 %v2046
      %v2048 = vperm.slane %v2042, %v2047
      %v2050 = vunpack.c.l.s4 1983009808
      %v2051 = vunpack.c.0.s8 %v2050
      %v2052 = vperm.slane %v2044, %v2051
      %v2053 = vrot.slane %v2024, 4
      %v2054 = vsel %vm773, %v2053, %v2012
      %v2055 = vrot.slane %v2012, 4
      %v2056 = vsel %vm773, %v2024, %v2055
      %v2058 = vunpack.c.l.s4 1934713408
      %v2059 = vunpack.c.0.s8 %v2058
      %v2060 = vperm.slane %v2054, %v2059
      %v2062 = vunpack.c.l.s4 1934713408
      %v2063 = vunpack.c.0.s8 %v2062
      %v2064 = vperm.slane %v2056, %v2063
      %v2065 = vrot.slane %v2028, 4
      %v2066 = vsel %vm773, %v2065, %v2016
      %v2067 = vrot.slane %v2016, 4
      %v2068 = vsel %vm773, %v2028, %v2067
      %v2070 = vunpack.c.l.s4 1934713408
      %v2071 = vunpack.c.0.s8 %v2070
      %v2072 = vperm.slane %v2066, %v2071
      %v2074 = vunpack.c.l.s4 1934713408
      %v2075 = vunpack.c.0.s8 %v2074
      %v2076 = vperm.slane %v2068, %v2075
      %v2077 = vrot.slane %v2048, 4
      %v2078 = vsel %vm773, %v2077, %v2036
      %v2079 = vrot.slane %v2036, 4
      %v2080 = vsel %vm773, %v2048, %v2079
      %v2082 = vunpack.c.l.s4 1934713408
      %v2083 = vunpack.c.0.s8 %v2082
      %v2084 = vperm.slane %v2078, %v2083
      %v2086 = vunpack.c.l.s4 1934713408
      %v2087 = vunpack.c.0.s8 %v2086
      %v2088 = vperm.slane %v2080, %v2087
      %v2089 = vrot.slane %v2052, 4
      %v2090 = vsel %vm773, %v2089, %v2040
      %v2091 = vrot.slane %v2040, 4
      %v2092 = vsel %vm773, %v2052, %v2091
      %v2094 = vunpack.c.l.s4 1934713408
      %v2095 = vunpack.c.0.s8 %v2094
      %v2096 = vperm.slane %v2090, %v2095
      %v2098 = vunpack.c.l.s4 1934713408
      %v2099 = vunpack.c.0.s8 %v2098
      %v2100 = vperm.slane %v2092, %v2099
      %v2101 = vrot.slane %v2084, 4
      %v2102 = vsel %vm773, %v2101, %v2060
      %v2103 = vrot.slane %v2060, 4
      %v2104 = vsel %vm773, %v2084, %v2103
      %v2105 = vrot.slane %v2088, 4
      %v2106 = vsel %vm773, %v2105, %v2064
      %v2107 = vrot.slane %v2064, 4
      %v2108 = vsel %vm773, %v2088, %v2107
      %v2109 = vrot.slane %v2096, 4
      %v2110 = vsel %vm773, %v2109, %v2072
      %v2111 = vrot.slane %v2072, 4
      %v2112 = vsel %vm773, %v2096, %v2111
      %v2113 = vrot.slane %v2100, 4
      %v2114 = vsel %vm773, %v2113, %v2076
      %v2115 = vrot.slane %v2076, 4
      %v2116 = vsel %vm773, %v2100, %v2115
      %v2117 = vpack.c.bf16 %v475, %v475
      %v2118 = vpack.c.bf16 %v477, %v477
      %v2119 = vpack.c.bf16 %v480, %v480
      %v2120 = vpack.c.bf16 %v482, %v482
      %v2121 = vpack.c.bf16 %v485, %v485
      %v2122 = vpack.c.bf16 %v487, %v487
      %v2123 = vpack.c.bf16 %v490, %v490
      %v2124 = vpack.c.bf16 %v492, %v492
      %v2125 = vpack.c.bf16 %v495, %v495
      %v2126 = vpack.c.bf16 %v497, %v497
      %v2127 = vpack.c.bf16 %v500, %v500
      %v2128 = vpack.c.bf16 %v502, %v502
      %v2129 = vpack.c.bf16 %v505, %v505
      %v2130 = vpack.c.bf16 %v507, %v507
      %v2131 = vpack.c.bf16 %v510, %v510
      %v2132 = vpack.c.bf16 %v512, %v512
      %v2133 = vpack.c.bf16 %v515, %v515
      %v2134 = vpack.c.bf16 %v517, %v517
      %v2135 = vpack.c.bf16 %v520, %v520
      %v2136 = vpack.c.bf16 %v522, %v522
      %v2137 = vpack.c.bf16 %v525, %v525
      %v2138 = vpack.c.bf16 %v527, %v527
      %v2139 = vpack.c.bf16 %v530, %v530
      %v2140 = vpack.c.bf16 %v532, %v532
      %v2141 = vpack.c.bf16 %v535, %v535
      %v2142 = vpack.c.bf16 %v537, %v537
      %v2143 = vpack.c.bf16 %v540, %v540
      %v2144 = vpack.c.bf16 %v542, %v542
      %v2145 = vpack.c.bf16 %v545, %v545
      %v2146 = vpack.c.bf16 %v547, %v547
      %v2147 = vpack.c.bf16 %v550, %v550
      %v2148 = vpack.c.bf16 %v552, %v552
      %v2149 = vpack.c.bf16 %v584, %v584
      %v2150 = vpack.c.bf16 %v586, %v586
      %v2151 = vpack.c.bf16 %v589, %v589
      %v2152 = vpack.c.bf16 %v591, %v591
      %v2153 = vpack.c.bf16 %v594, %v594
      %v2154 = vpack.c.bf16 %v596, %v596
      %v2155 = vpack.c.bf16 %v599, %v599
      %v2156 = vpack.c.bf16 %v601, %v601
      %v2157 = vpack.c.bf16 %v604, %v604
      %v2158 = vpack.c.bf16 %v606, %v606
      %v2159 = vpack.c.bf16 %v609, %v609
      %v2160 = vpack.c.bf16 %v611, %v611
      %v2161 = vpack.c.bf16 %v614, %v614
      %v2162 = vpack.c.bf16 %v616, %v616
      %v2163 = vpack.c.bf16 %v619, %v619
      %v2164 = vpack.c.bf16 %v621, %v621
      %v2165 = vpack.c.bf16 %v624, %v624
      %v2166 = vpack.c.bf16 %v626, %v626
      %v2167 = vpack.c.bf16 %v629, %v629
      %v2168 = vpack.c.bf16 %v631, %v631
      %v2169 = vpack.c.bf16 %v634, %v634
      %v2170 = vpack.c.bf16 %v636, %v636
      %v2171 = vpack.c.bf16 %v639, %v639
      %v2172 = vpack.c.bf16 %v641, %v641
      %v2173 = vpack.c.bf16 %v644, %v644
      %v2174 = vpack.c.bf16 %v646, %v646
      %v2175 = vpack.c.bf16 %v649, %v649
      %v2176 = vpack.c.bf16 %v651, %v651
      %v2177 = vpack.c.bf16 %v654, %v654
      %v2178 = vpack.c.bf16 %v656, %v656
      %v2179 = vpack.c.bf16 %v659, %v659
      %v2180 = vpack.c.bf16 %v661, %v661
      %v2181 = vpack.c.bf16 %v693, %v693
      %v2182 = vpack.c.bf16 %v695, %v695
      %v2183 = vpack.c.bf16 %v698, %v698
      %v2184 = vpack.c.bf16 %v700, %v700
      %v2185 = vpack.c.bf16 %v703, %v703
      %v2186 = vpack.c.bf16 %v705, %v705
      %v2187 = vpack.c.bf16 %v708, %v708
      %v2188 = vpack.c.bf16 %v710, %v710
      %v2189 = vpack.c.bf16 %v713, %v713
      %v2190 = vpack.c.bf16 %v715, %v715
      %v2191 = vpack.c.bf16 %v718, %v718
      %v2192 = vpack.c.bf16 %v720, %v720
      %v2193 = vpack.c.bf16 %v723, %v723
      %v2194 = vpack.c.bf16 %v725, %v725
      %v2195 = vpack.c.bf16 %v728, %v728
      %v2196 = vpack.c.bf16 %v730, %v730
      %v2197 = vpack.c.bf16 %v733, %v733
      %v2198 = vpack.c.bf16 %v735, %v735
      %v2199 = vpack.c.bf16 %v738, %v738
      %v2200 = vpack.c.bf16 %v740, %v740
      %v2201 = vpack.c.bf16 %v743, %v743
      %v2202 = vpack.c.bf16 %v745, %v745
      %v2203 = vpack.c.bf16 %v748, %v748
      %v2204 = vpack.c.bf16 %v750, %v750
      %v2205 = vpack.c.bf16 %v753, %v753
      %v2206 = vpack.c.bf16 %v755, %v755
      %v2207 = vpack.c.bf16 %v758, %v758
      %v2208 = vpack.c.bf16 %v760, %v760
      %v2209 = vpack.c.bf16 %v763, %v763
      %v2210 = vpack.c.bf16 %v765, %v765
      %v2211 = vpack.c.bf16 %v768, %v768
      %v2212 = vpack.c.bf16 %v770, %v770
      %v2213 = vpack.c.bf16 %v870, %v870
      %v2214 = vpack.c.bf16 %v982, %v982
      %v2215 = vpack.c.bf16 %v872, %v872
      %v2216 = vpack.c.bf16 %v984, %v984
      %v2217 = vpack.c.bf16 %v874, %v874
      %v2218 = vpack.c.bf16 %v986, %v986
      %v2219 = vpack.c.bf16 %v876, %v876
      %v2220 = vpack.c.bf16 %v988, %v988
      %v2221 = vpack.c.bf16 %v878, %v878
      %v2222 = vpack.c.bf16 %v990, %v990
      %v2223 = vpack.c.bf16 %v880, %v880
      %v2224 = vpack.c.bf16 %v992, %v992
      %v2225 = vpack.c.bf16 %v882, %v882
      %v2226 = vpack.c.bf16 %v994, %v994
      %v2227 = vpack.c.bf16 %v884, %v884
      %v2228 = vpack.c.bf16 %v996, %v996
      %v2229 = vpack.c.bf16 %v1094, %v1094
      %v2230 = vpack.c.bf16 %v1206, %v1206
      %v2231 = vpack.c.bf16 %v1096, %v1096
      %v2232 = vpack.c.bf16 %v1208, %v1208
      %v2233 = vpack.c.bf16 %v1098, %v1098
      %v2234 = vpack.c.bf16 %v1210, %v1210
      %v2235 = vpack.c.bf16 %v1100, %v1100
      %v2236 = vpack.c.bf16 %v1212, %v1212
      %v2237 = vpack.c.bf16 %v1102, %v1102
      %v2238 = vpack.c.bf16 %v1214, %v1214
      %v2239 = vpack.c.bf16 %v1104, %v1104
      %v2240 = vpack.c.bf16 %v1216, %v1216
      %v2241 = vpack.c.bf16 %v1106, %v1106
      %v2242 = vpack.c.bf16 %v1218, %v1218
      %v2243 = vpack.c.bf16 %v1108, %v1108
      %v2244 = vpack.c.bf16 %v1220, %v1220
      %v2245 = vpack.c.bf16 %v1318, %v1318
      %v2246 = vpack.c.bf16 %v1430, %v1430
      %v2247 = vpack.c.bf16 %v1320, %v1320
      %v2248 = vpack.c.bf16 %v1432, %v1432
      %v2249 = vpack.c.bf16 %v1322, %v1322
      %v2250 = vpack.c.bf16 %v1434, %v1434
      %v2251 = vpack.c.bf16 %v1324, %v1324
      %v2252 = vpack.c.bf16 %v1436, %v1436
      %v2253 = vpack.c.bf16 %v1326, %v1326
      %v2254 = vpack.c.bf16 %v1438, %v1438
      %v2255 = vpack.c.bf16 %v1328, %v1328
      %v2256 = vpack.c.bf16 %v1440, %v1440
      %v2257 = vpack.c.bf16 %v1330, %v1330
      %v2258 = vpack.c.bf16 %v1442, %v1442
      %v2259 = vpack.c.bf16 %v1332, %v1332
      %v2260 = vpack.c.bf16 %v1444, %v1444
      %v2261 = vpack.c.bf16 %v1542, %v1542
      %v2262 = vpack.c.bf16 %v1654, %v1654
      %v2263 = vpack.c.bf16 %v1544, %v1544
      %v2264 = vpack.c.bf16 %v1656, %v1656
      %v2265 = vpack.c.bf16 %v1546, %v1546
      %v2266 = vpack.c.bf16 %v1658, %v1658
      %v2267 = vpack.c.bf16 %v1548, %v1548
      %v2268 = vpack.c.bf16 %v1660, %v1660
      %v2269 = vpack.c.bf16 %v1550, %v1550
      %v2270 = vpack.c.bf16 %v1662, %v1662
      %v2271 = vpack.c.bf16 %v1552, %v1552
      %v2272 = vpack.c.bf16 %v1664, %v1664
      %v2273 = vpack.c.bf16 %v1554, %v1554
      %v2274 = vpack.c.bf16 %v1666, %v1666
      %v2275 = vpack.c.bf16 %v1556, %v1556
      %v2276 = vpack.c.bf16 %v1668, %v1668
      %v2277 = vpack.c.bf16 %v1766, %v1766
      %v2278 = vpack.c.bf16 %v1878, %v1878
      %v2279 = vpack.c.bf16 %v1768, %v1768
      %v2280 = vpack.c.bf16 %v1880, %v1880
      %v2281 = vpack.c.bf16 %v1770, %v1770
      %v2282 = vpack.c.bf16 %v1882, %v1882
      %v2283 = vpack.c.bf16 %v1772, %v1772
      %v2284 = vpack.c.bf16 %v1884, %v1884
      %v2285 = vpack.c.bf16 %v1774, %v1774
      %v2286 = vpack.c.bf16 %v1886, %v1886
      %v2287 = vpack.c.bf16 %v1776, %v1776
      %v2288 = vpack.c.bf16 %v1888, %v1888
      %v2289 = vpack.c.bf16 %v1778, %v1778
      %v2290 = vpack.c.bf16 %v1890, %v1890
      %v2291 = vpack.c.bf16 %v1780, %v1780
      %v2292 = vpack.c.bf16 %v1892, %v1892
      %v2293 = vpack.c.bf16 %v1990, %v1990
      %v2294 = vpack.c.bf16 %v2102, %v2102
      %v2295 = vpack.c.bf16 %v1992, %v1992
      %v2296 = vpack.c.bf16 %v2104, %v2104
      %v2297 = vpack.c.bf16 %v1994, %v1994
      %v2298 = vpack.c.bf16 %v2106, %v2106
      %v2299 = vpack.c.bf16 %v1996, %v1996
      %v2300 = vpack.c.bf16 %v2108, %v2108
      %v2301 = vpack.c.bf16 %v1998, %v1998
      %v2302 = vpack.c.bf16 %v2110, %v2110
      %v2303 = vpack.c.bf16 %v2000, %v2000
      %v2304 = vpack.c.bf16 %v2112, %v2112
      %v2305 = vpack.c.bf16 %v2002, %v2002
      %v2306 = vpack.c.bf16 %v2114, %v2114
      %v2307 = vpack.c.bf16 %v2004, %v2004
      %v2308 = vpack.c.bf16 %v2116, %v2116
      %v2309 = vlaneseq
      %v2310 = vshrl.u32 %v2309, 7
      %v2311 = vadd.s32 %v2310, 8
      %v2312 = vlaneseq
      %v2313 = vand.u32 %v2312, 127
      %vm2314 = vcmp.eq.s32.totalorder %v2310, %v2313
      %vm2315 = vcmp.eq.s32.totalorder %v2311, %v2313
      %v2316 = vsel %vm2314, -1e+30, 0.0
      %v2317 = vsel %vm2315, -1e+30, 0.0
      %v2320 = vunpack.c.l.b16 %v2213
      %v2321 = vunpack.c.l.b16 %v2214
      %v2322 = vpack.c.b16 %v2321, %v2320
      %v2325 = vunpack.c.l.b16 %v2245
      %v2326 = vunpack.c.l.b16 %v2246
      %v2327 = vpack.c.b16 %v2326, %v2325
      %vm2328 = vcmask 31744
      %v2330 = vsel %vm2328, %v2322, 0
      %v2333 = vsel %vm2328, %v2327, 0
      %2335 = vmatpush.bf16.xpose.msra.mxu0 0
      %2336 = vmatpush.bf16.xpose.msra.mxu0 0
      %2337 = vmatpush.bf16.xpose.msra.mxu0 0
      %2338 = vmatpush.bf16.xpose.msra.mxu0 0
      %2339 = vmatpush.bf16.xpose.msra.mxu0 0
      %2340 = vmatpush.bf16.xpose.msra.mxu0 0
      %2341 = vmatpush.bf16.xpose.msra.mxu0 0
      %2342 = vmatpush.bf16.xpose.msra.mxu0 %v2333
      %2343 = vmatmul.bf16.gmra.mxu0 %v2330
      %v2344 = vpop.f32.mrf.mxu0
      %v2345 = vadd.f32 %v2316, %v2344
      %v2346 = vpop.f32.mrf.mxu0
      %v2347 = vadd.f32 %v2317, %v2346
      %2348 = vdwg.mxu0
      %v2351 = vunpack.c.l.b16 %v2215
      %v2352 = vunpack.c.l.b16 %v2216
      %v2353 = vpack.c.b16 %v2352, %v2351
      %v2356 = vunpack.c.l.b16 %v2247
      %v2357 = vunpack.c.l.b16 %v2248
      %v2358 = vpack.c.b16 %v2357, %v2356
      %v2360 = vsel %vm2328, %v2353, 0
      %v2363 = vsel %vm2328, %v2358, 0
      %2365 = vmatpush.bf16.xpose.msra.mxu0 0
      %2366 = vmatpush.bf16.xpose.msra.mxu0 0
      %2367 = vmatpush.bf16.xpose.msra.mxu0 0
      %2368 = vmatpush.bf16.xpose.msra.mxu0 0
      %2369 = vmatpush.bf16.xpose.msra.mxu0 0
      %2370 = vmatpush.bf16.xpose.msra.mxu0 0
      %2371 = vmatpush.bf16.xpose.msra.mxu0 0
      %2372 = vmatpush.bf16.xpose.msra.mxu0 %v2363
      %2373 = vmatmul.bf16.gmra.mxu0 %v2360
      %v2374 = vpop.f32.mrf.mxu0
      %v2375 = vadd.f32 %v2316, %v2374
      %v2376 = vpop.f32.mrf.mxu0
      %v2377 = vadd.f32 %v2317, %v2376
      %2378 = vdwg.mxu0
      %v2381 = vunpack.c.l.b16 %v2217
      %v2382 = vunpack.c.l.b16 %v2218
      %v2383 = vpack.c.b16 %v2382, %v2381
      %v2386 = vunpack.c.l.b16 %v2249
      %v2387 = vunpack.c.l.b16 %v2250
      %v2388 = vpack.c.b16 %v2387, %v2386
      %v2390 = vsel %vm2328, %v2383, 0
      %v2393 = vsel %vm2328, %v2388, 0
      %2395 = vmatpush.bf16.xpose.msra.mxu0 0
      %2396 = vmatpush.bf16.xpose.msra.mxu0 0
      %2397 = vmatpush.bf16.xpose.msra.mxu0 0
      %2398 = vmatpush.bf16.xpose.msra.mxu0 0
      %2399 = vmatpush.bf16.xpose.msra.mxu0 0
      %2400 = vmatpush.bf16.xpose.msra.mxu0 0
      %2401 = vmatpush.bf16.xpose.msra.mxu0 0
      %2402 = vmatpush.bf16.xpose.msra.mxu0 %v2393
      %2403 = vmatmul.bf16.gmra.mxu0 %v2390
      %v2404 = vpop.f32.mrf.mxu0
      %v2405 = vadd.f32 %v2316, %v2404
      %v2406 = vpop.f32.mrf.mxu0
      %v2407 = vadd.f32 %v2317, %v2406
      %2408 = vdwg.mxu0
      %v2411 = vunpack.c.l.b16 %v2219
      %v2412 = vunpack.c.l.b16 %v2220
      %v2413 = vpack.c.b16 %v2412, %v2411
      %v2416 = vunpack.c.l.b16 %v2251
      %v2417 = vunpack.c.l.b16 %v2252
      %v2418 = vpack.c.b16 %v2417, %v2416
      %v2420 = vsel %vm2328, %v2413, 0
      %v2423 = vsel %vm2328, %v2418, 0
      %2425 = vmatpush.bf16.xpose.msra.mxu0 0
      %2426 = vmatpush.bf16.xpose.msra.mxu0 0
      %2427 = vmatpush.bf16.xpose.msra.mxu0 0
      %2428 = vmatpush.bf16.xpose.msra.mxu0 0
      %2429 = vmatpush.bf16.xpose.msra.mxu0 0
      %2430 = vmatpush.bf16.xpose.msra.mxu0 0
      %2431 = vmatpush.bf16.xpose.msra.mxu0 0
      %2432 = vmatpush.bf16.xpose.msra.mxu0 %v2423
      %2433 = vmatmul.bf16.gmra.mxu0 %v2420
      %v2434 = vpop.f32.mrf.mxu0
      %v2435 = vadd.f32 %v2316, %v2434
      %v2436 = vpop.f32.mrf.mxu0
      %v2437 = vadd.f32 %v2317, %v2436
      %2438 = vdwg.mxu0
      %v2441 = vunpack.c.l.b16 %v2221
      %v2442 = vunpack.c.l.b16 %v2222
      %v2443 = vpack.c.b16 %v2442, %v2441
      %v2446 = vunpack.c.l.b16 %v2253
      %v2447 = vunpack.c.l.b16 %v2254
      %v2448 = vpack.c.b16 %v2447, %v2446
      %v2450 = vsel %vm2328, %v2443, 0
      %v2453 = vsel %vm2328, %v2448, 0
      %2455 = vmatpush.bf16.xpose.msra.mxu0 0
      %2456 = vmatpush.bf16.xpose.msra.mxu0 0
      %2457 = vmatpush.bf16.xpose.msra.mxu0 0
      %2458 = vmatpush.bf16.xpose.msra.mxu0 0
      %2459 = vmatpush.bf16.xpose.msra.mxu0 0
      %2460 = vmatpush.bf16.xpose.msra.mxu0 0
      %2461 = vmatpush.bf16.xpose.msra.mxu0 0
      %2462 = vmatpush.bf16.xpose.msra.mxu0 %v2453
      %2463 = vmatmul.bf16.gmra.mxu0 %v2450
      %v2464 = vpop.f32.mrf.mxu0
      %v2465 = vadd.f32 %v2316, %v2464
      %v2466 = vpop.f32.mrf.mxu0
      %v2467 = vadd.f32 %v2317, %v2466
      %2468 = vdwg.mxu0
      %v2471 = vunpack.c.l.b16 %v2223
      %v2472 = vunpack.c.l.b16 %v2224
      %v2473 = vpack.c.b16 %v2472, %v2471
      %v2476 = vunpack.c.l.b16 %v2255
      %v2477 = vunpack.c.l.b16 %v2256
      %v2478 = vpack.c.b16 %v2477, %v2476
      %v2480 = vsel %vm2328, %v2473, 0
      %v2483 = vsel %vm2328, %v2478, 0
      %2485 = vmatpush.bf16.xpose.msra.mxu0 0
      %2486 = vmatpush.bf16.xpose.msra.mxu0 0
      %2487 = vmatpush.bf16.xpose.msra.mxu0 0
      %2488 = vmatpush.bf16.xpose.msra.mxu0 0
      %2489 = vmatpush.bf16.xpose.msra.mxu0 0
      %2490 = vmatpush.bf16.xpose.msra.mxu0 0
      %2491 = vmatpush.bf16.xpose.msra.mxu0 0
      %2492 = vmatpush.bf16.xpose.msra.mxu0 %v2483
      %2493 = vmatmul.bf16.gmra.mxu0 %v2480
      %v2494 = vpop.f32.mrf.mxu0
      %v2495 = vadd.f32 %v2316, %v2494
      %v2496 = vpop.f32.mrf.mxu0
      %v2497 = vadd.f32 %v2317, %v2496
      %2498 = vdwg.mxu0
      %v2501 = vunpack.c.l.b16 %v2225
      %v2502 = vunpack.c.l.b16 %v2226
      %v2503 = vpack.c.b16 %v2502, %v2501
      %v2506 = vunpack.c.l.b16 %v2257
      %v2507 = vunpack.c.l.b16 %v2258
      %v2508 = vpack.c.b16 %v2507, %v2506
      %v2510 = vsel %vm2328, %v2503, 0
      %v2513 = vsel %vm2328, %v2508, 0
      %2515 = vmatpush.bf16.xpose.msra.mxu0 0
      %2516 = vmatpush.bf16.xpose.msra.mxu0 0
      %2517 = vmatpush.bf16.xpose.msra.mxu0 0
      %2518 = vmatpush.bf16.xpose.msra.mxu0 0
      %2519 = vmatpush.bf16.xpose.msra.mxu0 0
      %2520 = vmatpush.bf16.xpose.msra.mxu0 0
      %2521 = vmatpush.bf16.xpose.msra.mxu0 0
      %2522 = vmatpush.bf16.xpose.msra.mxu0 %v2513
      %2523 = vmatmul.bf16.gmra.mxu0 %v2510
      %v2524 = vpop.f32.mrf.mxu0
      %v2525 = vadd.f32 %v2316, %v2524
      %v2526 = vpop.f32.mrf.mxu0
      %v2527 = vadd.f32 %v2317, %v2526
      %2528 = vdwg.mxu0
      %v2531 = vunpack.c.l.b16 %v2227
      %v2532 = vunpack.c.l.b16 %v2228
      %v2533 = vpack.c.b16 %v2532, %v2531
      %v2536 = vunpack.c.l.b16 %v2259
      %v2537 = vunpack.c.l.b16 %v2260
      %v2538 = vpack.c.b16 %v2537, %v2536
      %v2540 = vsel %vm2328, %v2533, 0
      %v2543 = vsel %vm2328, %v2538, 0
      %2545 = vmatpush.bf16.xpose.msra.mxu0 0
      %2546 = vmatpush.bf16.xpose.msra.mxu0 0
      %2547 = vmatpush.bf16.xpose.msra.mxu0 0
      %2548 = vmatpush.bf16.xpose.msra.mxu0 0
      %2549 = vmatpush.bf16.xpose.msra.mxu0 0
      %2550 = vmatpush.bf16.xpose.msra.mxu0 0
      %2551 = vmatpush.bf16.xpose.msra.mxu0 0
      %2552 = vmatpush.bf16.xpose.msra.mxu0 %v2543
      %2553 = vmatmul.bf16.gmra.mxu0 %v2540
      %v2554 = vpop.f32.mrf.mxu0
      %v2555 = vadd.f32 %v2316, %v2554
      %v2556 = vpop.f32.mrf.mxu0
      %v2557 = vadd.f32 %v2317, %v2556
      %2558 = vdwg.mxu0
      %v2561 = vunpack.c.l.b16 %v2229
      %v2562 = vunpack.c.l.b16 %v2230
      %v2563 = vpack.c.b16 %v2562, %v2561
      %v2566 = vunpack.c.l.b16 %v2261
      %v2567 = vunpack.c.l.b16 %v2262
      %v2568 = vpack.c.b16 %v2567, %v2566
      %v2570 = vsel %vm2328, %v2563, 0
      %v2573 = vsel %vm2328, %v2568, 0
      %2575 = vmatpush.bf16.xpose.msra.mxu0 0
      %2576 = vmatpush.bf16.xpose.msra.mxu0 0
      %2577 = vmatpush.bf16.xpose.msra.mxu0 0
      %2578 = vmatpush.bf16.xpose.msra.mxu0 0
      %2579 = vmatpush.bf16.xpose.msra.mxu0 0
      %2580 = vmatpush.bf16.xpose.msra.mxu0 0
      %2581 = vmatpush.bf16.xpose.msra.mxu0 0
      %2582 = vmatpush.bf16.xpose.msra.mxu0 %v2573
      %2583 = vmatmul.bf16.gmra.mxu0 %v2570
      %v2584 = vpop.f32.mrf.mxu0
      %v2585 = vadd.f32 %v2316, %v2584
      %v2586 = vpop.f32.mrf.mxu0
      %v2587 = vadd.f32 %v2317, %v2586
      %2588 = vdwg.mxu0
      %v2591 = vunpack.c.l.b16 %v2231
      %v2592 = vunpack.c.l.b16 %v2232
      %v2593 = vpack.c.b16 %v2592, %v2591
      %v2596 = vunpack.c.l.b16 %v2263
      %v2597 = vunpack.c.l.b16 %v2264
      %v2598 = vpack.c.b16 %v2597, %v2596
      %v2600 = vsel %vm2328, %v2593, 0
      %v2603 = vsel %vm2328, %v2598, 0
      %2605 = vmatpush.bf16.xpose.msra.mxu0 0
      %2606 = vmatpush.bf16.xpose.msra.mxu0 0
      %2607 = vmatpush.bf16.xpose.msra.mxu0 0
      %2608 = vmatpush.bf16.xpose.msra.mxu0 0
      %2609 = vmatpush.bf16.xpose.msra.mxu0 0
      %2610 = vmatpush.bf16.xpose.msra.mxu0 0
      %2611 = vmatpush.bf16.xpose.msra.mxu0 0
      %2612 = vmatpush.bf16.xpose.msra.mxu0 %v2603
      %2613 = vmatmul.bf16.gmra.mxu0 %v2600
      %v2614 = vpop.f32.mrf.mxu0
      %v2615 = vadd.f32 %v2316, %v2614
      %v2616 = vpop.f32.mrf.mxu0
      %v2617 = vadd.f32 %v2317, %v2616
      %2618 = vdwg.mxu0
      %v2621 = vunpack.c.l.b16 %v2233
      %v2622 = vunpack.c.l.b16 %v2234
      %v2623 = vpack.c.b16 %v2622, %v2621
      %v2626 = vunpack.c.l.b16 %v2265
      %v2627 = vunpack.c.l.b16 %v2266
      %v2628 = vpack.c.b16 %v2627, %v2626
      %v2630 = vsel %vm2328, %v2623, 0
      %v2633 = vsel %vm2328, %v2628, 0
      %2635 = vmatpush.bf16.xpose.msra.mxu0 0
      %2636 = vmatpush.bf16.xpose.msra.mxu0 0
      %2637 = vmatpush.bf16.xpose.msra.mxu0 0
      %2638 = vmatpush.bf16.xpose.msra.mxu0 0
      %2639 = vmatpush.bf16.xpose.msra.mxu0 0
      %2640 = vmatpush.bf16.xpose.msra.mxu0 0
      %2641 = vmatpush.bf16.xpose.msra.mxu0 0
      %2642 = vmatpush.bf16.xpose.msra.mxu0 %v2633
      %2643 = vmatmul.bf16.gmra.mxu0 %v2630
      %v2644 = vpop.f32.mrf.mxu0
      %v2645 = vadd.f32 %v2316, %v2644
      %v2646 = vpop.f32.mrf.mxu0
      %v2647 = vadd.f32 %v2317, %v2646
      %2648 = vdwg.mxu0
      %v2651 = vunpack.c.l.b16 %v2235
      %v2652 = vunpack.c.l.b16 %v2236
      %v2653 = vpack.c.b16 %v2652, %v2651
      %v2656 = vunpack.c.l.b16 %v2267
      %v2657 = vunpack.c.l.b16 %v2268
      %v2658 = vpack.c.b16 %v2657, %v2656
      %v2660 = vsel %vm2328, %v2653, 0
      %v2663 = vsel %vm2328, %v2658, 0
      %2665 = vmatpush.bf16.xpose.msra.mxu0 0
      %2666 = vmatpush.bf16.xpose.msra.mxu0 0
      %2667 = vmatpush.bf16.xpose.msra.mxu0 0
      %2668 = vmatpush.bf16.xpose.msra.mxu0 0
      %2669 = vmatpush.bf16.xpose.msra.mxu0 0
      %2670 = vmatpush.bf16.xpose.msra.mxu0 0
      %2671 = vmatpush.bf16.xpose.msra.mxu0 0
      %2672 = vmatpush.bf16.xpose.msra.mxu0 %v2663
      %2673 = vmatmul.bf16.gmra.mxu0 %v2660
      %v2674 = vpop.f32.mrf.mxu0
      %v2675 = vadd.f32 %v2316, %v2674
      %v2676 = vpop.f32.mrf.mxu0
      %v2677 = vadd.f32 %v2317, %v2676
      %2678 = vdwg.mxu0
      %v2681 = vunpack.c.l.b16 %v2237
      %v2682 = vunpack.c.l.b16 %v2238
      %v2683 = vpack.c.b16 %v2682, %v2681
      %v2686 = vunpack.c.l.b16 %v2269
      %v2687 = vunpack.c.l.b16 %v2270
      %v2688 = vpack.c.b16 %v2687, %v2686
      %v2690 = vsel %vm2328, %v2683, 0
      %v2693 = vsel %vm2328, %v2688, 0
      %2695 = vmatpush.bf16.xpose.msra.mxu0 0
      %2696 = vmatpush.bf16.xpose.msra.mxu0 0
      %2697 = vmatpush.bf16.xpose.msra.mxu0 0
      %2698 = vmatpush.bf16.xpose.msra.mxu0 0
      %2699 = vmatpush.bf16.xpose.msra.mxu0 0
      %2700 = vmatpush.bf16.xpose.msra.mxu0 0
      %2701 = vmatpush.bf16.xpose.msra.mxu0 0
      %2702 = vmatpush.bf16.xpose.msra.mxu0 %v2693
      %2703 = vmatmul.bf16.gmra.mxu0 %v2690
      %v2704 = vpop.f32.mrf.mxu0
      %v2705 = vadd.f32 %v2316, %v2704
      %v2706 = vpop.f32.mrf.mxu0
      %v2707 = vadd.f32 %v2317, %v2706
      %2708 = vdwg.mxu0
      %v2711 = vunpack.c.l.b16 %v2239
      %v2712 = vunpack.c.l.b16 %v2240
      %v2713 = vpack.c.b16 %v2712, %v2711
      %v2716 = vunpack.c.l.b16 %v2271
      %v2717 = vunpack.c.l.b16 %v2272
      %v2718 = vpack.c.b16 %v2717, %v2716
      %v2720 = vsel %vm2328, %v2713, 0
      %v2723 = vsel %vm2328, %v2718, 0
      %2725 = vmatpush.bf16.xpose.msra.mxu0 0
      %2726 = vmatpush.bf16.xpose.msra.mxu0 0
      %2727 = vmatpush.bf16.xpose.msra.mxu0 0
      %2728 = vmatpush.bf16.xpose.msra.mxu0 0
      %2729 = vmatpush.bf16.xpose.msra.mxu0 0
      %2730 = vmatpush.bf16.xpose.msra.mxu0 0
      %2731 = vmatpush.bf16.xpose.msra.mxu0 0
      %2732 = vmatpush.bf16.xpose.msra.mxu0 %v2723
      %2733 = vmatmul.bf16.gmra.mxu0 %v2720
      %v2734 = vpop.f32.mrf.mxu0
      %v2735 = vadd.f32 %v2316, %v2734
      %v2736 = vpop.f32.mrf.mxu0
      %v2737 = vadd.f32 %v2317, %v2736
      %2738 = vdwg.mxu0
      %v2741 = vunpack.c.l.b16 %v2241
      %v2742 = vunpack.c.l.b16 %v2242
      %v2743 = vpack.c.b16 %v2742, %v2741
      %v2746 = vunpack.c.l.b16 %v2273
      %v2747 = vunpack.c.l.b16 %v2274
      %v2748 = vpack.c.b16 %v2747, %v2746
      %v2750 = vsel %vm2328, %v2743, 0
      %v2753 = vsel %vm2328, %v2748, 0
      %2755 = vmatpush.bf16.xpose.msra.mxu0 0
      %2756 = vmatpush.bf16.xpose.msra.mxu0 0
      %2757 = vmatpush.bf16.xpose.msra.mxu0 0
      %2758 = vmatpush.bf16.xpose.msra.mxu0 0
      %2759 = vmatpush.bf16.xpose.msra.mxu0 0
      %2760 = vmatpush.bf16.xpose.msra.mxu0 0
      %2761 = vmatpush.bf16.xpose.msra.mxu0 0
      %2762 = vmatpush.bf16.xpose.msra.mxu0 %v2753
      %2763 = vmatmul.bf16.gmra.mxu0 %v2750
      %v2764 = vpop.f32.mrf.mxu0
      %v2765 = vadd.f32 %v2316, %v2764
      %v2766 = vpop.f32.mrf.mxu0
      %v2767 = vadd.f32 %v2317, %v2766
      %2768 = vdwg.mxu0
      %v2771 = vunpack.c.l.b16 %v2243
      %v2772 = vunpack.c.l.b16 %v2244
      %v2773 = vpack.c.b16 %v2772, %v2771
      %v2776 = vunpack.c.l.b16 %v2275
      %v2777 = vunpack.c.l.b16 %v2276
      %v2778 = vpack.c.b16 %v2777, %v2776
      %v2780 = vsel %vm2328, %v2773, 0
      %v2783 = vsel %vm2328, %v2778, 0
      %2785 = vmatpush.bf16.xpose.msra.mxu0 0
      %2786 = vmatpush.bf16.xpose.msra.mxu0 0
      %2787 = vmatpush.bf16.xpose.msra.mxu0 0
      %2788 = vmatpush.bf16.xpose.msra.mxu0 0
      %2789 = vmatpush.bf16.xpose.msra.mxu0 0
      %2790 = vmatpush.bf16.xpose.msra.mxu0 0
      %2791 = vmatpush.bf16.xpose.msra.mxu0 0
      %2792 = vmatpush.bf16.xpose.msra.mxu0 %v2783
      %2793 = vmatmul.bf16.gmra.mxu0 %v2780
      %v2794 = vpop.f32.mrf.mxu0
      %v2795 = vadd.f32 %v2316, %v2794
      %v2796 = vpop.f32.mrf.mxu0
      %v2797 = vadd.f32 %v2317, %v2796
      %2798 = vdwg.mxu0
      %v2801 = vunpack.c.l.b16 %v2117
      %v2802 = vunpack.c.l.b16 %v2118
      %v2803 = vpack.c.b16 %v2802, %v2801
      %v2806 = vunpack.c.l.b16 %v2149
      %v2807 = vunpack.c.l.b16 %v2150
      %v2808 = vpack.c.b16 %v2807, %v2806
      %v2810 = vsel %vm2328, %v2803, 0
      %v2813 = vsel %vm2328, %v2808, 0
      %2815 = vmatpush.bf16.xpose.msra.mxu0 0
      %2816 = vmatpush.bf16.xpose.msra.mxu0 0
      %2817 = vmatpush.bf16.xpose.msra.mxu0 0
      %2818 = vmatpush.bf16.xpose.msra.mxu0 0
      %2819 = vmatpush.bf16.xpose.msra.mxu0 0
      %2820 = vmatpush.bf16.xpose.msra.mxu0 0
      %2821 = vmatpush.bf16.xpose.msra.mxu0 0
      %2822 = vmatpush.bf16.xpose.msra.mxu0 %v2813
      %2823 = vmatmul.bf16.gmra.mxu0 %v2810
      %v2824 = vpop.f32.mrf.mxu0
      %v2825 = vadd.f32 0.0, %v2824
      %v2826 = vpop.f32.mrf.mxu0
      %v2827 = vadd.f32 0.0, %v2826
      %2828 = vdwg.mxu0
      %v2831 = vunpack.c.l.b16 %v2119
      %v2832 = vunpack.c.l.b16 %v2120
      %v2833 = vpack.c.b16 %v2832, %v2831
      %v2836 = vunpack.c.l.b16 %v2151
      %v2837 = vunpack.c.l.b16 %v2152
      %v2838 = vpack.c.b16 %v2837, %v2836
      %v2840 = vsel %vm2328, %v2833, 0
      %v2843 = vsel %vm2328, %v2838, 0
      %2845 = vmatpush.bf16.xpose.msra.mxu0 0
      %2846 = vmatpush.bf16.xpose.msra.mxu0 0
      %2847 = vmatpush.bf16.xpose.msra.mxu0 0
      %2848 = vmatpush.bf16.xpose.msra.mxu0 0
      %2849 = vmatpush.bf16.xpose.msra.mxu0 0
      %2850 = vmatpush.bf16.xpose.msra.mxu0 0
      %2851 = vmatpush.bf16.xpose.msra.mxu0 0
      %2852 = vmatpush.bf16.xpose.msra.mxu0 %v2843
      %2853 = vmatmul.bf16.gmra.mxu0 %v2840
      %v2854 = vpop.f32.mrf.mxu0
      %v2855 = vadd.f32 0.0, %v2854
      %v2856 = vpop.f32.mrf.mxu0
      %v2857 = vadd.f32 0.0, %v2856
      %2858 = vdwg.mxu0
      %v2861 = vunpack.c.l.b16 %v2121
      %v2862 = vunpack.c.l.b16 %v2122
      %v2863 = vpack.c.b16 %v2862, %v2861
      %v2866 = vunpack.c.l.b16 %v2153
      %v2867 = vunpack.c.l.b16 %v2154
      %v2868 = vpack.c.b16 %v2867, %v2866
      %v2870 = vsel %vm2328, %v2863, 0
      %v2873 = vsel %vm2328, %v2868, 0
      %2875 = vmatpush.bf16.xpose.msra.mxu0 0
      %2876 = vmatpush.bf16.xpose.msra.mxu0 0
      %2877 = vmatpush.bf16.xpose.msra.mxu0 0
      %2878 = vmatpush.bf16.xpose.msra.mxu0 0
      %2879 = vmatpush.bf16.xpose.msra.mxu0 0
      %2880 = vmatpush.bf16.xpose.msra.mxu0 0
      %2881 = vmatpush.bf16.xpose.msra.mxu0 0
      %2882 = vmatpush.bf16.xpose.msra.mxu0 %v2873
      %2883 = vmatmul.bf16.gmra.mxu0 %v2870
      %v2884 = vpop.f32.mrf.mxu0
      %v2885 = vadd.f32 0.0, %v2884
      %v2886 = vpop.f32.mrf.mxu0
      %v2887 = vadd.f32 0.0, %v2886
      %2888 = vdwg.mxu0
      %v2891 = vunpack.c.l.b16 %v2123
      %v2892 = vunpack.c.l.b16 %v2124
      %v2893 = vpack.c.b16 %v2892, %v2891
      %v2896 = vunpack.c.l.b16 %v2155
      %v2897 = vunpack.c.l.b16 %v2156
      %v2898 = vpack.c.b16 %v2897, %v2896
      %v2900 = vsel %vm2328, %v2893, 0
      %v2903 = vsel %vm2328, %v2898, 0
      %2905 = vmatpush.bf16.xpose.msra.mxu0 0
      %2906 = vmatpush.bf16.xpose.msra.mxu0 0
      %2907 = vmatpush.bf16.xpose.msra.mxu0 0
      %2908 = vmatpush.bf16.xpose.msra.mxu0 0
      %2909 = vmatpush.bf16.xpose.msra.mxu0 0
      %2910 = vmatpush.bf16.xpose.msra.mxu0 0
      %2911 = vmatpush.bf16.xpose.msra.mxu0 0
      %2912 = vmatpush.bf16.xpose.msra.mxu0 %v2903
      %2913 = vmatmul.bf16.gmra.mxu0 %v2900
      %v2914 = vpop.f32.mrf.mxu0
      %v2915 = vadd.f32 0.0, %v2914
      %v2916 = vpop.f32.mrf.mxu0
      %v2917 = vadd.f32 0.0, %v2916
      %2918 = vdwg.mxu0
      %v2921 = vunpack.c.l.b16 %v2125
      %v2922 = vunpack.c.l.b16 %v2126
      %v2923 = vpack.c.b16 %v2922, %v2921
      %v2926 = vunpack.c.l.b16 %v2157
      %v2927 = vunpack.c.l.b16 %v2158
      %v2928 = vpack.c.b16 %v2927, %v2926
      %v2930 = vsel %vm2328, %v2923, 0
      %v2933 = vsel %vm2328, %v2928, 0
      %2935 = vmatpush.bf16.xpose.msra.mxu0 0
      %2936 = vmatpush.bf16.xpose.msra.mxu0 0
      %2937 = vmatpush.bf16.xpose.msra.mxu0 0
      %2938 = vmatpush.bf16.xpose.msra.mxu0 0
      %2939 = vmatpush.bf16.xpose.msra.mxu0 0
      %2940 = vmatpush.bf16.xpose.msra.mxu0 0
      %2941 = vmatpush.bf16.xpose.msra.mxu0 0
      %2942 = vmatpush.bf16.xpose.msra.mxu0 %v2933
      %2943 = vmatmul.bf16.gmra.mxu0 %v2930
      %v2944 = vpop.f32.mrf.mxu0
      %v2945 = vadd.f32 0.0, %v2944
      %v2946 = vpop.f32.mrf.mxu0
      %v2947 = vadd.f32 0.0, %v2946
      %2948 = vdwg.mxu0
      %v2951 = vunpack.c.l.b16 %v2127
      %v2952 = vunpack.c.l.b16 %v2128
      %v2953 = vpack.c.b16 %v2952, %v2951
      %v2956 = vunpack.c.l.b16 %v2159
      %v2957 = vunpack.c.l.b16 %v2160
      %v2958 = vpack.c.b16 %v2957, %v2956
      %v2960 = vsel %vm2328, %v2953, 0
      %v2963 = vsel %vm2328, %v2958, 0
      %2965 = vmatpush.bf16.xpose.msra.mxu0 0
      %2966 = vmatpush.bf16.xpose.msra.mxu0 0
      %2967 = vmatpush.bf16.xpose.msra.mxu0 0
      %2968 = vmatpush.bf16.xpose.msra.mxu0 0
      %2969 = vmatpush.bf16.xpose.msra.mxu0 0
      %2970 = vmatpush.bf16.xpose.msra.mxu0 0
      %2971 = vmatpush.bf16.xpose.msra.mxu0 0
      %2972 = vmatpush.bf16.xpose.msra.mxu0 %v2963
      %2973 = vmatmul.bf16.gmra.mxu0 %v2960
      %v2974 = vpop.f32.mrf.mxu0
      %v2975 = vadd.f32 0.0, %v2974
      %v2976 = vpop.f32.mrf.mxu0
      %v2977 = vadd.f32 0.0, %v2976
      %2978 = vdwg.mxu0
      %v2981 = vunpack.c.l.b16 %v2129
      %v2982 = vunpack.c.l.b16 %v2130
      %v2983 = vpack.c.b16 %v2982, %v2981
      %v2986 = vunpack.c.l.b16 %v2161
      %v2987 = vunpack.c.l.b16 %v2162
      %v2988 = vpack.c.b16 %v2987, %v2986
      %v2990 = vsel %vm2328, %v2983, 0
      %v2993 = vsel %vm2328, %v2988, 0
      %2995 = vmatpush.bf16.xpose.msra.mxu0 0
      %2996 = vmatpush.bf16.xpose.msra.mxu0 0
      %2997 = vmatpush.bf16.xpose.msra.mxu0 0
      %2998 = vmatpush.bf16.xpose.msra.mxu0 0
      %2999 = vmatpush.bf16.xpose.msra.mxu0 0
      %3000 = vmatpush.bf16.xpose.msra.mxu0 0
      %3001 = vmatpush.bf16.xpose.msra.mxu0 0
      %3002 = vmatpush.bf16.xpose.msra.mxu0 %v2993
      %3003 = vmatmul.bf16.gmra.mxu0 %v2990
      %v3004 = vpop.f32.mrf.mxu0
      %v3005 = vadd.f32 0.0, %v3004
      %v3006 = vpop.f32.mrf.mxu0
      %v3007 = vadd.f32 0.0, %v3006
      %3008 = vdwg.mxu0
      %v3011 = vunpack.c.l.b16 %v2131
      %v3012 = vunpack.c.l.b16 %v2132
      %v3013 = vpack.c.b16 %v3012, %v3011
      %v3016 = vunpack.c.l.b16 %v2163
      %v3017 = vunpack.c.l.b16 %v2164
      %v3018 = vpack.c.b16 %v3017, %v3016
      %v3020 = vsel %vm2328, %v3013, 0
      %v3023 = vsel %vm2328, %v3018, 0
      %3025 = vmatpush.bf16.xpose.msra.mxu0 0
      %3026 = vmatpush.bf16.xpose.msra.mxu0 0
      %3027 = vmatpush.bf16.xpose.msra.mxu0 0
      %3028 = vmatpush.bf16.xpose.msra.mxu0 0
      %3029 = vmatpush.bf16.xpose.msra.mxu0 0
      %3030 = vmatpush.bf16.xpose.msra.mxu0 0
      %3031 = vmatpush.bf16.xpose.msra.mxu0 0
      %3032 = vmatpush.bf16.xpose.msra.mxu0 %v3023
      %3033 = vmatmul.bf16.gmra.mxu0 %v3020
      %v3034 = vpop.f32.mrf.mxu0
      %v3035 = vadd.f32 0.0, %v3034
      %v3036 = vpop.f32.mrf.mxu0
      %v3037 = vadd.f32 0.0, %v3036
      %3038 = vdwg.mxu0
      %v3041 = vunpack.c.l.b16 %v2133
      %v3042 = vunpack.c.l.b16 %v2134
      %v3043 = vpack.c.b16 %v3042, %v3041
      %v3046 = vunpack.c.l.b16 %v2165
      %v3047 = vunpack.c.l.b16 %v2166
      %v3048 = vpack.c.b16 %v3047, %v3046
      %v3050 = vsel %vm2328, %v3043, 0
      %v3053 = vsel %vm2328, %v3048, 0
      %3055 = vmatpush.bf16.xpose.msra.mxu0 0
      %3056 = vmatpush.bf16.xpose.msra.mxu0 0
      %3057 = vmatpush.bf16.xpose.msra.mxu0 0
      %3058 = vmatpush.bf16.xpose.msra.mxu0 0
      %3059 = vmatpush.bf16.xpose.msra.mxu0 0
      %3060 = vmatpush.bf16.xpose.msra.mxu0 0
      %3061 = vmatpush.bf16.xpose.msra.mxu0 0
      %3062 = vmatpush.bf16.xpose.msra.mxu0 %v3053
      %3063 = vmatmul.bf16.gmra.mxu0 %v3050
      %v3064 = vpop.f32.mrf.mxu0
      %v3065 = vadd.f32 0.0, %v3064
      %v3066 = vpop.f32.mrf.mxu0
      %v3067 = vadd.f32 0.0, %v3066
      %3068 = vdwg.mxu0
      %v3071 = vunpack.c.l.b16 %v2135
      %v3072 = vunpack.c.l.b16 %v2136
      %v3073 = vpack.c.b16 %v3072, %v3071
      %v3076 = vunpack.c.l.b16 %v2167
      %v3077 = vunpack.c.l.b16 %v2168
      %v3078 = vpack.c.b16 %v3077, %v3076
      %v3080 = vsel %vm2328, %v3073, 0
      %v3083 = vsel %vm2328, %v3078, 0
      %3085 = vmatpush.bf16.xpose.msra.mxu0 0
      %3086 = vmatpush.bf16.xpose.msra.mxu0 0
      %3087 = vmatpush.bf16.xpose.msra.mxu0 0
      %3088 = vmatpush.bf16.xpose.msra.mxu0 0
      %3089 = vmatpush.bf16.xpose.msra.mxu0 0
      %3090 = vmatpush.bf16.xpose.msra.mxu0 0
      %3091 = vmatpush.bf16.xpose.msra.mxu0 0
      %3092 = vmatpush.bf16.xpose.msra.mxu0 %v3083
      %3093 = vmatmul.bf16.gmra.mxu0 %v3080
      %v3094 = vpop.f32.mrf.mxu0
      %v3095 = vadd.f32 0.0, %v3094
      %v3096 = vpop.f32.mrf.mxu0
      %v3097 = vadd.f32 0.0, %v3096
      %3098 = vdwg.mxu0
      %v3101 = vunpack.c.l.b16 %v2137
      %v3102 = vunpack.c.l.b16 %v2138
      %v3103 = vpack.c.b16 %v3102, %v3101
      %v3106 = vunpack.c.l.b16 %v2169
      %v3107 = vunpack.c.l.b16 %v2170
      %v3108 = vpack.c.b16 %v3107, %v3106
      %v3110 = vsel %vm2328, %v3103, 0
      %v3113 = vsel %vm2328, %v3108, 0
      %3115 = vmatpush.bf16.xpose.msra.mxu0 0
      %3116 = vmatpush.bf16.xpose.msra.mxu0 0
      %3117 = vmatpush.bf16.xpose.msra.mxu0 0
      %3118 = vmatpush.bf16.xpose.msra.mxu0 0
      %3119 = vmatpush.bf16.xpose.msra.mxu0 0
      %3120 = vmatpush.bf16.xpose.msra.mxu0 0
      %3121 = vmatpush.bf16.xpose.msra.mxu0 0
      %3122 = vmatpush.bf16.xpose.msra.mxu0 %v3113
      %3123 = vmatmul.bf16.gmra.mxu0 %v3110
      %v3124 = vpop.f32.mrf.mxu0
      %v3125 = vadd.f32 0.0, %v3124
      %v3126 = vpop.f32.mrf.mxu0
      %v3127 = vadd.f32 0.0, %v3126
      %3128 = vdwg.mxu0
      %v3131 = vunpack.c.l.b16 %v2139
      %v3132 = vunpack.c.l.b16 %v2140
      %v3133 = vpack.c.b16 %v3132, %v3131
      %v3136 = vunpack.c.l.b16 %v2171
      %v3137 = vunpack.c.l.b16 %v2172
      %v3138 = vpack.c.b16 %v3137, %v3136
      %v3140 = vsel %vm2328, %v3133, 0
      %v3143 = vsel %vm2328, %v3138, 0
      %3145 = vmatpush.bf16.xpose.msra.mxu0 0
      %3146 = vmatpush.bf16.xpose.msra.mxu0 0
      %3147 = vmatpush.bf16.xpose.msra.mxu0 0
      %3148 = vmatpush.bf16.xpose.msra.mxu0 0
      %3149 = vmatpush.bf16.xpose.msra.mxu0 0
      %3150 = vmatpush.bf16.xpose.msra.mxu0 0
      %3151 = vmatpush.bf16.xpose.msra.mxu0 0
      %3152 = vmatpush.bf16.xpose.msra.mxu0 %v3143
      %3153 = vmatmul.bf16.gmra.mxu0 %v3140
      %v3154 = vpop.f32.mrf.mxu0
      %v3155 = vadd.f32 0.0, %v3154
      %v3156 = vpop.f32.mrf.mxu0
      %v3157 = vadd.f32 0.0, %v3156
      %3158 = vdwg.mxu0
      %v3161 = vunpack.c.l.b16 %v2141
      %v3162 = vunpack.c.l.b16 %v2142
      %v3163 = vpack.c.b16 %v3162, %v3161
      %v3166 = vunpack.c.l.b16 %v2173
      %v3167 = vunpack.c.l.b16 %v2174
      %v3168 = vpack.c.b16 %v3167, %v3166
      %v3170 = vsel %vm2328, %v3163, 0
      %v3173 = vsel %vm2328, %v3168, 0
      %3175 = vmatpush.bf16.xpose.msra.mxu0 0
      %3176 = vmatpush.bf16.xpose.msra.mxu0 0
      %3177 = vmatpush.bf16.xpose.msra.mxu0 0
      %3178 = vmatpush.bf16.xpose.msra.mxu0 0
      %3179 = vmatpush.bf16.xpose.msra.mxu0 0
      %3180 = vmatpush.bf16.xpose.msra.mxu0 0
      %3181 = vmatpush.bf16.xpose.msra.mxu0 0
      %3182 = vmatpush.bf16.xpose.msra.mxu0 %v3173
      %3183 = vmatmul.bf16.gmra.mxu0 %v3170
      %v3184 = vpop.f32.mrf.mxu0
      %v3185 = vadd.f32 0.0, %v3184
      %v3186 = vpop.f32.mrf.mxu0
      %v3187 = vadd.f32 0.0, %v3186
      %3188 = vdwg.mxu0
      %v3191 = vunpack.c.l.b16 %v2143
      %v3192 = vunpack.c.l.b16 %v2144
      %v3193 = vpack.c.b16 %v3192, %v3191
      %v3196 = vunpack.c.l.b16 %v2175
      %v3197 = vunpack.c.l.b16 %v2176
      %v3198 = vpack.c.b16 %v3197, %v3196
      %v3200 = vsel %vm2328, %v3193, 0
      %v3203 = vsel %vm2328, %v3198, 0
      %3205 = vmatpush.bf16.xpose.msra.mxu0 0
      %3206 = vmatpush.bf16.xpose.msra.mxu0 0
      %3207 = vmatpush.bf16.xpose.msra.mxu0 0
      %3208 = vmatpush.bf16.xpose.msra.mxu0 0
      %3209 = vmatpush.bf16.xpose.msra.mxu0 0
      %3210 = vmatpush.bf16.xpose.msra.mxu0 0
      %3211 = vmatpush.bf16.xpose.msra.mxu0 0
      %3212 = vmatpush.bf16.xpose.msra.mxu0 %v3203
      %3213 = vmatmul.bf16.gmra.mxu0 %v3200
      %v3214 = vpop.f32.mrf.mxu0
      %v3215 = vadd.f32 0.0, %v3214
      %v3216 = vpop.f32.mrf.mxu0
      %v3217 = vadd.f32 0.0, %v3216
      %3218 = vdwg.mxu0
      %v3221 = vunpack.c.l.b16 %v2145
      %v3222 = vunpack.c.l.b16 %v2146
      %v3223 = vpack.c.b16 %v3222, %v3221
      %v3226 = vunpack.c.l.b16 %v2177
      %v3227 = vunpack.c.l.b16 %v2178
      %v3228 = vpack.c.b16 %v3227, %v3226
      %v3230 = vsel %vm2328, %v3223, 0
      %v3233 = vsel %vm2328, %v3228, 0
      %3235 = vmatpush.bf16.xpose.msra.mxu0 0
      %3236 = vmatpush.bf16.xpose.msra.mxu0 0
      %3237 = vmatpush.bf16.xpose.msra.mxu0 0
      %3238 = vmatpush.bf16.xpose.msra.mxu0 0
      %3239 = vmatpush.bf16.xpose.msra.mxu0 0
      %3240 = vmatpush.bf16.xpose.msra.mxu0 0
      %3241 = vmatpush.bf16.xpose.msra.mxu0 0
      %3242 = vmatpush.bf16.xpose.msra.mxu0 %v3233
      %3243 = vmatmul.bf16.gmra.mxu0 %v3230
      %v3244 = vpop.f32.mrf.mxu0
      %v3245 = vadd.f32 0.0, %v3244
      %v3246 = vpop.f32.mrf.mxu0
      %v3247 = vadd.f32 0.0, %v3246
      %3248 = vdwg.mxu0
      %v3251 = vunpack.c.l.b16 %v2147
      %v3252 = vunpack.c.l.b16 %v2148
      %v3253 = vpack.c.b16 %v3252, %v3251
      %v3256 = vunpack.c.l.b16 %v2179
      %v3257 = vunpack.c.l.b16 %v2180
      %v3258 = vpack.c.b16 %v3257, %v3256
      %v3260 = vsel %vm2328, %v3253, 0
      %v3263 = vsel %vm2328, %v3258, 0
      %3265 = vmatpush.bf16.xpose.msra.mxu0 0
      %3266 = vmatpush.bf16.xpose.msra.mxu0 0
      %3267 = vmatpush.bf16.xpose.msra.mxu0 0
      %3268 = vmatpush.bf16.xpose.msra.mxu0 0
      %3269 = vmatpush.bf16.xpose.msra.mxu0 0
      %3270 = vmatpush.bf16.xpose.msra.mxu0 0
      %3271 = vmatpush.bf16.xpose.msra.mxu0 0
      %3272 = vmatpush.bf16.xpose.msra.mxu0 %v3263
      %3273 = vmatmul.bf16.gmra.mxu0 %v3260
      %v3274 = vpop.f32.mrf.mxu0
      %v3275 = vadd.f32 0.0, %v3274
      %v3276 = vpop.f32.mrf.mxu0
      %v3277 = vadd.f32 0.0, %v3276
      %3278 = vdwg.mxu0
      %vm3279 = vcmask 130048
      %v3280 = vsel %vm3279, %v2345, -inf
      %3281 = vmax.xlane.f32.xlu0 %v3280
      %v3282 = vpop.xlane.xlu0 %3281
      %v3283 = vsel %vm3279, %v2347, -inf
      %3284 = vmax.xlane.f32.xlu0 %v3283
      %v3285 = vpop.xlane.xlu0 %3284
      %v3286 = vsel %vm3279, %v2375, -inf
      %3287 = vmax.xlane.f32.xlu0 %v3286
      %v3288 = vpop.xlane.xlu0 %3287
      %v3289 = vsel %vm3279, %v2377, -inf
      %3290 = vmax.xlane.f32.xlu0 %v3289
      %v3291 = vpop.xlane.xlu0 %3290
      %v3292 = vsel %vm3279, %v2405, -inf
      %3293 = vmax.xlane.f32.xlu0 %v3292
      %v3294 = vpop.xlane.xlu0 %3293
      %v3295 = vsel %vm3279, %v2407, -inf
      %3296 = vmax.xlane.f32.xlu0 %v3295
      %v3297 = vpop.xlane.xlu0 %3296
      %v3298 = vsel %vm3279, %v2435, -inf
      %3299 = vmax.xlane.f32.xlu0 %v3298
      %v3300 = vpop.xlane.xlu0 %3299
      %v3301 = vsel %vm3279, %v2437, -inf
      %3302 = vmax.xlane.f32.xlu0 %v3301
      %v3303 = vpop.xlane.xlu0 %3302
      %v3304 = vsel %vm3279, %v2465, -inf
      %3305 = vmax.xlane.f32.xlu0 %v3304
      %v3306 = vpop.xlane.xlu0 %3305
      %v3307 = vsel %vm3279, %v2467, -inf
      %3308 = vmax.xlane.f32.xlu0 %v3307
      %v3309 = vpop.xlane.xlu0 %3308
      %v3310 = vsel %vm3279, %v2495, -inf
      %3311 = vmax.xlane.f32.xlu0 %v3310
      %v3312 = vpop.xlane.xlu0 %3311
      %v3313 = vsel %vm3279, %v2497, -inf
      %3314 = vmax.xlane.f32.xlu0 %v3313
      %v3315 = vpop.xlane.xlu0 %3314
      %v3316 = vsel %vm3279, %v2525, -inf
      %3317 = vmax.xlane.f32.xlu0 %v3316
      %v3318 = vpop.xlane.xlu0 %3317
      %v3319 = vsel %vm3279, %v2527, -inf
      %3320 = vmax.xlane.f32.xlu0 %v3319
      %v3321 = vpop.xlane.xlu0 %3320
      %v3322 = vsel %vm3279, %v2555, -inf
      %3323 = vmax.xlane.f32.xlu0 %v3322
      %v3324 = vpop.xlane.xlu0 %3323
      %v3325 = vsel %vm3279, %v2557, -inf
      %3326 = vmax.xlane.f32.xlu0 %v3325
      %v3327 = vpop.xlane.xlu0 %3326
      %v3328 = vsel %vm3279, %v2585, -inf
      %3329 = vmax.xlane.f32.xlu0 %v3328
      %v3330 = vpop.xlane.xlu0 %3329
      %v3331 = vsel %vm3279, %v2587, -inf
      %3332 = vmax.xlane.f32.xlu0 %v3331
      %v3333 = vpop.xlane.xlu0 %3332
      %v3334 = vsel %vm3279, %v2615, -inf
      %3335 = vmax.xlane.f32.xlu0 %v3334
      %v3336 = vpop.xlane.xlu0 %3335
      %v3337 = vsel %vm3279, %v2617, -inf
      %3338 = vmax.xlane.f32.xlu0 %v3337
      %v3339 = vpop.xlane.xlu0 %3338
      %v3340 = vsel %vm3279, %v2645, -inf
      %3341 = vmax.xlane.f32.xlu0 %v3340
      %v3342 = vpop.xlane.xlu0 %3341
      %v3343 = vsel %vm3279, %v2647, -inf
      %3344 = vmax.xlane.f32.xlu0 %v3343
      %v3345 = vpop.xlane.xlu0 %3344
      %v3346 = vsel %vm3279, %v2675, -inf
      %3347 = vmax.xlane.f32.xlu0 %v3346
      %v3348 = vpop.xlane.xlu0 %3347
      %v3349 = vsel %vm3279, %v2677, -inf
      %3350 = vmax.xlane.f32.xlu0 %v3349
      %v3351 = vpop.xlane.xlu0 %3350
      %v3352 = vsel %vm3279, %v2705, -inf
      %3353 = vmax.xlane.f32.xlu0 %v3352
      %v3354 = vpop.xlane.xlu0 %3353
      %v3355 = vsel %vm3279, %v2707, -inf
      %3356 = vmax.xlane.f32.xlu0 %v3355
      %v3357 = vpop.xlane.xlu0 %3356
      %v3358 = vsel %vm3279, %v2735, -inf
      %3359 = vmax.xlane.f32.xlu0 %v3358
      %v3360 = vpop.xlane.xlu0 %3359
      %v3361 = vsel %vm3279, %v2737, -inf
      %3362 = vmax.xlane.f32.xlu0 %v3361
      %v3363 = vpop.xlane.xlu0 %3362
      %v3364 = vsel %vm3279, %v2765, -inf
      %3365 = vmax.xlane.f32.xlu0 %v3364
      %v3366 = vpop.xlane.xlu0 %3365
      %v3367 = vsel %vm3279, %v2767, -inf
      %3368 = vmax.xlane.f32.xlu0 %v3367
      %v3369 = vpop.xlane.xlu0 %3368
      %v3370 = vsel %vm3279, %v2795, -inf
      %3371 = vmax.xlane.f32.xlu0 %v3370
      %v3372 = vpop.xlane.xlu0 %3371
      %v3373 = vsel %vm3279, %v2797, -inf
      %3374 = vmax.xlane.f32.xlu0 %v3373
      %v3375 = vpop.xlane.xlu0 %3374
      %v3408 = vperm.slane %v3282, %v2313
      %v3409 = vadd.s32 %v2313, 4294967288
      %v3410 = vperm.slane %v3285, %v3409
      %vm3411 = vcmask 130112
      %v3412 = vsel %vm3411, %v3410, %v3408
      %v3413 = vperm.slane %v3288, %v2313
      %v3414 = vperm.slane %v3291, %v3409
      %v3415 = vsel %vm3411, %v3414, %v3413
      %v3416 = vperm.slane %v3294, %v2313
      %v3417 = vperm.slane %v3297, %v3409
      %v3418 = vsel %vm3411, %v3417, %v3416
      %v3419 = vperm.slane %v3300, %v2313
      %v3420 = vperm.slane %v3303, %v3409
      %v3421 = vsel %vm3411, %v3420, %v3419
      %v3422 = vperm.slane %v3306, %v2313
      %v3423 = vperm.slane %v3309, %v3409
      %v3424 = vsel %vm3411, %v3423, %v3422
      %v3425 = vperm.slane %v3312, %v2313
      %v3426 = vperm.slane %v3315, %v3409
      %v3427 = vsel %vm3411, %v3426, %v3425
      %v3428 = vperm.slane %v3318, %v2313
      %v3429 = vperm.slane %v3321, %v3409
      %v3430 = vsel %vm3411, %v3429, %v3428
      %v3431 = vperm.slane %v3324, %v2313
      %v3432 = vperm.slane %v3327, %v3409
      %v3433 = vsel %vm3411, %v3432, %v3431
      %v3434 = vperm.slane %v3330, %v2313
      %v3435 = vperm.slane %v3333, %v3409
      %v3436 = vsel %vm3411, %v3435, %v3434
      %v3437 = vperm.slane %v3336, %v2313
      %v3438 = vperm.slane %v3339, %v3409
      %v3439 = vsel %vm3411, %v3438, %v3437
      %v3440 = vperm.slane %v3342, %v2313
      %v3441 = vperm.slane %v3345, %v3409
      %v3442 = vsel %vm3411, %v3441, %v3440
      %v3443 = vperm.slane %v3348, %v2313
      %v3444 = vperm.slane %v3351, %v3409
      %v3445 = vsel %vm3411, %v3444, %v3443
      %v3446 = vperm.slane %v3354, %v2313
      %v3447 = vperm.slane %v3357, %v3409
      %v3448 = vsel %vm3411, %v3447, %v3446
      %v3449 = vperm.slane %v3360, %v2313
      %v3450 = vperm.slane %v3363, %v3409
      %v3451 = vsel %vm3411, %v3450, %v3449
      %v3452 = vperm.slane %v3366, %v2313
      %v3453 = vperm.slane %v3369, %v3409
      %v3454 = vsel %vm3411, %v3453, %v3452
      %v3455 = vperm.slane %v3372, %v2313
      %v3456 = vperm.slane %v3375, %v3409
      %v3457 = vsel %vm3411, %v3456, %v3455
      %vm3458 = vcmask 1041409
      %v3459 = vsel %vm3458, %v3415, %v3412
      %vm3460 = vcmask 1042434
      %v3461 = vsel %vm3460, %v3418, %v3459
      %vm3462 = vcmask 1043459
      %v3463 = vsel %vm3462, %v3421, %v3461
      %vm3464 = vcmask 1044484
      %v3465 = vsel %vm3464, %v3424, %v3463
      %vm3466 = vcmask 1045509
      %v3467 = vsel %vm3466, %v3427, %v3465
      %vm3468 = vcmask 1046534
      %v3469 = vsel %vm3468, %v3430, %v3467
      %vm3470 = vcmask 1047559
      %v3471 = vsel %vm3470, %v3433, %v3469
      %v3472 = vsel %vm3458, %v3439, %v3436
      %v3473 = vsel %vm3460, %v3442, %v3472
      %v3474 = vsel %vm3462, %v3445, %v3473
      %v3475 = vsel %vm3464, %v3448, %v3474
      %v3476 = vsel %vm3466, %v3451, %v3475
      %v3477 = vsel %vm3468, %v3454, %v3476
      %v3478 = vsel %vm3470, %v3457, %v3477
      %3481 = vxpose.xlu0.b32.start [1/16] %v3471, 128
      %3482 = vxpose.xlu0.b32.cont [2/16] %v3478, 128
      %3483 = vxpose.xlu0.b32.cont [3/16] 0.0, 128
      %3484 = vxpose.xlu0.b32.cont [4/16] 0.0, 128
      %3485 = vxpose.xlu0.b32.cont [5/16] 0.0, 128
      %3486 = vxpose.xlu0.b32.cont [6/16] 0.0, 128
      %3487 = vxpose.xlu0.b32.cont [7/16] 0.0, 128
      %3488 = vxpose.xlu0.b32.cont [8/16] 0.0, 128
      %3489 = vxpose.xlu0.b32.cont [9/16] 0.0, 128
      %3490 = vxpose.xlu0.b32.cont [10/16] 0.0, 128
      %3491 = vxpose.xlu0.b32.cont [11/16] 0.0, 128
      %3492 = vxpose.xlu0.b32.cont [12/16] 0.0, 128
      %3493 = vxpose.xlu0.b32.cont [13/16] 0.0, 128
      %3494 = vxpose.xlu0.b32.cont [14/16] 0.0, 128
      %3495 = vxpose.xlu0.b32.cont [15/16] 0.0, 128
      %3496 = vxpose.xlu0.b32.end [16/16] 0.0, 128
      %v3497 = vpop.trf.xlu0
      %v3498 = vpop.trf.xlu0
      %v3499 = vpop.trf.xlu0
      %v3500 = vpop.trf.xlu0
      %v3501 = vpop.trf.xlu0
      %v3502 = vpop.trf.xlu0
      %v3503 = vpop.trf.xlu0
      %v3504 = vpop.trf.xlu0
      %v3505 = vpop.trf.xlu0
      %v3506 = vpop.trf.xlu0
      %v3507 = vpop.trf.xlu0
      %v3508 = vpop.trf.xlu0
      %v3509 = vpop.trf.xlu0
      %v3510 = vpop.trf.xlu0
      %v3511 = vpop.trf.xlu0
      %v3512 = vpop.trf.xlu0
      %v3513 = vsel %vm3279, %v2825, -inf
      %3514 = vmax.xlane.f32.xlu0 %v3513
      %v3515 = vpop.xlane.xlu0 %3514
      %v3516 = vsel %vm3279, %v2827, -inf
      %3517 = vmax.xlane.f32.xlu0 %v3516
      %v3518 = vpop.xlane.xlu0 %3517
      %v3519 = vsel %vm3279, %v2855, -inf
      %3520 = vmax.xlane.f32.xlu0 %v3519
      %v3521 = vpop.xlane.xlu0 %3520
      %v3522 = vsel %vm3279, %v2857, -inf
      %3523 = vmax.xlane.f32.xlu0 %v3522
      %v3524 = vpop.xlane.xlu0 %3523
      %v3525 = vsel %vm3279, %v2885, -inf
      %3526 = vmax.xlane.f32.xlu0 %v3525
      %v3527 = vpop.xlane.xlu0 %3526
      %v3528 = vsel %vm3279, %v2887, -inf
      %3529 = vmax.xlane.f32.xlu0 %v3528
      %v3530 = vpop.xlane.xlu0 %3529
      %v3531 = vsel %vm3279, %v2915, -inf
      %3532 = vmax.xlane.f32.xlu0 %v3531
      %v3533 = vpop.xlane.xlu0 %3532
      %v3534 = vsel %vm3279, %v2917, -inf
      %3535 = vmax.xlane.f32.xlu0 %v3534
      %v3536 = vpop.xlane.xlu0 %3535
      %v3537 = vsel %vm3279, %v2945, -inf
      %3538 = vmax.xlane.f32.xlu0 %v3537
      %v3539 = vpop.xlane.xlu0 %3538
      %v3540 = vsel %vm3279, %v2947, -inf
      %3541 = vmax.xlane.f32.xlu0 %v3540
      %v3542 = vpop.xlane.xlu0 %3541
      %v3543 = vsel %vm3279, %v2975, -inf
      %3544 = vmax.xlane.f32.xlu0 %v3543
      %v3545 = vpop.xlane.xlu0 %3544
      %v3546 = vsel %vm3279, %v2977, -inf
      %3547 = vmax.xlane.f32.xlu0 %v3546
      %v3548 = vpop.xlane.xlu0 %3547
      %v3549 = vsel %vm3279, %v3005, -inf
      %3550 = vmax.xlane.f32.xlu0 %v3549
      %v3551 = vpop.xlane.xlu0 %3550
      %v3552 = vsel %vm3279, %v3007, -inf
      %3553 = vmax.xlane.f32.xlu0 %v3552
      %v3554 = vpop.xlane.xlu0 %3553
      %v3555 = vsel %vm3279, %v3035, -inf
      %3556 = vmax.xlane.f32.xlu0 %v3555
      %v3557 = vpop.xlane.xlu0 %3556
      %v3558 = vsel %vm3279, %v3037, -inf
      %3559 = vmax.xlane.f32.xlu0 %v3558
      %v3560 = vpop.xlane.xlu0 %3559
      %v3561 = vsel %vm3279, %v3065, -inf
      %3562 = vmax.xlane.f32.xlu0 %v3561
      %v3563 = vpop.xlane.xlu0 %3562
      %v3564 = vsel %vm3279, %v3067, -inf
      %3565 = vmax.xlane.f32.xlu0 %v3564
      %v3566 = vpop.xlane.xlu0 %3565
      %v3567 = vsel %vm3279, %v3095, -inf
      %3568 = vmax.xlane.f32.xlu0 %v3567
      %v3569 = vpop.xlane.xlu0 %3568
      %v3570 = vsel %vm3279, %v3097, -inf
      %3571 = vmax.xlane.f32.xlu0 %v3570
      %v3572 = vpop.xlane.xlu0 %3571
      %v3573 = vsel %vm3279, %v3125, -inf
      %3574 = vmax.xlane.f32.xlu0 %v3573
      %v3575 = vpop.xlane.xlu0 %3574
      %v3576 = vsel %vm3279, %v3127, -inf
      %3577 = vmax.xlane.f32.xlu0 %v3576
      %v3578 = vpop.xlane.xlu0 %3577
      %v3579 = vsel %vm3279, %v3155, -inf
      %3580 = vmax.xlane.f32.xlu0 %v3579
      %v3581 = vpop.xlane.xlu0 %3580
      %v3582 = vsel %vm3279, %v3157, -inf
      %3583 = vmax.xlane.f32.xlu0 %v3582
      %v3584 = vpop.xlane.xlu0 %3583
      %v3585 = vsel %vm3279, %v3185, -inf
      %3586 = vmax.xlane.f32.xlu0 %v3585
      %v3587 = vpop.xlane.xlu0 %3586
      %v3588 = vsel %vm3279, %v3187, -inf
      %3589 = vmax.xlane.f32.xlu0 %v3588
      %v3590 = vpop.xlane.xlu0 %3589
      %v3591 = vsel %vm3279, %v3215, -inf
      %3592 = vmax.xlane.f32.xlu0 %v3591
      %v3593 = vpop.xlane.xlu0 %3592
      %v3594 = vsel %vm3279, %v3217, -inf
      %3595 = vmax.xlane.f32.xlu0 %v3594
      %v3596 = vpop.xlane.xlu0 %3595
      %v3597 = vsel %vm3279, %v3245, -inf
      %3598 = vmax.xlane.f32.xlu0 %v3597
      %v3599 = vpop.xlane.xlu0 %3598
      %v3600 = vsel %vm3279, %v3247, -inf
      %3601 = vmax.xlane.f32.xlu0 %v3600
      %v3602 = vpop.xlane.xlu0 %3601
      %v3603 = vsel %vm3279, %v3275, -inf
      %3604 = vmax.xlane.f32.xlu0 %v3603
      %v3605 = vpop.xlane.xlu0 %3604
      %v3606 = vsel %vm3279, %v3277, -inf
      %3607 = vmax.xlane.f32.xlu0 %v3606
      %v3608 = vpop.xlane.xlu0 %3607
      %v3641 = vperm.slane %v3515, %v2313
      %v3642 = vperm.slane %v3518, %v3409
      %v3643 = vsel %vm3411, %v3642, %v3641
      %v3644 = vperm.slane %v3521, %v2313
      %v3645 = vperm.slane %v3524, %v3409
      %v3646 = vsel %vm3411, %v3645, %v3644
      %v3647 = vperm.slane %v3527, %v2313
      %v3648 = vperm.slane %v3530, %v3409
      %v3649 = vsel %vm3411, %v3648, %v3647
      %v3650 = vperm.slane %v3533, %v2313
      %v3651 = vperm.slane %v3536, %v3409
      %v3652 = vsel %vm3411, %v3651, %v3650
      %v3653 = vperm.slane %v3539, %v2313
      %v3654 = vperm.slane %v3542, %v3409
      %v3655 = vsel %vm3411, %v3654, %v3653
      %v3656 = vperm.slane %v3545, %v2313
      %v3657 = vperm.slane %v3548, %v3409
      %v3658 = vsel %vm3411, %v3657, %v3656
      %v3659 = vperm.slane %v3551, %v2313
      %v3660 = vperm.slane %v3554, %v3409
      %v3661 = vsel %vm3411, %v3660, %v3659
      %v3662 = vperm.slane %v3557, %v2313
      %v3663 = vperm.slane %v3560, %v3409
      %v3664 = vsel %vm3411, %v3663, %v3662
      %v3665 = vperm.slane %v3563, %v2313
      %v3666 = vperm.slane %v3566, %v3409
      %v3667 = vsel %vm3411, %v3666, %v3665
      %v3668 = vperm.slane %v3569, %v2313
      %v3669 = vperm.slane %v3572, %v3409
      %v3670 = vsel %vm3411, %v3669, %v3668
      %v3671 = vperm.slane %v3575, %v2313
      %v3672 = vperm.slane %v3578, %v3409
      %v3673 = vsel %vm3411, %v3672, %v3671
      %v3674 = vperm.slane %v3581, %v2313
      %v3675 = vperm.slane %v3584, %v3409
      %v3676 = vsel %vm3411, %v3675, %v3674
      %v3677 = vperm.slane %v3587, %v2313
      %v3678 = vperm.slane %v3590, %v3409
      %v3679 = vsel %vm3411, %v3678, %v3677
      %v3680 = vperm.slane %v3593, %v2313
      %v3681 = vperm.slane %v3596, %v3409
      %v3682 = vsel %vm3411, %v3681, %v3680
      %v3683 = vperm.slane %v3599, %v2313
      %v3684 = vperm.slane %v3602, %v3409
      %v3685 = vsel %vm3411, %v3684, %v3683
      %v3686 = vperm.slane %v3605, %v2313
      %v3687 = vperm.slane %v3608, %v3409
      %v3688 = vsel %vm3411, %v3687, %v3686
      %v3689 = vsel %vm3458, %v3646, %v3643
      %v3690 = vsel %vm3460, %v3649, %v3689
      %v3691 = vsel %vm3462, %v3652, %v3690
      %v3692 = vsel %vm3464, %v3655, %v3691
      %v3693 = vsel %vm3466, %v3658, %v3692
      %v3694 = vsel %vm3468, %v3661, %v3693
      %v3695 = vsel %vm3470, %v3664, %v3694
      %v3696 = vsel %vm3458, %v3670, %v3667
      %v3697 = vsel %vm3460, %v3673, %v3696
      %v3698 = vsel %vm3462, %v3676, %v3697
      %v3699 = vsel %vm3464, %v3679, %v3698
      %v3700 = vsel %vm3466, %v3682, %v3699
      %v3701 = vsel %vm3468, %v3685, %v3700
      %v3702 = vsel %vm3470, %v3688, %v3701
      %v3705 = vmax.f32 %v3497, %v3695
      %v3706 = vmax.f32 %v3498, %v3702
      %3707 = vxpose.xlu0.b32.start [1/16] %v3705, 128
      %3708 = vxpose.xlu0.b32.cont [2/16] %v3706, 128
      %3709 = vxpose.xlu0.b32.cont [3/16] 0.0, 128
      %3710 = vxpose.xlu0.b32.cont [4/16] 0.0, 128
      %3711 = vxpose.xlu0.b32.cont [5/16] 0.0, 128
      %3712 = vxpose.xlu0.b32.cont [6/16] 0.0, 128
      %3713 = vxpose.xlu0.b32.cont [7/16] 0.0, 128
      %3714 = vxpose.xlu0.b32.cont [8/16] 0.0, 128
      %3715 = vxpose.xlu0.b32.cont [9/16] 0.0, 128
      %3716 = vxpose.xlu0.b32.cont [10/16] 0.0, 128
      %3717 = vxpose.xlu0.b32.cont [11/16] 0.0, 128
      %3718 = vxpose.xlu0.b32.cont [12/16] 0.0, 128
      %3719 = vxpose.xlu0.b32.cont [13/16] 0.0, 128
      %3720 = vxpose.xlu0.b32.cont [14/16] 0.0, 128
      %3721 = vxpose.xlu0.b32.cont [15/16] 0.0, 128
      %3722 = vxpose.xlu0.b32.end [16/16] 0.0, 128
      %v3723 = vpop.trf.xlu0
      %v3724 = vpop.trf.xlu0
      %v3725 = vpop.trf.xlu0
      %v3726 = vpop.trf.xlu0
      %v3727 = vpop.trf.xlu0
      %v3728 = vpop.trf.xlu0
      %v3729 = vpop.trf.xlu0
      %v3730 = vpop.trf.xlu0
      %v3731 = vpop.trf.xlu0
      %v3732 = vpop.trf.xlu0
      %v3733 = vpop.trf.xlu0
      %v3734 = vpop.trf.xlu0
      %v3735 = vpop.trf.xlu0
      %v3736 = vpop.trf.xlu0
      %v3737 = vpop.trf.xlu0
      %v3738 = vpop.trf.xlu0
      %v3739 = vperm.slane %v3723, 0
      %v3740 = vlaneseq
      %v3741 = vshrl.u32 %v3740, 7
      %3743 = vset.pattern.permute.xlu0 %v3741
      %3744 = vperm.xlu0 %3743, %v3739
      %v3745 = vpop.permute.xlu0 %3744
      %v3746 = vlaneseq
      %v3747 = vshrl.u32 %v3746, 7
      %v3748 = vadd.s32 %v3747, 8
      %3749 = vset.pattern.permute.xlu0 %v3748
      %3750 = vperm.xlu0 %3749, %v3739
      %v3751 = vpop.permute.xlu0 %3750
      %v3752 = vperm.slane %v3723, 1
      %v3753 = vlaneseq
      %v3754 = vshrl.u32 %v3753, 7
      %3756 = vset.pattern.permute.xlu0 %v3754
      %3757 = vperm.xlu0 %3756, %v3752
      %v3758 = vpop.permute.xlu0 %3757
      %v3759 = vlaneseq
      %v3760 = vshrl.u32 %v3759, 7
      %v3761 = vadd.s32 %v3760, 8
      %3762 = vset.pattern.permute.xlu0 %v3761
      %3763 = vperm.xlu0 %3762, %v3752
      %v3764 = vpop.permute.xlu0 %3763
      %v3765 = vperm.slane %v3723, 2
      %v3766 = vlaneseq
      %v3767 = vshrl.u32 %v3766, 7
      %3769 = vset.pattern.permute.xlu0 %v3767
      %3770 = vperm.xlu0 %3769, %v3765
      %v3771 = vpop.permute.xlu0 %3770
      %v3772 = vlaneseq
      %v3773 = vshrl.u32 %v3772, 7
      %v3774 = vadd.s32 %v3773, 8
      %3775 = vset.pattern.permute.xlu0 %v3774
      %3776 = vperm.xlu0 %3775, %v3765
      %v3777 = vpop.permute.xlu0 %3776
      %v3778 = vperm.slane %v3723, 3
      %v3779 = vlaneseq
      %v3780 = vshrl.u32 %v3779, 7
      %3782 = vset.pattern.permute.xlu0 %v3780
      %3783 = vperm.xlu0 %3782, %v3778
      %v3784 = vpop.permute.xlu0 %3783
      %v3785 = vlaneseq
      %v3786 = vshrl.u32 %v3785, 7
      %v3787 = vadd.s32 %v3786, 8
      %3788 = vset.pattern.permute.xlu0 %v3787
      %3789 = vperm.xlu0 %3788, %v3778
      %v3790 = vpop.permute.xlu0 %3789
      %v3791 = vperm.slane %v3723, 4
      %v3792 = vlaneseq
      %v3793 = vshrl.u32 %v3792, 7
      %3795 = vset.pattern.permute.xlu0 %v3793
      %3796 = vperm.xlu0 %3795, %v3791
      %v3797 = vpop.permute.xlu0 %3796
      %v3798 = vlaneseq
      %v3799 = vshrl.u32 %v3798, 7
      %v3800 = vadd.s32 %v3799, 8
      %3801 = vset.pattern.permute.xlu0 %v3800
      %3802 = vperm.xlu0 %3801, %v3791
      %v3803 = vpop.permute.xlu0 %3802
      %v3804 = vperm.slane %v3723, 5
      %v3805 = vlaneseq
      %v3806 = vshrl.u32 %v3805, 7
      %3808 = vset.pattern.permute.xlu0 %v3806
      %3809 = vperm.xlu0 %3808, %v3804
      %v3810 = vpop.permute.xlu0 %3809
      %v3811 = vlaneseq
      %v3812 = vshrl.u32 %v3811, 7
      %v3813 = vadd.s32 %v3812, 8
      %3814 = vset.pattern.permute.xlu0 %v3813
      %3815 = vperm.xlu0 %3814, %v3804
      %v3816 = vpop.permute.xlu0 %3815
      %v3817 = vperm.slane %v3723, 6
      %v3818 = vlaneseq
      %v3819 = vshrl.u32 %v3818, 7
      %3821 = vset.pattern.permute.xlu0 %v3819
      %3822 = vperm.xlu0 %3821, %v3817
      %v3823 = vpop.permute.xlu0 %3822
      %v3824 = vlaneseq
      %v3825 = vshrl.u32 %v3824, 7
      %v3826 = vadd.s32 %v3825, 8
      %3827 = vset.pattern.permute.xlu0 %v3826
      %3828 = vperm.xlu0 %3827, %v3817
      %v3829 = vpop.permute.xlu0 %3828
      %v3830 = vperm.slane %v3723, 7
      %v3831 = vlaneseq
      %v3832 = vshrl.u32 %v3831, 7
      %3834 = vset.pattern.permute.xlu0 %v3832
      %3835 = vperm.xlu0 %3834, %v3830
      %v3836 = vpop.permute.xlu0 %3835
      %v3837 = vlaneseq
      %v3838 = vshrl.u32 %v3837, 7
      %v3839 = vadd.s32 %v3838, 8
      %3840 = vset.pattern.permute.xlu0 %v3839
      %3841 = vperm.xlu0 %3840, %v3830
      %v3842 = vpop.permute.xlu0 %3841
      %v3843 = vperm.slane %v3724, 0
      %v3844 = vlaneseq
      %v3845 = vshrl.u32 %v3844, 7
      %3847 = vset.pattern.permute.xlu0 %v3845
      %3848 = vperm.xlu0 %3847, %v3843
      %v3849 = vpop.permute.xlu0 %3848
      %v3850 = vlaneseq
      %v3851 = vshrl.u32 %v3850, 7
      %v3852 = vadd.s32 %v3851, 8
      %3853 = vset.pattern.permute.xlu0 %v3852
      %3854 = vperm.xlu0 %3853, %v3843
      %v3855 = vpop.permute.xlu0 %3854
      %v3856 = vperm.slane %v3724, 1
      %v3857 = vlaneseq
      %v3858 = vshrl.u32 %v3857, 7
      %3860 = vset.pattern.permute.xlu0 %v3858
      %3861 = vperm.xlu0 %3860, %v3856
      %v3862 = vpop.permute.xlu0 %3861
      %v3863 = vlaneseq
      %v3864 = vshrl.u32 %v3863, 7
      %v3865 = vadd.s32 %v3864, 8
      %3866 = vset.pattern.permute.xlu0 %v3865
      %3867 = vperm.xlu0 %3866, %v3856
      %v3868 = vpop.permute.xlu0 %3867
      %v3869 = vperm.slane %v3724, 2
      %v3870 = vlaneseq
      %v3871 = vshrl.u32 %v3870, 7
      %3873 = vset.pattern.permute.xlu0 %v3871
      %3874 = vperm.xlu0 %3873, %v3869
      %v3875 = vpop.permute.xlu0 %3874
      %v3876 = vlaneseq
      %v3877 = vshrl.u32 %v3876, 7
      %v3878 = vadd.s32 %v3877, 8
      %3879 = vset.pattern.permute.xlu0 %v3878
      %3880 = vperm.xlu0 %3879, %v3869
      %v3881 = vpop.permute.xlu0 %3880
      %v3882 = vperm.slane %v3724, 3
      %v3883 = vlaneseq
      %v3884 = vshrl.u32 %v3883, 7
      %3886 = vset.pattern.permute.xlu0 %v3884
      %3887 = vperm.xlu0 %3886, %v3882
      %v3888 = vpop.permute.xlu0 %3887
      %v3889 = vlaneseq
      %v3890 = vshrl.u32 %v3889, 7
      %v3891 = vadd.s32 %v3890, 8
      %3892 = vset.pattern.permute.xlu0 %v3891
      %3893 = vperm.xlu0 %3892, %v3882
      %v3894 = vpop.permute.xlu0 %3893
      %v3895 = vperm.slane %v3724, 4
      %v3896 = vlaneseq
      %v3897 = vshrl.u32 %v3896, 7
      %3899 = vset.pattern.permute.xlu0 %v3897
      %3900 = vperm.xlu0 %3899, %v3895
      %v3901 = vpop.permute.xlu0 %3900
      %v3902 = vlaneseq
      %v3903 = vshrl.u32 %v3902, 7
      %v3904 = vadd.s32 %v3903, 8
      %3905 = vset.pattern.permute.xlu0 %v3904
      %3906 = vperm.xlu0 %3905, %v3895
      %v3907 = vpop.permute.xlu0 %3906
      %v3908 = vperm.slane %v3724, 5
      %v3909 = vlaneseq
      %v3910 = vshrl.u32 %v3909, 7
      %3912 = vset.pattern.permute.xlu0 %v3910
      %3913 = vperm.xlu0 %3912, %v3908
      %v3914 = vpop.permute.xlu0 %3913
      %v3915 = vlaneseq
      %v3916 = vshrl.u32 %v3915, 7
      %v3917 = vadd.s32 %v3916, 8
      %3918 = vset.pattern.permute.xlu0 %v3917
      %3919 = vperm.xlu0 %3918, %v3908
      %v3920 = vpop.permute.xlu0 %3919
      %v3921 = vperm.slane %v3724, 6
      %v3922 = vlaneseq
      %v3923 = vshrl.u32 %v3922, 7
      %3925 = vset.pattern.permute.xlu0 %v3923
      %3926 = vperm.xlu0 %3925, %v3921
      %v3927 = vpop.permute.xlu0 %3926
      %v3928 = vlaneseq
      %v3929 = vshrl.u32 %v3928, 7
      %v3930 = vadd.s32 %v3929, 8
      %3931 = vset.pattern.permute.xlu0 %v3930
      %3932 = vperm.xlu0 %3931, %v3921
      %v3933 = vpop.permute.xlu0 %3932
      %v3934 = vperm.slane %v3724, 7
      %v3935 = vlaneseq
      %v3936 = vshrl.u32 %v3935, 7
      %3938 = vset.pattern.permute.xlu0 %v3936
      %3939 = vperm.xlu0 %3938, %v3934
      %v3940 = vpop.permute.xlu0 %3939
      %v3941 = vlaneseq
      %v3942 = vshrl.u32 %v3941, 7
      %v3943 = vadd.s32 %v3942, 8
      %3944 = vset.pattern.permute.xlu0 %v3943
      %3945 = vperm.xlu0 %3944, %v3934
      %v3946 = vpop.permute.xlu0 %3945
      %v3947 = vsub.f32 %v2345, %v3745
      %v3948 = vsub.f32 %v2347, %v3751
      %v3949 = vsub.f32 %v2375, %v3758
      %v3950 = vsub.f32 %v2377, %v3764
      %v3951 = vsub.f32 %v2405, %v3771
      %v3952 = vsub.f32 %v2407, %v3777
      %v3953 = vsub.f32 %v2435, %v3784
      %v3954 = vsub.f32 %v2437, %v3790
      %v3955 = vsub.f32 %v2465, %v3797
      %v3956 = vsub.f32 %v2467, %v3803
      %v3957 = vsub.f32 %v2495, %v3810
      %v3958 = vsub.f32 %v2497, %v3816
      %v3959 = vsub.f32 %v2525, %v3823
      %v3960 = vsub.f32 %v2527, %v3829
      %v3961 = vsub.f32 %v2555, %v3836
      %v3962 = vsub.f32 %v2557, %v3842
      %v3963 = vsub.f32 %v2585, %v3849
      %v3964 = vsub.f32 %v2587, %v3855
      %v3965 = vsub.f32 %v2615, %v3862
      %v3966 = vsub.f32 %v2617, %v3868
      %v3967 = vsub.f32 %v2645, %v3875
      %v3968 = vsub.f32 %v2647, %v3881
      %v3969 = vsub.f32 %v2675, %v3888
      %v3970 = vsub.f32 %v2677, %v3894
      %v3971 = vsub.f32 %v2705, %v3901
      %v3972 = vsub.f32 %v2707, %v3907
      %v3973 = vsub.f32 %v2735, %v3914
      %v3974 = vsub.f32 %v2737, %v3920
      %v3975 = vsub.f32 %v2765, %v3927
      %v3976 = vsub.f32 %v2767, %v3933
      %v3977 = vsub.f32 %v2795, %v3940
      %v3978 = vsub.f32 %v2797, %v3946
      %v3979 = vmul.f32 %v3947, 1.442695
      %v3980 = vpow.pop %v3979
      %v3981 = vmul.f32 %v3948, 1.442695
      %v3982 = vpow.pop %v3981
      %v3983 = vmul.f32 %v3949, 1.442695
      %v3984 = vpow.pop %v3983
      %v3985 = vmul.f32 %v3950, 1.442695
      %v3986 = vpow.pop %v3985
      %v3987 = vmul.f32 %v3951, 1.442695
      %v3988 = vpow.pop %v3987
      %v3989 = vmul.f32 %v3952, 1.442695
      %v3990 = vpow.pop %v3989
      %v3991 = vmul.f32 %v3953, 1.442695
      %v3992 = vpow.pop %v3991
      %v3993 = vmul.f32 %v3954, 1.442695
      %v3994 = vpow.pop %v3993
      %v3995 = vmul.f32 %v3955, 1.442695
      %v3996 = vpow.pop %v3995
      %v3997 = vmul.f32 %v3956, 1.442695
      %v3998 = vpow.pop %v3997
      %v3999 = vmul.f32 %v3957, 1.442695
      %v4000 = vpow.pop %v3999
      %v4001 = vmul.f32 %v3958, 1.442695
      %v4002 = vpow.pop %v4001
      %v4003 = vmul.f32 %v3959, 1.442695
      %v4004 = vpow.pop %v4003
      %v4005 = vmul.f32 %v3960, 1.442695
      %v4006 = vpow.pop %v4005
      %v4007 = vmul.f32 %v3961, 1.442695
      %v4008 = vpow.pop %v4007
      %v4009 = vmul.f32 %v3962, 1.442695
      %v4010 = vpow.pop %v4009
      %v4011 = vmul.f32 %v3963, 1.442695
      %v4012 = vpow.pop %v4011
      %v4013 = vmul.f32 %v3964, 1.442695
      %v4014 = vpow.pop %v4013
      %v4015 = vmul.f32 %v3965, 1.442695
      %v4016 = vpow.pop %v4015
      %v4017 = vmul.f32 %v3966, 1.442695
      %v4018 = vpow.pop %v4017
      %v4019 = vmul.f32 %v3967, 1.442695
      %v4020 = vpow.pop %v4019
      %v4021 = vmul.f32 %v3968, 1.442695
      %v4022 = vpow.pop %v4021
      %v4023 = vmul.f32 %v3969, 1.442695
      %v4024 = vpow.pop %v4023
      %v4025 = vmul.f32 %v3970, 1.442695
      %v4026 = vpow.pop %v4025
      %v4027 = vmul.f32 %v3971, 1.442695
      %v4028 = vpow.pop %v4027
      %v4029 = vmul.f32 %v3972, 1.442695
      %v4030 = vpow.pop %v4029
      %v4031 = vmul.f32 %v3973, 1.442695
      %v4032 = vpow.pop %v4031
      %v4033 = vmul.f32 %v3974, 1.442695
      %v4034 = vpow.pop %v4033
      %v4035 = vmul.f32 %v3975, 1.442695
      %v4036 = vpow.pop %v4035
      %v4037 = vmul.f32 %v3976, 1.442695
      %v4038 = vpow.pop %v4037
      %v4039 = vmul.f32 %v3977, 1.442695
      %v4040 = vpow.pop %v4039
      %v4041 = vmul.f32 %v3978, 1.442695
      %v4042 = vpow.pop %v4041
      %v4043 = vperm.slane %v3705, 0
      %v4044 = vlaneseq
      %v4045 = vshrl.u32 %v4044, 7
      %4047 = vset.pattern.permute.xlu0 %v4045
      %4048 = vperm.xlu0 %4047, %v4043
      %v4049 = vpop.permute.xlu0 %4048
      %v4050 = vlaneseq
      %v4051 = vshrl.u32 %v4050, 7
      %v4052 = vadd.s32 %v4051, 8
      %4053 = vset.pattern.permute.xlu0 %v4052
      %4054 = vperm.xlu0 %4053, %v4043
      %v4055 = vpop.permute.xlu0 %4054
      %v4056 = vperm.slane %v3705, 1
      %v4057 = vlaneseq
      %v4058 = vshrl.u32 %v4057, 7
      %4060 = vset.pattern.permute.xlu0 %v4058
      %4061 = vperm.xlu0 %4060, %v4056
      %v4062 = vpop.permute.xlu0 %4061
      %v4063 = vlaneseq
      %v4064 = vshrl.u32 %v4063, 7
      %v4065 = vadd.s32 %v4064, 8
      %4066 = vset.pattern.permute.xlu0 %v4065
      %4067 = vperm.xlu0 %4066, %v4056
      %v4068 = vpop.permute.xlu0 %4067
      %v4069 = vperm.slane %v3705, 2
      %v4070 = vlaneseq
      %v4071 = vshrl.u32 %v4070, 7
      %4073 = vset.pattern.permute.xlu0 %v4071
      %4074 = vperm.xlu0 %4073, %v4069
      %v4075 = vpop.permute.xlu0 %4074
      %v4076 = vlaneseq
      %v4077 = vshrl.u32 %v4076, 7
      %v4078 = vadd.s32 %v4077, 8
      %4079 = vset.pattern.permute.xlu0 %v4078
      %4080 = vperm.xlu0 %4079, %v4069
      %v4081 = vpop.permute.xlu0 %4080
      %v4082 = vperm.slane %v3705, 3
      %v4083 = vlaneseq
      %v4084 = vshrl.u32 %v4083, 7
      %4086 = vset.pattern.permute.xlu0 %v4084
      %4087 = vperm.xlu0 %4086, %v4082
      %v4088 = vpop.permute.xlu0 %4087
      %v4089 = vlaneseq
      %v4090 = vshrl.u32 %v4089, 7
      %v4091 = vadd.s32 %v4090, 8
      %4092 = vset.pattern.permute.xlu0 %v4091
      %4093 = vperm.xlu0 %4092, %v4082
      %v4094 = vpop.permute.xlu0 %4093
      %v4095 = vperm.slane %v3705, 4
      %v4096 = vlaneseq
      %v4097 = vshrl.u32 %v4096, 7
      %4099 = vset.pattern.permute.xlu0 %v4097
      %4100 = vperm.xlu0 %4099, %v4095
      %v4101 = vpop.permute.xlu0 %4100
      %v4102 = vlaneseq
      %v4103 = vshrl.u32 %v4102, 7
      %v4104 = vadd.s32 %v4103, 8
      %4105 = vset.pattern.permute.xlu0 %v4104
      %4106 = vperm.xlu0 %4105, %v4095
      %v4107 = vpop.permute.xlu0 %4106
      %v4108 = vperm.slane %v3705, 5
      %v4109 = vlaneseq
      %v4110 = vshrl.u32 %v4109, 7
      %4112 = vset.pattern.permute.xlu0 %v4110
      %4113 = vperm.xlu0 %4112, %v4108
      %v4114 = vpop.permute.xlu0 %4113
      %v4115 = vlaneseq
      %v4116 = vshrl.u32 %v4115, 7
      %v4117 = vadd.s32 %v4116, 8
      %4118 = vset.pattern.permute.xlu0 %v4117
      %4119 = vperm.xlu0 %4118, %v4108
      %v4120 = vpop.permute.xlu0 %4119
      %v4121 = vperm.slane %v3705, 6
      %v4122 = vlaneseq
      %v4123 = vshrl.u32 %v4122, 7
      %4125 = vset.pattern.permute.xlu0 %v4123
      %4126 = vperm.xlu0 %4125, %v4121
      %v4127 = vpop.permute.xlu0 %4126
      %v4128 = vlaneseq
      %v4129 = vshrl.u32 %v4128, 7
      %v4130 = vadd.s32 %v4129, 8
      %4131 = vset.pattern.permute.xlu0 %v4130
      %4132 = vperm.xlu0 %4131, %v4121
      %v4133 = vpop.permute.xlu0 %4132
      %v4134 = vperm.slane %v3705, 7
      %v4135 = vlaneseq
      %v4136 = vshrl.u32 %v4135, 7
      %4138 = vset.pattern.permute.xlu0 %v4136
      %4139 = vperm.xlu0 %4138, %v4134
      %v4140 = vpop.permute.xlu0 %4139
      %v4141 = vlaneseq
      %v4142 = vshrl.u32 %v4141, 7
      %v4143 = vadd.s32 %v4142, 8
      %4144 = vset.pattern.permute.xlu0 %v4143
      %4145 = vperm.xlu0 %4144, %v4134
      %v4146 = vpop.permute.xlu0 %4145
      %v4147 = vperm.slane %v3706, 0
      %v4148 = vlaneseq
      %v4149 = vshrl.u32 %v4148, 7
      %4151 = vset.pattern.permute.xlu0 %v4149
      %4152 = vperm.xlu0 %4151, %v4147
      %v4153 = vpop.permute.xlu0 %4152
      %v4154 = vlaneseq
      %v4155 = vshrl.u32 %v4154, 7
      %v4156 = vadd.s32 %v4155, 8
      %4157 = vset.pattern.permute.xlu0 %v4156
      %4158 = vperm.xlu0 %4157, %v4147
      %v4159 = vpop.permute.xlu0 %4158
      %v4160 = vperm.slane %v3706, 1
      %v4161 = vlaneseq
      %v4162 = vshrl.u32 %v4161, 7
      %4164 = vset.pattern.permute.xlu0 %v4162
      %4165 = vperm.xlu0 %4164, %v4160
      %v4166 = vpop.permute.xlu0 %4165
      %v4167 = vlaneseq
      %v4168 = vshrl.u32 %v4167, 7
      %v4169 = vadd.s32 %v4168, 8
      %4170 = vset.pattern.permute.xlu0 %v4169
      %4171 = vperm.xlu0 %4170, %v4160
      %v4172 = vpop.permute.xlu0 %4171
      %v4173 = vperm.slane %v3706, 2
      %v4174 = vlaneseq
      %v4175 = vshrl.u32 %v4174, 7
      %4177 = vset.pattern.permute.xlu0 %v4175
      %4178 = vperm.xlu0 %4177, %v4173
      %v4179 = vpop.permute.xlu0 %4178
      %v4180 = vlaneseq
      %v4181 = vshrl.u32 %v4180, 7
      %v4182 = vadd.s32 %v4181, 8
      %4183 = vset.pattern.permute.xlu0 %v4182
      %4184 = vperm.xlu0 %4183, %v4173
      %v4185 = vpop.permute.xlu0 %4184
      %v4186 = vperm.slane %v3706, 3
      %v4187 = vlaneseq
      %v4188 = vshrl.u32 %v4187, 7
      %4190 = vset.pattern.permute.xlu0 %v4188
      %4191 = vperm.xlu0 %4190, %v4186
      %v4192 = vpop.permute.xlu0 %4191
      %v4193 = vlaneseq
      %v4194 = vshrl.u32 %v4193, 7
      %v4195 = vadd.s32 %v4194, 8
      %4196 = vset.pattern.permute.xlu0 %v4195
      %4197 = vperm.xlu0 %4196, %v4186
      %v4198 = vpop.permute.xlu0 %4197
      %v4199 = vperm.slane %v3706, 4
      %v4200 = vlaneseq
      %v4201 = vshrl.u32 %v4200, 7
      %4203 = vset.pattern.permute.xlu0 %v4201
      %4204 = vperm.xlu0 %4203, %v4199
      %v4205 = vpop.permute.xlu0 %4204
      %v4206 = vlaneseq
      %v4207 = vshrl.u32 %v4206, 7
      %v4208 = vadd.s32 %v4207, 8
      %4209 = vset.pattern.permute.xlu0 %v4208
      %4210 = vperm.xlu0 %4209, %v4199
      %v4211 = vpop.permute.xlu0 %4210
      %v4212 = vperm.slane %v3706, 5
      %v4213 = vlaneseq
      %v4214 = vshrl.u32 %v4213, 7
      %4216 = vset.pattern.permute.xlu0 %v4214
      %4217 = vperm.xlu0 %4216, %v4212
      %v4218 = vpop.permute.xlu0 %4217
      %v4219 = vlaneseq
      %v4220 = vshrl.u32 %v4219, 7
      %v4221 = vadd.s32 %v4220, 8
      %4222 = vset.pattern.permute.xlu0 %v4221
      %4223 = vperm.xlu0 %4222, %v4212
      %v4224 = vpop.permute.xlu0 %4223
      %v4225 = vperm.slane %v3706, 6
      %v4226 = vlaneseq
      %v4227 = vshrl.u32 %v4226, 7
      %4229 = vset.pattern.permute.xlu0 %v4227
      %4230 = vperm.xlu0 %4229, %v4225
      %v4231 = vpop.permute.xlu0 %4230
      %v4232 = vlaneseq
      %v4233 = vshrl.u32 %v4232, 7
      %v4234 = vadd.s32 %v4233, 8
      %4235 = vset.pattern.permute.xlu0 %v4234
      %4236 = vperm.xlu0 %4235, %v4225
      %v4237 = vpop.permute.xlu0 %4236
      %v4238 = vperm.slane %v3706, 7
      %v4239 = vlaneseq
      %v4240 = vshrl.u32 %v4239, 7
      %4242 = vset.pattern.permute.xlu0 %v4240
      %4243 = vperm.xlu0 %4242, %v4238
      %v4244 = vpop.permute.xlu0 %4243
      %v4245 = vlaneseq
      %v4246 = vshrl.u32 %v4245, 7
      %v4247 = vadd.s32 %v4246, 8
      %4248 = vset.pattern.permute.xlu0 %v4247
      %4249 = vperm.xlu0 %4248, %v4238
      %v4250 = vpop.permute.xlu0 %4249
      %v4251 = vsub.f32 %v2825, %v4049
      %v4252 = vsub.f32 %v2827, %v4055
      %v4253 = vsub.f32 %v2855, %v4062
      %v4254 = vsub.f32 %v2857, %v4068
      %v4255 = vsub.f32 %v2885, %v4075
      %v4256 = vsub.f32 %v2887, %v4081
      %v4257 = vsub.f32 %v2915, %v4088
      %v4258 = vsub.f32 %v2917, %v4094
      %v4259 = vsub.f32 %v2945, %v4101
      %v4260 = vsub.f32 %v2947, %v4107
      %v4261 = vsub.f32 %v2975, %v4114
      %v4262 = vsub.f32 %v2977, %v4120
      %v4263 = vsub.f32 %v3005, %v4127
      %v4264 = vsub.f32 %v3007, %v4133
      %v4265 = vsub.f32 %v3035, %v4140
      %v4266 = vsub.f32 %v3037, %v4146
      %v4267 = vsub.f32 %v3065, %v4153
      %v4268 = vsub.f32 %v3067, %v4159
      %v4269 = vsub.f32 %v3095, %v4166
      %v4270 = vsub.f32 %v3097, %v4172
      %v4271 = vsub.f32 %v3125, %v4179
      %v4272 = vsub.f32 %v3127, %v4185
      %v4273 = vsub.f32 %v3155, %v4192
      %v4274 = vsub.f32 %v3157, %v4198
      %v4275 = vsub.f32 %v3185, %v4205
      %v4276 = vsub.f32 %v3187, %v4211
      %v4277 = vsub.f32 %v3215, %v4218
      %v4278 = vsub.f32 %v3217, %v4224
      %v4279 = vsub.f32 %v3245, %v4231
      %v4280 = vsub.f32 %v3247, %v4237
      %v4281 = vsub.f32 %v3275, %v4244
      %v4282 = vsub.f32 %v3277, %v4250
      %v4283 = vmul.f32 %v4251, 1.442695
      %v4284 = vpow.pop %v4283
      %v4285 = vmul.f32 %v4252, 1.442695
      %v4286 = vpow.pop %v4285
      %v4287 = vmul.f32 %v4253, 1.442695
      %v4288 = vpow.pop %v4287
      %v4289 = vmul.f32 %v4254, 1.442695
      %v4290 = vpow.pop %v4289
      %v4291 = vmul.f32 %v4255, 1.442695
      %v4292 = vpow.pop %v4291
      %v4293 = vmul.f32 %v4256, 1.442695
      %v4294 = vpow.pop %v4293
      %v4295 = vmul.f32 %v4257, 1.442695
      %v4296 = vpow.pop %v4295
      %v4297 = vmul.f32 %v4258, 1.442695
      %v4298 = vpow.pop %v4297
      %v4299 = vmul.f32 %v4259, 1.442695
      %v4300 = vpow.pop %v4299
      %v4301 = vmul.f32 %v4260, 1.442695
      %v4302 = vpow.pop %v4301
      %v4303 = vmul.f32 %v4261, 1.442695
      %v4304 = vpow.pop %v4303
      %v4305 = vmul.f32 %v4262, 1.442695
      %v4306 = vpow.pop %v4305
      %v4307 = vmul.f32 %v4263, 1.442695
      %v4308 = vpow.pop %v4307
      %v4309 = vmul.f32 %v4264, 1.442695
      %v4310 = vpow.pop %v4309
      %v4311 = vmul.f32 %v4265, 1.442695
      %v4312 = vpow.pop %v4311
      %v4313 = vmul.f32 %v4266, 1.442695
      %v4314 = vpow.pop %v4313
      %v4315 = vmul.f32 %v4267, 1.442695
      %v4316 = vpow.pop %v4315
      %v4317 = vmul.f32 %v4268, 1.442695
      %v4318 = vpow.pop %v4317
      %v4319 = vmul.f32 %v4269, 1.442695
      %v4320 = vpow.pop %v4319
      %v4321 = vmul.f32 %v4270, 1.442695
      %v4322 = vpow.pop %v4321
      %v4323 = vmul.f32 %v4271, 1.442695
      %v4324 = vpow.pop %v4323
      %v4325 = vmul.f32 %v4272, 1.442695
      %v4326 = vpow.pop %v4325
      %v4327 = vmul.f32 %v4273, 1.442695
      %v4328 = vpow.pop %v4327
      %v4329 = vmul.f32 %v4274, 1.442695
      %v4330 = vpow.pop %v4329
      %v4331 = vmul.f32 %v4275, 1.442695
      %v4332 = vpow.pop %v4331
      %v4333 = vmul.f32 %v4276, 1.442695
      %v4334 = vpow.pop %v4333
      %v4335 = vmul.f32 %v4277, 1.442695
      %v4336 = vpow.pop %v4335
      %v4337 = vmul.f32 %v4278, 1.442695
      %v4338 = vpow.pop %v4337
      %v4339 = vmul.f32 %v4279, 1.442695
      %v4340 = vpow.pop %v4339
      %v4341 = vmul.f32 %v4280, 1.442695
      %v4342 = vpow.pop %v4341
      %v4343 = vmul.f32 %v4281, 1.442695
      %v4344 = vpow.pop %v4343
      %v4345 = vmul.f32 %v4282, 1.442695
      %v4346 = vpow.pop %v4345
      %v4347 = vsel %vm3279, %v3980, 0.0
      %4348 = vadd.xlane.f32.xlu0 %v4347
      %v4349 = vpop.xlane.xlu0 %4348
      %v4350 = vsel %vm3279, %v3982, 0.0
      %4351 = vadd.xlane.f32.xlu0 %v4350
      %v4352 = vpop.xlane.xlu0 %4351
      %v4353 = vsel %vm3279, %v3984, 0.0
      %4354 = vadd.xlane.f32.xlu0 %v4353
      %v4355 = vpop.xlane.xlu0 %4354
      %v4356 = vsel %vm3279, %v3986, 0.0
      %4357 = vadd.xlane.f32.xlu0 %v4356
      %v4358 = vpop.xlane.xlu0 %4357
      %v4359 = vsel %vm3279, %v3988, 0.0
      %4360 = vadd.xlane.f32.xlu0 %v4359
      %v4361 = vpop.xlane.xlu0 %4360
      %v4362 = vsel %vm3279, %v3990, 0.0
      %4363 = vadd.xlane.f32.xlu0 %v4362
      %v4364 = vpop.xlane.xlu0 %4363
      %v4365 = vsel %vm3279, %v3992, 0.0
      %4366 = vadd.xlane.f32.xlu0 %v4365
      %v4367 = vpop.xlane.xlu0 %4366
      %v4368 = vsel %vm3279, %v3994, 0.0
      %4369 = vadd.xlane.f32.xlu0 %v4368
      %v4370 = vpop.xlane.xlu0 %4369
      %v4371 = vsel %vm3279, %v3996, 0.0
      %4372 = vadd.xlane.f32.xlu0 %v4371
      %v4373 = vpop.xlane.xlu0 %4372
      %v4374 = vsel %vm3279, %v3998, 0.0
      %4375 = vadd.xlane.f32.xlu0 %v4374
      %v4376 = vpop.xlane.xlu0 %4375
      %v4377 = vsel %vm3279, %v4000, 0.0
      %4378 = vadd.xlane.f32.xlu0 %v4377
      %v4379 = vpop.xlane.xlu0 %4378
      %v4380 = vsel %vm3279, %v4002, 0.0
      %4381 = vadd.xlane.f32.xlu0 %v4380
      %v4382 = vpop.xlane.xlu0 %4381
      %v4383 = vsel %vm3279, %v4004, 0.0
      %4384 = vadd.xlane.f32.xlu0 %v4383
      %v4385 = vpop.xlane.xlu0 %4384
      %v4386 = vsel %vm3279, %v4006, 0.0
      %4387 = vadd.xlane.f32.xlu0 %v4386
      %v4388 = vpop.xlane.xlu0 %4387
      %v4389 = vsel %vm3279, %v4008, 0.0
      %4390 = vadd.xlane.f32.xlu0 %v4389
      %v4391 = vpop.xlane.xlu0 %4390
      %v4392 = vsel %vm3279, %v4010, 0.0
      %4393 = vadd.xlane.f32.xlu0 %v4392
      %v4394 = vpop.xlane.xlu0 %4393
      %v4395 = vsel %vm3279, %v4012, 0.0
      %4396 = vadd.xlane.f32.xlu0 %v4395
      %v4397 = vpop.xlane.xlu0 %4396
      %v4398 = vsel %vm3279, %v4014, 0.0
      %4399 = vadd.xlane.f32.xlu0 %v4398
      %v4400 = vpop.xlane.xlu0 %4399
      %v4401 = vsel %vm3279, %v4016, 0.0
      %4402 = vadd.xlane.f32.xlu0 %v4401
      %v4403 = vpop.xlane.xlu0 %4402
      %v4404 = vsel %vm3279, %v4018, 0.0
      %4405 = vadd.xlane.f32.xlu0 %v4404
      %v4406 = vpop.xlane.xlu0 %4405
      %v4407 = vsel %vm3279, %v4020, 0.0
      %4408 = vadd.xlane.f32.xlu0 %v4407
      %v4409 = vpop.xlane.xlu0 %4408
      %v4410 = vsel %vm3279, %v4022, 0.0
      %4411 = vadd.xlane.f32.xlu0 %v4410
      %v4412 = vpop.xlane.xlu0 %4411
      %v4413 = vsel %vm3279, %v4024, 0.0
      %4414 = vadd.xlane.f32.xlu0 %v4413
      %v4415 = vpop.xlane.xlu0 %4414
      %v4416 = vsel %vm3279, %v4026, 0.0
      %4417 = vadd.xlane.f32.xlu0 %v4416
      %v4418 = vpop.xlane.xlu0 %4417
      %v4419 = vsel %vm3279, %v4028, 0.0
      %4420 = vadd.xlane.f32.xlu0 %v4419
      %v4421 = vpop.xlane.xlu0 %4420
      %v4422 = vsel %vm3279, %v4030, 0.0
      %4423 = vadd.xlane.f32.xlu0 %v4422
      %v4424 = vpop.xlane.xlu0 %4423
      %v4425 = vsel %vm3279, %v4032, 0.0
      %4426 = vadd.xlane.f32.xlu0 %v4425
      %v4427 = vpop.xlane.xlu0 %4426
      %v4428 = vsel %vm3279, %v4034, 0.0
      %4429 = vadd.xlane.f32.xlu0 %v4428
      %v4430 = vpop.xlane.xlu0 %4429
      %v4431 = vsel %vm3279, %v4036, 0.0
      %4432 = vadd.xlane.f32.xlu0 %v4431
      %v4433 = vpop.xlane.xlu0 %4432
      %v4434 = vsel %vm3279, %v4038, 0.0
      %4435 = vadd.xlane.f32.xlu0 %v4434
      %v4436 = vpop.xlane.xlu0 %4435
      %v4437 = vsel %vm3279, %v4040, 0.0
      %4438 = vadd.xlane.f32.xlu0 %v4437
      %v4439 = vpop.xlane.xlu0 %4438
      %v4440 = vsel %vm3279, %v4042, 0.0
      %4441 = vadd.xlane.f32.xlu0 %v4440
      %v4442 = vpop.xlane.xlu0 %4441
      %v4475 = vperm.slane %v4349, %v2313
      %v4476 = vperm.slane %v4352, %v3409
      %v4477 = vsel %vm3411, %v4476, %v4475
      %v4478 = vperm.slane %v4355, %v2313
      %v4479 = vperm.slane %v4358, %v3409
      %v4480 = vsel %vm3411, %v4479, %v4478
      %v4481 = vperm.slane %v4361, %v2313
      %v4482 = vperm.slane %v4364, %v3409
      %v4483 = vsel %vm3411, %v4482, %v4481
      %v4484 = vperm.slane %v4367, %v2313
      %v4485 = vperm.slane %v4370, %v3409
      %v4486 = vsel %vm3411, %v4485, %v4484
      %v4487 = vperm.slane %v4373, %v2313
      %v4488 = vperm.slane %v4376, %v3409
      %v4489 = vsel %vm3411, %v4488, %v4487
      %v4490 = vperm.slane %v4379, %v2313
      %v4491 = vperm.slane %v4382, %v3409
      %v4492 = vsel %vm3411, %v4491, %v4490
      %v4493 = vperm.slane %v4385, %v2313
      %v4494 = vperm.slane %v4388, %v3409
      %v4495 = vsel %vm3411, %v4494, %v4493
      %v4496 = vperm.slane %v4391, %v2313
      %v4497 = vperm.slane %v4394, %v3409
      %v4498 = vsel %vm3411, %v4497, %v4496
      %v4499 = vperm.slane %v4397, %v2313
      %v4500 = vperm.slane %v4400, %v3409
      %v4501 = vsel %vm3411, %v4500, %v4499
      %v4502 = vperm.slane %v4403, %v2313
      %v4503 = vperm.slane %v4406, %v3409
      %v4504 = vsel %vm3411, %v4503, %v4502
      %v4505 = vperm.slane %v4409, %v2313
      %v4506 = vperm.slane %v4412, %v3409
      %v4507 = vsel %vm3411, %v4506, %v4505
      %v4508 = vperm.slane %v4415, %v2313
      %v4509 = vperm.slane %v4418, %v3409
      %v4510 = vsel %vm3411, %v4509, %v4508
      %v4511 = vperm.slane %v4421, %v2313
      %v4512 = vperm.slane %v4424, %v3409
      %v4513 = vsel %vm3411, %v4512, %v4511
      %v4514 = vperm.slane %v4427, %v2313
      %v4515 = vperm.slane %v4430, %v3409
      %v4516 = vsel %vm3411, %v4515, %v4514
      %v4517 = vperm.slane %v4433, %v2313
      %v4518 = vperm.slane %v4436, %v3409
      %v4519 = vsel %vm3411, %v4518, %v4517
      %v4520 = vperm.slane %v4439, %v2313
      %v4521 = vperm.slane %v4442, %v3409
      %v4522 = vsel %vm3411, %v4521, %v4520
      %v4523 = vsel %vm3458, %v4480, %v4477
      %v4524 = vsel %vm3460, %v4483, %v4523
      %v4525 = vsel %vm3462, %v4486, %v4524
      %v4526 = vsel %vm3464, %v4489, %v4525
      %v4527 = vsel %vm3466, %v4492, %v4526
      %v4528 = vsel %vm3468, %v4495, %v4527
      %v4529 = vsel %vm3470, %v4498, %v4528
      %v4530 = vsel %vm3458, %v4504, %v4501
      %v4531 = vsel %vm3460, %v4507, %v4530
      %v4532 = vsel %vm3462, %v4510, %v4531
      %v4533 = vsel %vm3464, %v4513, %v4532
      %v4534 = vsel %vm3466, %v4516, %v4533
      %v4535 = vsel %vm3468, %v4519, %v4534
      %v4536 = vsel %vm3470, %v4522, %v4535
      %4539 = vxpose.xlu0.b32.start [1/16] %v4529, 128
      %4540 = vxpose.xlu0.b32.cont [2/16] %v4536, 128
      %4541 = vxpose.xlu0.b32.cont [3/16] 0.0, 128
      %4542 = vxpose.xlu0.b32.cont [4/16] 0.0, 128
      %4543 = vxpose.xlu0.b32.cont [5/16] 0.0, 128
      %4544 = vxpose.xlu0.b32.cont [6/16] 0.0, 128
      %4545 = vxpose.xlu0.b32.cont [7/16] 0.0, 128
      %4546 = vxpose.xlu0.b32.cont [8/16] 0.0, 128
      %4547 = vxpose.xlu0.b32.cont [9/16] 0.0, 128
      %4548 = vxpose.xlu0.b32.cont [10/16] 0.0, 128
      %4549 = vxpose.xlu0.b32.cont [11/16] 0.0, 128
      %4550 = vxpose.xlu0.b32.cont [12/16] 0.0, 128
      %4551 = vxpose.xlu0.b32.cont [13/16] 0.0, 128
      %4552 = vxpose.xlu0.b32.cont [14/16] 0.0, 128
      %4553 = vxpose.xlu0.b32.cont [15/16] 0.0, 128
      %4554 = vxpose.xlu0.b32.end [16/16] 0.0, 128
      %v4555 = vpop.trf.xlu0
      %v4556 = vpop.trf.xlu0
      %v4557 = vpop.trf.xlu0
      %v4558 = vpop.trf.xlu0
      %v4559 = vpop.trf.xlu0
      %v4560 = vpop.trf.xlu0
      %v4561 = vpop.trf.xlu0
      %v4562 = vpop.trf.xlu0
      %v4563 = vpop.trf.xlu0
      %v4564 = vpop.trf.xlu0
      %v4565 = vpop.trf.xlu0
      %v4566 = vpop.trf.xlu0
      %v4567 = vpop.trf.xlu0
      %v4568 = vpop.trf.xlu0
      %v4569 = vpop.trf.xlu0
      %v4570 = vpop.trf.xlu0
      %v4571 = vsel %vm3279, %v4284, 0.0
      %4572 = vadd.xlane.f32.xlu0 %v4571
      %v4573 = vpop.xlane.xlu0 %4572
      %v4574 = vsel %vm3279, %v4286, 0.0
      %4575 = vadd.xlane.f32.xlu0 %v4574
      %v4576 = vpop.xlane.xlu0 %4575
      %v4577 = vsel %vm3279, %v4288, 0.0
      %4578 = vadd.xlane.f32.xlu0 %v4577
      %v4579 = vpop.xlane.xlu0 %4578
      %v4580 = vsel %vm3279, %v4290, 0.0
      %4581 = vadd.xlane.f32.xlu0 %v4580
      %v4582 = vpop.xlane.xlu0 %4581
      %v4583 = vsel %vm3279, %v4292, 0.0
      %4584 = vadd.xlane.f32.xlu0 %v4583
      %v4585 = vpop.xlane.xlu0 %4584
      %v4586 = vsel %vm3279, %v4294, 0.0
      %4587 = vadd.xlane.f32.xlu0 %v4586
      %v4588 = vpop.xlane.xlu0 %4587
      %v4589 = vsel %vm3279, %v4296, 0.0
      %4590 = vadd.xlane.f32.xlu0 %v4589
      %v4591 = vpop.xlane.xlu0 %4590
      %v4592 = vsel %vm3279, %v4298, 0.0
      %4593 = vadd.xlane.f32.xlu0 %v4592
      %v4594 = vpop.xlane.xlu0 %4593
      %v4595 = vsel %vm3279, %v4300, 0.0
      %4596 = vadd.xlane.f32.xlu0 %v4595
      %v4597 = vpop.xlane.xlu0 %4596
      %v4598 = vsel %vm3279, %v4302, 0.0
      %4599 = vadd.xlane.f32.xlu0 %v4598
      %v4600 = vpop.xlane.xlu0 %4599
      %v4601 = vsel %vm3279, %v4304, 0.0
      %4602 = vadd.xlane.f32.xlu0 %v4601
      %v4603 = vpop.xlane.xlu0 %4602
      %v4604 = vsel %vm3279, %v4306, 0.0
      %4605 = vadd.xlane.f32.xlu0 %v4604
      %v4606 = vpop.xlane.xlu0 %4605
      %v4607 = vsel %vm3279, %v4308, 0.0
      %4608 = vadd.xlane.f32.xlu0 %v4607
      %v4609 = vpop.xlane.xlu0 %4608
      %v4610 = vsel %vm3279, %v4310, 0.0
      %4611 = vadd.xlane.f32.xlu0 %v4610
      %v4612 = vpop.xlane.xlu0 %4611
      %v4613 = vsel %vm3279, %v4312, 0.0
      %4614 = vadd.xlane.f32.xlu0 %v4613
      %v4615 = vpop.xlane.xlu0 %4614
      %v4616 = vsel %vm3279, %v4314, 0.0
      %4617 = vadd.xlane.f32.xlu0 %v4616
      %v4618 = vpop.xlane.xlu0 %4617
      %v4619 = vsel %vm3279, %v4316, 0.0
      %4620 = vadd.xlane.f32.xlu0 %v4619
      %v4621 = vpop.xlane.xlu0 %4620
      %v4622 = vsel %vm3279, %v4318, 0.0
      %4623 = vadd.xlane.f32.xlu0 %v4622
      %v4624 = vpop.xlane.xlu0 %4623
      %v4625 = vsel %vm3279, %v4320, 0.0
      %4626 = vadd.xlane.f32.xlu0 %v4625
      %v4627 = vpop.xlane.xlu0 %4626
      %v4628 = vsel %vm3279, %v4322, 0.0
      %4629 = vadd.xlane.f32.xlu0 %v4628
      %v4630 = vpop.xlane.xlu0 %4629
      %v4631 = vsel %vm3279, %v4324, 0.0
      %4632 = vadd.xlane.f32.xlu0 %v4631
      %v4633 = vpop.xlane.xlu0 %4632
      %v4634 = vsel %vm3279, %v4326, 0.0
      %4635 = vadd.xlane.f32.xlu0 %v4634
      %v4636 = vpop.xlane.xlu0 %4635
      %v4637 = vsel %vm3279, %v4328, 0.0
      %4638 = vadd.xlane.f32.xlu0 %v4637
      %v4639 = vpop.xlane.xlu0 %4638
      %v4640 = vsel %vm3279, %v4330, 0.0
      %4641 = vadd.xlane.f32.xlu0 %v4640
      %v4642 = vpop.xlane.xlu0 %4641
      %v4643 = vsel %vm3279, %v4332, 0.0
      %4644 = vadd.xlane.f32.xlu0 %v4643
      %v4645 = vpop.xlane.xlu0 %4644
      %v4646 = vsel %vm3279, %v4334, 0.0
      %4647 = vadd.xlane.f32.xlu0 %v4646
      %v4648 = vpop.xlane.xlu0 %4647
      %v4649 = vsel %vm3279, %v4336, 0.0
      %4650 = vadd.xlane.f32.xlu0 %v4649
      %v4651 = vpop.xlane.xlu0 %4650
      %v4652 = vsel %vm3279, %v4338, 0.0
      %4653 = vadd.xlane.f32.xlu0 %v4652
      %v4654 = vpop.xlane.xlu0 %4653
      %v4655 = vsel %vm3279, %v4340, 0.0
      %4656 = vadd.xlane.f32.xlu0 %v4655
      %v4657 = vpop.xlane.xlu0 %4656
      %v4658 = vsel %vm3279, %v4342, 0.0
      %4659 = vadd.xlane.f32.xlu0 %v4658
      %v4660 = vpop.xlane.xlu0 %4659
      %v4661 = vsel %vm3279, %v4344, 0.0
      %4662 = vadd.xlane.f32.xlu0 %v4661
      %v4663 = vpop.xlane.xlu0 %4662
      %v4664 = vsel %vm3279, %v4346, 0.0
      %4665 = vadd.xlane.f32.xlu0 %v4664
      %v4666 = vpop.xlane.xlu0 %4665
      %v4699 = vperm.slane %v4573, %v2313
      %v4700 = vperm.slane %v4576, %v3409
      %v4701 = vsel %vm3411, %v4700, %v4699
      %v4702 = vperm.slane %v4579, %v2313
      %v4703 = vperm.slane %v4582, %v3409
      %v4704 = vsel %vm3411, %v4703, %v4702
      %v4705 = vperm.slane %v4585, %v2313
      %v4706 = vperm.slane %v4588, %v3409
      %v4707 = vsel %vm3411, %v4706, %v4705
      %v4708 = vperm.slane %v4591, %v2313
      %v4709 = vperm.slane %v4594, %v3409
      %v4710 = vsel %vm3411, %v4709, %v4708
      %v4711 = vperm.slane %v4597, %v2313
      %v4712 = vperm.slane %v4600, %v3409
      %v4713 = vsel %vm3411, %v4712, %v4711
      %v4714 = vperm.slane %v4603, %v2313
      %v4715 = vperm.slane %v4606, %v3409
      %v4716 = vsel %vm3411, %v4715, %v4714
      %v4717 = vperm.slane %v4609, %v2313
      %v4718 = vperm.slane %v4612, %v3409
      %v4719 = vsel %vm3411, %v4718, %v4717
      %v4720 = vperm.slane %v4615, %v2313
      %v4721 = vperm.slane %v4618, %v3409
      %v4722 = vsel %vm3411, %v4721, %v4720
      %v4723 = vperm.slane %v4621, %v2313
      %v4724 = vperm.slane %v4624, %v3409
      %v4725 = vsel %vm3411, %v4724, %v4723
      %v4726 = vperm.slane %v4627, %v2313
      %v4727 = vperm.slane %v4630, %v3409
      %v4728 = vsel %vm3411, %v4727, %v4726
      %v4729 = vperm.slane %v4633, %v2313
      %v4730 = vperm.slane %v4636, %v3409
      %v4731 = vsel %vm3411, %v4730, %v4729
      %v4732 = vperm.slane %v4639, %v2313
      %v4733 = vperm.slane %v4642, %v3409
      %v4734 = vsel %vm3411, %v4733, %v4732
      %v4735 = vperm.slane %v4645, %v2313
      %v4736 = vperm.slane %v4648, %v3409
      %v4737 = vsel %vm3411, %v4736, %v4735
      %v4738 = vperm.slane %v4651, %v2313
      %v4739 = vperm.slane %v4654, %v3409
      %v4740 = vsel %vm3411, %v4739, %v4738
      %v4741 = vperm.slane %v4657, %v2313
      %v4742 = vperm.slane %v4660, %v3409
      %v4743 = vsel %vm3411, %v4742, %v4741
      %v4744 = vperm.slane %v4663, %v2313
      %v4745 = vperm.slane %v4666, %v3409
      %v4746 = vsel %vm3411, %v4745, %v4744
      %v4747 = vsel %vm3458, %v4704, %v4701
      %v4748 = vsel %vm3460, %v4707, %v4747
      %v4749 = vsel %vm3462, %v4710, %v4748
      %v4750 = vsel %vm3464, %v4713, %v4749
      %v4751 = vsel %vm3466, %v4716, %v4750
      %v4752 = vsel %vm3468, %v4719, %v4751
      %v4753 = vsel %vm3470, %v4722, %v4752
      %v4754 = vsel %vm3458, %v4728, %v4725
      %v4755 = vsel %vm3460, %v4731, %v4754
      %v4756 = vsel %vm3462, %v4734, %v4755
      %v4757 = vsel %vm3464, %v4737, %v4756
      %v4758 = vsel %vm3466, %v4740, %v4757
      %v4759 = vsel %vm3468, %v4743, %v4758
      %v4760 = vsel %vm3470, %v4746, %v4759
      %v4763 = vadd.f32 %v4555, %v4753
      %v4764 = vadd.f32 %v4556, %v4760
      %v4765 = vrcp.pop %v4763
      %v4766 = vrcp.pop %v4764
      %4767 = vxpose.xlu0.b32.start [1/16] %v4765, 128
      %4768 = vxpose.xlu0.b32.cont [2/16] %v4766, 128
      %4769 = vxpose.xlu0.b32.cont [3/16] 0.0, 128
      %4770 = vxpose.xlu0.b32.cont [4/16] 0.0, 128
      %4771 = vxpose.xlu0.b32.cont [5/16] 0.0, 128
      %4772 = vxpose.xlu0.b32.cont [6/16] 0.0, 128
      %4773 = vxpose.xlu0.b32.cont [7/16] 0.0, 128
      %4774 = vxpose.xlu0.b32.cont [8/16] 0.0, 128
      %4775 = vxpose.xlu0.b32.cont [9/16] 0.0, 128
      %4776 = vxpose.xlu0.b32.cont [10/16] 0.0, 128
      %4777 = vxpose.xlu0.b32.cont [11/16] 0.0, 128
      %4778 = vxpose.xlu0.b32.cont [12/16] 0.0, 128
      %4779 = vxpose.xlu0.b32.cont [13/16] 0.0, 128
      %4780 = vxpose.xlu0.b32.cont [14/16] 0.0, 128
      %4781 = vxpose.xlu0.b32.cont [15/16] 0.0, 128
      %4782 = vxpose.xlu0.b32.end [16/16] 0.0, 128
      %v4783 = vpop.trf.xlu0
      %v4784 = vpop.trf.xlu0
      %v4785 = vpop.trf.xlu0
      %v4786 = vpop.trf.xlu0
      %v4787 = vpop.trf.xlu0
      %v4788 = vpop.trf.xlu0
      %v4789 = vpop.trf.xlu0
      %v4790 = vpop.trf.xlu0
      %v4791 = vpop.trf.xlu0
      %v4792 = vpop.trf.xlu0
      %v4793 = vpop.trf.xlu0
      %v4794 = vpop.trf.xlu0
      %v4795 = vpop.trf.xlu0
      %v4796 = vpop.trf.xlu0
      %v4797 = vpop.trf.xlu0
      %v4798 = vpop.trf.xlu0
      %v4799 = vperm.slane %v4783, 0
      %v4800 = vlaneseq
      %v4801 = vshrl.u32 %v4800, 7
      %4803 = vset.pattern.permute.xlu0 %v4801
      %4804 = vperm.xlu0 %4803, %v4799
      %v4805 = vpop.permute.xlu0 %4804
      %v4806 = vlaneseq
      %v4807 = vshrl.u32 %v4806, 7
      %v4808 = vadd.s32 %v4807, 8
      %4809 = vset.pattern.permute.xlu0 %v4808
      %4810 = vperm.xlu0 %4809, %v4799
      %v4811 = vpop.permute.xlu0 %4810
      %v4812 = vperm.slane %v4783, 1
      %v4813 = vlaneseq
      %v4814 = vshrl.u32 %v4813, 7
      %4816 = vset.pattern.permute.xlu0 %v4814
      %4817 = vperm.xlu0 %4816, %v4812
      %v4818 = vpop.permute.xlu0 %4817
      %v4819 = vlaneseq
      %v4820 = vshrl.u32 %v4819, 7
      %v4821 = vadd.s32 %v4820, 8
      %4822 = vset.pattern.permute.xlu0 %v4821
      %4823 = vperm.xlu0 %4822, %v4812
      %v4824 = vpop.permute.xlu0 %4823
      %v4825 = vperm.slane %v4783, 2
      %v4826 = vlaneseq
      %v4827 = vshrl.u32 %v4826, 7
      %4829 = vset.pattern.permute.xlu0 %v4827
      %4830 = vperm.xlu0 %4829, %v4825
      %v4831 = vpop.permute.xlu0 %4830
      %v4832 = vlaneseq
      %v4833 = vshrl.u32 %v4832, 7
      %v4834 = vadd.s32 %v4833, 8
      %4835 = vset.pattern.permute.xlu0 %v4834
      %4836 = vperm.xlu0 %4835, %v4825
      %v4837 = vpop.permute.xlu0 %4836
      %v4838 = vperm.slane %v4783, 3
      %v4839 = vlaneseq
      %v4840 = vshrl.u32 %v4839, 7
      %4842 = vset.pattern.permute.xlu0 %v4840
      %4843 = vperm.xlu0 %4842, %v4838
      %v4844 = vpop.permute.xlu0 %4843
      %v4845 = vlaneseq
      %v4846 = vshrl.u32 %v4845, 7
      %v4847 = vadd.s32 %v4846, 8
      %4848 = vset.pattern.permute.xlu0 %v4847
      %4849 = vperm.xlu0 %4848, %v4838
      %v4850 = vpop.permute.xlu0 %4849
      %v4851 = vperm.slane %v4783, 4
      %v4852 = vlaneseq
      %v4853 = vshrl.u32 %v4852, 7
      %4855 = vset.pattern.permute.xlu0 %v4853
      %4856 = vperm.xlu0 %4855, %v4851
      %v4857 = vpop.permute.xlu0 %4856
      %v4858 = vlaneseq
      %v4859 = vshrl.u32 %v4858, 7
      %v4860 = vadd.s32 %v4859, 8
      %4861 = vset.pattern.permute.xlu0 %v4860
      %4862 = vperm.xlu0 %4861, %v4851
      %v4863 = vpop.permute.xlu0 %4862
      %v4864 = vperm.slane %v4783, 5
      %v4865 = vlaneseq
      %v4866 = vshrl.u32 %v4865, 7
      %4868 = vset.pattern.permute.xlu0 %v4866
      %4869 = vperm.xlu0 %4868, %v4864
      %v4870 = vpop.permute.xlu0 %4869
      %v4871 = vlaneseq
      %v4872 = vshrl.u32 %v4871, 7
      %v4873 = vadd.s32 %v4872, 8
      %4874 = vset.pattern.permute.xlu0 %v4873
      %4875 = vperm.xlu0 %4874, %v4864
      %v4876 = vpop.permute.xlu0 %4875
      %v4877 = vperm.slane %v4783, 6
      %v4878 = vlaneseq
      %v4879 = vshrl.u32 %v4878, 7
      %4881 = vset.pattern.permute.xlu0 %v4879
      %4882 = vperm.xlu0 %4881, %v4877
      %v4883 = vpop.permute.xlu0 %4882
      %v4884 = vlaneseq
      %v4885 = vshrl.u32 %v4884, 7
      %v4886 = vadd.s32 %v4885, 8
      %4887 = vset.pattern.permute.xlu0 %v4886
      %4888 = vperm.xlu0 %4887, %v4877
      %v4889 = vpop.permute.xlu0 %4888
      %v4890 = vperm.slane %v4783, 7
      %v4891 = vlaneseq
      %v4892 = vshrl.u32 %v4891, 7
      %4894 = vset.pattern.permute.xlu0 %v4892
      %4895 = vperm.xlu0 %4894, %v4890
      %v4896 = vpop.permute.xlu0 %4895
      %v4897 = vlaneseq
      %v4898 = vshrl.u32 %v4897, 7
      %v4899 = vadd.s32 %v4898, 8
      %4900 = vset.pattern.permute.xlu0 %v4899
      %4901 = vperm.xlu0 %4900, %v4890
      %v4902 = vpop.permute.xlu0 %4901
      %v4903 = vperm.slane %v4784, 0
      %v4904 = vlaneseq
      %v4905 = vshrl.u32 %v4904, 7
      %4907 = vset.pattern.permute.xlu0 %v4905
      %4908 = vperm.xlu0 %4907, %v4903
      %v4909 = vpop.permute.xlu0 %4908
      %v4910 = vlaneseq
      %v4911 = vshrl.u32 %v4910, 7
      %v4912 = vadd.s32 %v4911, 8
      %4913 = vset.pattern.permute.xlu0 %v4912
      %4914 = vperm.xlu0 %4913, %v4903
      %v4915 = vpop.permute.xlu0 %4914
      %v4916 = vperm.slane %v4784, 1
      %v4917 = vlaneseq
      %v4918 = vshrl.u32 %v4917, 7
      %4920 = vset.pattern.permute.xlu0 %v4918
      %4921 = vperm.xlu0 %4920, %v4916
      %v4922 = vpop.permute.xlu0 %4921
      %v4923 = vlaneseq
      %v4924 = vshrl.u32 %v4923, 7
      %v4925 = vadd.s32 %v4924, 8
      %4926 = vset.pattern.permute.xlu0 %v4925
      %4927 = vperm.xlu0 %4926, %v4916
      %v4928 = vpop.permute.xlu0 %4927
      %v4929 = vperm.slane %v4784, 2
      %v4930 = vlaneseq
      %v4931 = vshrl.u32 %v4930, 7
      %4933 = vset.pattern.permute.xlu0 %v4931
      %4934 = vperm.xlu0 %4933, %v4929
      %v4935 = vpop.permute.xlu0 %4934
      %v4936 = vlaneseq
      %v4937 = vshrl.u32 %v4936, 7
      %v4938 = vadd.s32 %v4937, 8
      %4939 = vset.pattern.permute.xlu0 %v4938
      %4940 = vperm.xlu0 %4939, %v4929
      %v4941 = vpop.permute.xlu0 %4940
      %v4942 = vperm.slane %v4784, 3
      %v4943 = vlaneseq
      %v4944 = vshrl.u32 %v4943, 7
      %4946 = vset.pattern.permute.xlu0 %v4944
      %4947 = vperm.xlu0 %4946, %v4942
      %v4948 = vpop.permute.xlu0 %4947
      %v4949 = vlaneseq
      %v4950 = vshrl.u32 %v4949, 7
      %v4951 = vadd.s32 %v4950, 8
      %4952 = vset.pattern.permute.xlu0 %v4951
      %4953 = vperm.xlu0 %4952, %v4942
      %v4954 = vpop.permute.xlu0 %4953
      %v4955 = vperm.slane %v4784, 4
      %v4956 = vlaneseq
      %v4957 = vshrl.u32 %v4956, 7
      %4959 = vset.pattern.permute.xlu0 %v4957
      %4960 = vperm.xlu0 %4959, %v4955
      %v4961 = vpop.permute.xlu0 %4960
      %v4962 = vlaneseq
      %v4963 = vshrl.u32 %v4962, 7
      %v4964 = vadd.s32 %v4963, 8
      %4965 = vset.pattern.permute.xlu0 %v4964
      %4966 = vperm.xlu0 %4965, %v4955
      %v4967 = vpop.permute.xlu0 %4966
      %v4968 = vperm.slane %v4784, 5
      %v4969 = vlaneseq
      %v4970 = vshrl.u32 %v4969, 7
      %4972 = vset.pattern.permute.xlu0 %v4970
      %4973 = vperm.xlu0 %4972, %v4968
      %v4974 = vpop.permute.xlu0 %4973
      %v4975 = vlaneseq
      %v4976 = vshrl.u32 %v4975, 7
      %v4977 = vadd.s32 %v4976, 8
      %4978 = vset.pattern.permute.xlu0 %v4977
      %4979 = vperm.xlu0 %4978, %v4968
      %v4980 = vpop.permute.xlu0 %4979
      %v4981 = vperm.slane %v4784, 6
      %v4982 = vlaneseq
      %v4983 = vshrl.u32 %v4982, 7
      %4985 = vset.pattern.permute.xlu0 %v4983
      %4986 = vperm.xlu0 %4985, %v4981
      %v4987 = vpop.permute.xlu0 %4986
      %v4988 = vlaneseq
      %v4989 = vshrl.u32 %v4988, 7
      %v4990 = vadd.s32 %v4989, 8
      %4991 = vset.pattern.permute.xlu0 %v4990
      %4992 = vperm.xlu0 %4991, %v4981
      %v4993 = vpop.permute.xlu0 %4992
      %v4994 = vperm.slane %v4784, 7
      %v4995 = vlaneseq
      %v4996 = vshrl.u32 %v4995, 7
      %4998 = vset.pattern.permute.xlu0 %v4996
      %4999 = vperm.xlu0 %4998, %v4994
      %v5000 = vpop.permute.xlu0 %4999
      %v5001 = vlaneseq
      %v5002 = vshrl.u32 %v5001, 7
      %v5003 = vadd.s32 %v5002, 8
      %5004 = vset.pattern.permute.xlu0 %v5003
      %5005 = vperm.xlu0 %5004, %v4994
      %v5006 = vpop.permute.xlu0 %5005
      %v5007 = vmul.f32 %v3980, %v4805
      %v5008 = vmul.f32 %v3982, %v4811
      %v5009 = vmul.f32 %v3984, %v4818
      %v5010 = vmul.f32 %v3986, %v4824
      %v5011 = vmul.f32 %v3988, %v4831
      %v5012 = vmul.f32 %v3990, %v4837
      %v5013 = vmul.f32 %v3992, %v4844
      %v5014 = vmul.f32 %v3994, %v4850
      %v5015 = vmul.f32 %v3996, %v4857
      %v5016 = vmul.f32 %v3998, %v4863
      %v5017 = vmul.f32 %v4000, %v4870
      %v5018 = vmul.f32 %v4002, %v4876
      %v5019 = vmul.f32 %v4004, %v4883
      %v5020 = vmul.f32 %v4006, %v4889
      %v5021 = vmul.f32 %v4008, %v4896
      %v5022 = vmul.f32 %v4010, %v4902
      %v5023 = vmul.f32 %v4012, %v4909
      %v5024 = vmul.f32 %v4014, %v4915
      %v5025 = vmul.f32 %v4016, %v4922
      %v5026 = vmul.f32 %v4018, %v4928
      %v5027 = vmul.f32 %v4020, %v4935
      %v5028 = vmul.f32 %v4022, %v4941
      %v5029 = vmul.f32 %v4024, %v4948
      %v5030 = vmul.f32 %v4026, %v4954
      %v5031 = vmul.f32 %v4028, %v4961
      %v5032 = vmul.f32 %v4030, %v4967
      %v5033 = vmul.f32 %v4032, %v4974
      %v5034 = vmul.f32 %v4034, %v4980
      %v5035 = vmul.f32 %v4036, %v4987
      %v5036 = vmul.f32 %v4038, %v4993
      %v5037 = vmul.f32 %v4040, %v5000
      %v5038 = vmul.f32 %v4042, %v5006
      %v5039 = vpack.c.bf16 %v5007, %v5007
      %v5040 = vpack.c.bf16 %v5008, %v5008
      %v5041 = vpack.c.bf16 %v5009, %v5009
      %v5042 = vpack.c.bf16 %v5010, %v5010
      %v5043 = vpack.c.bf16 %v5011, %v5011
      %v5044 = vpack.c.bf16 %v5012, %v5012
      %v5045 = vpack.c.bf16 %v5013, %v5013
      %v5046 = vpack.c.bf16 %v5014, %v5014
      %v5047 = vpack.c.bf16 %v5015, %v5015
      %v5048 = vpack.c.bf16 %v5016, %v5016
      %v5049 = vpack.c.bf16 %v5017, %v5017
      %v5050 = vpack.c.bf16 %v5018, %v5018
      %v5051 = vpack.c.bf16 %v5019, %v5019
      %v5052 = vpack.c.bf16 %v5020, %v5020
      %v5053 = vpack.c.bf16 %v5021, %v5021
      %v5054 = vpack.c.bf16 %v5022, %v5022
      %v5055 = vpack.c.bf16 %v5023, %v5023
      %v5056 = vpack.c.bf16 %v5024, %v5024
      %v5057 = vpack.c.bf16 %v5025, %v5025
      %v5058 = vpack.c.bf16 %v5026, %v5026
      %v5059 = vpack.c.bf16 %v5027, %v5027
      %v5060 = vpack.c.bf16 %v5028, %v5028
      %v5061 = vpack.c.bf16 %v5029, %v5029
      %v5062 = vpack.c.bf16 %v5030, %v5030
      %v5063 = vpack.c.bf16 %v5031, %v5031
      %v5064 = vpack.c.bf16 %v5032, %v5032
      %v5065 = vpack.c.bf16 %v5033, %v5033
      %v5066 = vpack.c.bf16 %v5034, %v5034
      %v5067 = vpack.c.bf16 %v5035, %v5035
      %v5068 = vpack.c.bf16 %v5036, %v5036
      %v5069 = vpack.c.bf16 %v5037, %v5037
      %v5070 = vpack.c.bf16 %v5038, %v5038
      %v5071 = vperm.slane %v4765, 0
      %v5072 = vlaneseq
      %v5073 = vshrl.u32 %v5072, 7
      %5075 = vset.pattern.permute.xlu0 %v5073
      %5076 = vperm.xlu0 %5075, %v5071
      %v5077 = vpop.permute.xlu0 %5076
      %v5078 = vlaneseq
      %v5079 = vshrl.u32 %v5078, 7
      %v5080 = vadd.s32 %v5079, 8
      %5081 = vset.pattern.permute.xlu0 %v5080
      %5082 = vperm.xlu0 %5081, %v5071
      %v5083 = vpop.permute.xlu0 %5082
      %v5084 = vperm.slane %v4765, 1
      %v5085 = vlaneseq
      %v5086 = vshrl.u32 %v5085, 7
      %5088 = vset.pattern.permute.xlu0 %v5086
      %5089 = vperm.xlu0 %5088, %v5084
      %v5090 = vpop.permute.xlu0 %5089
      %v5091 = vlaneseq
      %v5092 = vshrl.u32 %v5091, 7
      %v5093 = vadd.s32 %v5092, 8
      %5094 = vset.pattern.permute.xlu0 %v5093
      %5095 = vperm.xlu0 %5094, %v5084
      %v5096 = vpop.permute.xlu0 %5095
      %v5097 = vperm.slane %v4765, 2
      %v5098 = vlaneseq
      %v5099 = vshrl.u32 %v5098, 7
      %5101 = vset.pattern.permute.xlu0 %v5099
      %5102 = vperm.xlu0 %5101, %v5097
      %v5103 = vpop.permute.xlu0 %5102
      %v5104 = vlaneseq
      %v5105 = vshrl.u32 %v5104, 7
      %v5106 = vadd.s32 %v5105, 8
      %5107 = vset.pattern.permute.xlu0 %v5106
      %5108 = vperm.xlu0 %5107, %v5097
      %v5109 = vpop.permute.xlu0 %5108
      %v5110 = vperm.slane %v4765, 3
      %v5111 = vlaneseq
      %v5112 = vshrl.u32 %v5111, 7
      %5114 = vset.pattern.permute.xlu0 %v5112
      %5115 = vperm.xlu0 %5114, %v5110
      %v5116 = vpop.permute.xlu0 %5115
      %v5117 = vlaneseq
      %v5118 = vshrl.u32 %v5117, 7
      %v5119 = vadd.s32 %v5118, 8
      %5120 = vset.pattern.permute.xlu0 %v5119
      %5121 = vperm.xlu0 %5120, %v5110
      %v5122 = vpop.permute.xlu0 %5121
      %v5123 = vperm.slane %v4765, 4
      %v5124 = vlaneseq
      %v5125 = vshrl.u32 %v5124, 7
      %5127 = vset.pattern.permute.xlu0 %v5125
      %5128 = vperm.xlu0 %5127, %v5123
      %v5129 = vpop.permute.xlu0 %5128
      %v5130 = vlaneseq
      %v5131 = vshrl.u32 %v5130, 7
      %v5132 = vadd.s32 %v5131, 8
      %5133 = vset.pattern.permute.xlu0 %v5132
      %5134 = vperm.xlu0 %5133, %v5123
      %v5135 = vpop.permute.xlu0 %5134
      %v5136 = vperm.slane %v4765, 5
      %v5137 = vlaneseq
      %v5138 = vshrl.u32 %v5137, 7
      %5140 = vset.pattern.permute.xlu0 %v5138
      %5141 = vperm.xlu0 %5140, %v5136
      %v5142 = vpop.permute.xlu0 %5141
      %v5143 = vlaneseq
      %v5144 = vshrl.u32 %v5143, 7
      %v5145 = vadd.s32 %v5144, 8
      %5146 = vset.pattern.permute.xlu0 %v5145
      %5147 = vperm.xlu0 %5146, %v5136
      %v5148 = vpop.permute.xlu0 %5147
      %v5149 = vperm.slane %v4765, 6
      %v5150 = vlaneseq
      %v5151 = vshrl.u32 %v5150, 7
      %5153 = vset.pattern.permute.xlu0 %v5151
      %5154 = vperm.xlu0 %5153, %v5149
      %v5155 = vpop.permute.xlu0 %5154
      %v5156 = vlaneseq
      %v5157 = vshrl.u32 %v5156, 7
      %v5158 = vadd.s32 %v5157, 8
      %5159 = vset.pattern.permute.xlu0 %v5158
      %5160 = vperm.xlu0 %5159, %v5149
      %v5161 = vpop.permute.xlu0 %5160
      %v5162 = vperm.slane %v4765, 7
      %v5163 = vlaneseq
      %v5164 = vshrl.u32 %v5163, 7
      %5166 = vset.pattern.permute.xlu0 %v5164
      %5167 = vperm.xlu0 %5166, %v5162
      %v5168 = vpop.permute.xlu0 %5167
      %v5169 = vlaneseq
      %v5170 = vshrl.u32 %v5169, 7
      %v5171 = vadd.s32 %v5170, 8
      %5172 = vset.pattern.permute.xlu0 %v5171
      %5173 = vperm.xlu0 %5172, %v5162
      %v5174 = vpop.permute.xlu0 %5173
      %v5175 = vperm.slane %v4766, 0
      %v5176 = vlaneseq
      %v5177 = vshrl.u32 %v5176, 7
      %5179 = vset.pattern.permute.xlu0 %v5177
      %5180 = vperm.xlu0 %5179, %v5175
      %v5181 = vpop.permute.xlu0 %5180
      %v5182 = vlaneseq
      %v5183 = vshrl.u32 %v5182, 7
      %v5184 = vadd.s32 %v5183, 8
      %5185 = vset.pattern.permute.xlu0 %v5184
      %5186 = vperm.xlu0 %5185, %v5175
      %v5187 = vpop.permute.xlu0 %5186
      %v5188 = vperm.slane %v4766, 1
      %v5189 = vlaneseq
      %v5190 = vshrl.u32 %v5189, 7
      %5192 = vset.pattern.permute.xlu0 %v5190
      %5193 = vperm.xlu0 %5192, %v5188
      %v5194 = vpop.permute.xlu0 %5193
      %v5195 = vlaneseq
      %v5196 = vshrl.u32 %v5195, 7
      %v5197 = vadd.s32 %v5196, 8
      %5198 = vset.pattern.permute.xlu0 %v5197
      %5199 = vperm.xlu0 %5198, %v5188
      %v5200 = vpop.permute.xlu0 %5199
      %v5201 = vperm.slane %v4766, 2
      %v5202 = vlaneseq
      %v5203 = vshrl.u32 %v5202, 7
      %5205 = vset.pattern.permute.xlu0 %v5203
      %5206 = vperm.xlu0 %5205, %v5201
      %v5207 = vpop.permute.xlu0 %5206
      %v5208 = vlaneseq
      %v5209 = vshrl.u32 %v5208, 7
      %v5210 = vadd.s32 %v5209, 8
      %5211 = vset.pattern.permute.xlu0 %v5210
      %5212 = vperm.xlu0 %5211, %v5201
      %v5213 = vpop.permute.xlu0 %5212
      %v5214 = vperm.slane %v4766, 3
      %v5215 = vlaneseq
      %v5216 = vshrl.u32 %v5215, 7
      %5218 = vset.pattern.permute.xlu0 %v5216
      %5219 = vperm.xlu0 %5218, %v5214
      %v5220 = vpop.permute.xlu0 %5219
      %v5221 = vlaneseq
      %v5222 = vshrl.u32 %v5221, 7
      %v5223 = vadd.s32 %v5222, 8
      %5224 = vset.pattern.permute.xlu0 %v5223
      %5225 = vperm.xlu0 %5224, %v5214
      %v5226 = vpop.permute.xlu0 %5225
      %v5227 = vperm.slane %v4766, 4
      %v5228 = vlaneseq
      %v5229 = vshrl.u32 %v5228, 7
      %5231 = vset.pattern.permute.xlu0 %v5229
      %5232 = vperm.xlu0 %5231, %v5227
      %v5233 = vpop.permute.xlu0 %5232
      %v5234 = vlaneseq
      %v5235 = vshrl.u32 %v5234, 7
      %v5236 = vadd.s32 %v5235, 8
      %5237 = vset.pattern.permute.xlu0 %v5236
      %5238 = vperm.xlu0 %5237, %v5227
      %v5239 = vpop.permute.xlu0 %5238
      %v5240 = vperm.slane %v4766, 5
      %v5241 = vlaneseq
      %v5242 = vshrl.u32 %v5241, 7
      %5244 = vset.pattern.permute.xlu0 %v5242
      %5245 = vperm.xlu0 %5244, %v5240
      %v5246 = vpop.permute.xlu0 %5245
      %v5247 = vlaneseq
      %v5248 = vshrl.u32 %v5247, 7
      %v5249 = vadd.s32 %v5248, 8
      %5250 = vset.pattern.permute.xlu0 %v5249
      %5251 = vperm.xlu0 %5250, %v5240
      %v5252 = vpop.permute.xlu0 %5251
      %v5253 = vperm.slane %v4766, 6
      %v5254 = vlaneseq
      %v5255 = vshrl.u32 %v5254, 7
      %5257 = vset.pattern.permute.xlu0 %v5255
      %5258 = vperm.xlu0 %5257, %v5253
      %v5259 = vpop.permute.xlu0 %5258
      %v5260 = vlaneseq
      %v5261 = vshrl.u32 %v5260, 7
      %v5262 = vadd.s32 %v5261, 8
      %5263 = vset.pattern.permute.xlu0 %v5262
      %5264 = vperm.xlu0 %5263, %v5253
      %v5265 = vpop.permute.xlu0 %5264
      %v5266 = vperm.slane %v4766, 7
      %v5267 = vlaneseq
      %v5268 = vshrl.u32 %v5267, 7
      %5270 = vset.pattern.permute.xlu0 %v5268
      %5271 = vperm.xlu0 %5270, %v5266
      %v5272 = vpop.permute.xlu0 %5271
      %v5273 = vlaneseq
      %v5274 = vshrl.u32 %v5273, 7
      %v5275 = vadd.s32 %v5274, 8
      %5276 = vset.pattern.permute.xlu0 %v5275
      %5277 = vperm.xlu0 %5276, %v5266
      %v5278 = vpop.permute.xlu0 %5277
      %v5279 = vmul.f32 %v4284, %v5077
      %v5280 = vmul.f32 %v4286, %v5083
      %v5281 = vmul.f32 %v4288, %v5090
      %v5282 = vmul.f32 %v4290, %v5096
      %v5283 = vmul.f32 %v4292, %v5103
      %v5284 = vmul.f32 %v4294, %v5109
      %v5285 = vmul.f32 %v4296, %v5116
      %v5286 = vmul.f32 %v4298, %v5122
      %v5287 = vmul.f32 %v4300, %v5129
      %v5288 = vmul.f32 %v4302, %v5135
      %v5289 = vmul.f32 %v4304, %v5142
      %v5290 = vmul.f32 %v4306, %v5148
      %v5291 = vmul.f32 %v4308, %v5155
      %v5292 = vmul.f32 %v4310, %v5161
      %v5293 = vmul.f32 %v4312, %v5168
      %v5294 = vmul.f32 %v4314, %v5174
      %v5295 = vmul.f32 %v4316, %v5181
      %v5296 = vmul.f32 %v4318, %v5187
      %v5297 = vmul.f32 %v4320, %v5194
      %v5298 = vmul.f32 %v4322, %v5200
      %v5299 = vmul.f32 %v4324, %v5207
      %v5300 = vmul.f32 %v4326, %v5213
      %v5301 = vmul.f32 %v4328, %v5220
      %v5302 = vmul.f32 %v4330, %v5226
      %v5303 = vmul.f32 %v4332, %v5233
      %v5304 = vmul.f32 %v4334, %v5239
      %v5305 = vmul.f32 %v4336, %v5246
      %v5306 = vmul.f32 %v4338, %v5252
      %v5307 = vmul.f32 %v4340, %v5259
      %v5308 = vmul.f32 %v4342, %v5265
      %v5309 = vmul.f32 %v4344, %v5272
      %v5310 = vmul.f32 %v4346, %v5278
      %v5311 = vpack.c.bf16 %v5279, %v5279
      %v5312 = vpack.c.bf16 %v5280, %v5280
      %v5313 = vpack.c.bf16 %v5281, %v5281
      %v5314 = vpack.c.bf16 %v5282, %v5282
      %v5315 = vpack.c.bf16 %v5283, %v5283
      %v5316 = vpack.c.bf16 %v5284, %v5284
      %v5317 = vpack.c.bf16 %v5285, %v5285
      %v5318 = vpack.c.bf16 %v5286, %v5286
      %v5319 = vpack.c.bf16 %v5287, %v5287
      %v5320 = vpack.c.bf16 %v5288, %v5288
      %v5321 = vpack.c.bf16 %v5289, %v5289
      %v5322 = vpack.c.bf16 %v5290, %v5290
      %v5323 = vpack.c.bf16 %v5291, %v5291
      %v5324 = vpack.c.bf16 %v5292, %v5292
      %v5325 = vpack.c.bf16 %v5293, %v5293
      %v5326 = vpack.c.bf16 %v5294, %v5294
      %v5327 = vpack.c.bf16 %v5295, %v5295
      %v5328 = vpack.c.bf16 %v5296, %v5296
      %v5329 = vpack.c.bf16 %v5297, %v5297
      %v5330 = vpack.c.bf16 %v5298, %v5298
      %v5331 = vpack.c.bf16 %v5299, %v5299
      %v5332 = vpack.c.bf16 %v5300, %v5300
      %v5333 = vpack.c.bf16 %v5301, %v5301
      %v5334 = vpack.c.bf16 %v5302, %v5302
      %v5335 = vpack.c.bf16 %v5303, %v5303
      %v5336 = vpack.c.bf16 %v5304, %v5304
      %v5337 = vpack.c.bf16 %v5305, %v5305
      %v5338 = vpack.c.bf16 %v5306, %v5306
      %v5339 = vpack.c.bf16 %v5307, %v5307
      %v5340 = vpack.c.bf16 %v5308, %v5308
      %v5341 = vpack.c.bf16 %v5309, %v5309
      %v5342 = vpack.c.bf16 %v5310, %v5310
      %v5345 = vunpack.c.l.b16 %v5039
      %v5346 = vunpack.c.l.b16 %v5040
      %v5347 = vpack.c.b16 %v5346, %v5345
      %v5350 = vunpack.c.l.b16 %v2277
      %v5351 = vunpack.c.l.b16 %v2278
      %v5352 = vpack.c.b16 %v5351, %v5350
      %v5355 = vsel %vm3279, %v5347, 0
      %5357 = vmatpush.bf16.msra.mxu0 0
      %5358 = vmatpush.bf16.msra.mxu0 0
      %5359 = vmatpush.bf16.msra.mxu0 0
      %5360 = vmatpush.bf16.msra.mxu0 0
      %5361 = vmatpush.bf16.msra.mxu0 0
      %5362 = vmatpush.bf16.msra.mxu0 0
      %5363 = vmatpush.bf16.msra.mxu0 0
      %5364 = vmatpush.bf16.msra.mxu0 %v5352
      %5365 = vmatmul.bf16.gmra.mxu0 %v5355
      %v5366 = vpop.f32.mrf.mxu0
      %v5367 = vadd.f32 0.0, %v5366
      %v5368 = vpop.f32.mrf.mxu0
      %v5369 = vadd.f32 0.0, %v5368
      %5370 = vdwg.mxu0
      %v5373 = vunpack.c.l.b16 %v5041
      %v5374 = vunpack.c.l.b16 %v5042
      %v5375 = vpack.c.b16 %v5374, %v5373
      %v5378 = vunpack.c.l.b16 %v2279
      %v5379 = vunpack.c.l.b16 %v2280
      %v5380 = vpack.c.b16 %v5379, %v5378
      %v5383 = vsel %vm3279, %v5375, 0
      %5385 = vmatpush.bf16.msra.mxu0 0
      %5386 = vmatpush.bf16.msra.mxu0 0
      %5387 = vmatpush.bf16.msra.mxu0 0
      %5388 = vmatpush.bf16.msra.mxu0 0
      %5389 = vmatpush.bf16.msra.mxu0 0
      %5390 = vmatpush.bf16.msra.mxu0 0
      %5391 = vmatpush.bf16.msra.mxu0 0
      %5392 = vmatpush.bf16.msra.mxu0 %v5380
      %5393 = vmatmul.bf16.gmra.mxu0 %v5383
      %v5394 = vpop.f32.mrf.mxu0
      %v5395 = vadd.f32 0.0, %v5394
      %v5396 = vpop.f32.mrf.mxu0
      %v5397 = vadd.f32 0.0, %v5396
      %5398 = vdwg.mxu0
      %v5401 = vunpack.c.l.b16 %v5043
      %v5402 = vunpack.c.l.b16 %v5044
      %v5403 = vpack.c.b16 %v5402, %v5401
      %v5406 = vunpack.c.l.b16 %v2281
      %v5407 = vunpack.c.l.b16 %v2282
      %v5408 = vpack.c.b16 %v5407, %v5406
      %v5411 = vsel %vm3279, %v5403, 0
      %5413 = vmatpush.bf16.msra.mxu0 0
      %5414 = vmatpush.bf16.msra.mxu0 0
      %5415 = vmatpush.bf16.msra.mxu0 0
      %5416 = vmatpush.bf16.msra.mxu0 0
      %5417 = vmatpush.bf16.msra.mxu0 0
      %5418 = vmatpush.bf16.msra.mxu0 0
      %5419 = vmatpush.bf16.msra.mxu0 0
      %5420 = vmatpush.bf16.msra.mxu0 %v5408
      %5421 = vmatmul.bf16.gmra.mxu0 %v5411
      %v5422 = vpop.f32.mrf.mxu0
      %v5423 = vadd.f32 0.0, %v5422
      %v5424 = vpop.f32.mrf.mxu0
      %v5425 = vadd.f32 0.0, %v5424
      %5426 = vdwg.mxu0
      %v5429 = vunpack.c.l.b16 %v5045
      %v5430 = vunpack.c.l.b16 %v5046
      %v5431 = vpack.c.b16 %v5430, %v5429
      %v5434 = vunpack.c.l.b16 %v2283
      %v5435 = vunpack.c.l.b16 %v2284
      %v5436 = vpack.c.b16 %v5435, %v5434
      %v5439 = vsel %vm3279, %v5431, 0
      %5441 = vmatpush.bf16.msra.mxu0 0
      %5442 = vmatpush.bf16.msra.mxu0 0
      %5443 = vmatpush.bf16.msra.mxu0 0
      %5444 = vmatpush.bf16.msra.mxu0 0
      %5445 = vmatpush.bf16.msra.mxu0 0
      %5446 = vmatpush.bf16.msra.mxu0 0
      %5447 = vmatpush.bf16.msra.mxu0 0
      %5448 = vmatpush.bf16.msra.mxu0 %v5436
      %5449 = vmatmul.bf16.gmra.mxu0 %v5439
      %v5450 = vpop.f32.mrf.mxu0
      %v5451 = vadd.f32 0.0, %v5450
      %v5452 = vpop.f32.mrf.mxu0
      %v5453 = vadd.f32 0.0, %v5452
      %5454 = vdwg.mxu0
      %v5457 = vunpack.c.l.b16 %v5047
      %v5458 = vunpack.c.l.b16 %v5048
      %v5459 = vpack.c.b16 %v5458, %v5457
      %v5462 = vunpack.c.l.b16 %v2285
      %v5463 = vunpack.c.l.b16 %v2286
      %v5464 = vpack.c.b16 %v5463, %v5462
      %v5467 = vsel %vm3279, %v5459, 0
      %5469 = vmatpush.bf16.msra.mxu0 0
      %5470 = vmatpush.bf16.msra.mxu0 0
      %5471 = vmatpush.bf16.msra.mxu0 0
      %5472 = vmatpush.bf16.msra.mxu0 0
      %5473 = vmatpush.bf16.msra.mxu0 0
      %5474 = vmatpush.bf16.msra.mxu0 0
      %5475 = vmatpush.bf16.msra.mxu0 0
      %5476 = vmatpush.bf16.msra.mxu0 %v5464
      %5477 = vmatmul.bf16.gmra.mxu0 %v5467
      %v5478 = vpop.f32.mrf.mxu0
      %v5479 = vadd.f32 0.0, %v5478
      %v5480 = vpop.f32.mrf.mxu0
      %v5481 = vadd.f32 0.0, %v5480
      %5482 = vdwg.mxu0
      %v5485 = vunpack.c.l.b16 %v5049
      %v5486 = vunpack.c.l.b16 %v5050
      %v5487 = vpack.c.b16 %v5486, %v5485
      %v5490 = vunpack.c.l.b16 %v2287
      %v5491 = vunpack.c.l.b16 %v2288
      %v5492 = vpack.c.b16 %v5491, %v5490
      %v5495 = vsel %vm3279, %v5487, 0
      %5497 = vmatpush.bf16.msra.mxu0 0
      %5498 = vmatpush.bf16.msra.mxu0 0
      %5499 = vmatpush.bf16.msra.mxu0 0
      %5500 = vmatpush.bf16.msra.mxu0 0
      %5501 = vmatpush.bf16.msra.mxu0 0
      %5502 = vmatpush.bf16.msra.mxu0 0
      %5503 = vmatpush.bf16.msra.mxu0 0
      %5504 = vmatpush.bf16.msra.mxu0 %v5492
      %5505 = vmatmul.bf16.gmra.mxu0 %v5495
      %v5506 = vpop.f32.mrf.mxu0
      %v5507 = vadd.f32 0.0, %v5506
      %v5508 = vpop.f32.mrf.mxu0
      %v5509 = vadd.f32 0.0, %v5508
      %5510 = vdwg.mxu0
      %v5513 = vunpack.c.l.b16 %v5051
      %v5514 = vunpack.c.l.b16 %v5052
      %v5515 = vpack.c.b16 %v5514, %v5513
      %v5518 = vunpack.c.l.b16 %v2289
      %v5519 = vunpack.c.l.b16 %v2290
      %v5520 = vpack.c.b16 %v5519, %v5518
      %v5523 = vsel %vm3279, %v5515, 0
      %5525 = vmatpush.bf16.msra.mxu0 0
      %5526 = vmatpush.bf16.msra.mxu0 0
      %5527 = vmatpush.bf16.msra.mxu0 0
      %5528 = vmatpush.bf16.msra.mxu0 0
      %5529 = vmatpush.bf16.msra.mxu0 0
      %5530 = vmatpush.bf16.msra.mxu0 0
      %5531 = vmatpush.bf16.msra.mxu0 0
      %5532 = vmatpush.bf16.msra.mxu0 %v5520
      %5533 = vmatmul.bf16.gmra.mxu0 %v5523
      %v5534 = vpop.f32.mrf.mxu0
      %v5535 = vadd.f32 0.0, %v5534
      %v5536 = vpop.f32.mrf.mxu0
      %v5537 = vadd.f32 0.0, %v5536
      %5538 = vdwg.mxu0
      %v5541 = vunpack.c.l.b16 %v5053
      %v5542 = vunpack.c.l.b16 %v5054
      %v5543 = vpack.c.b16 %v5542, %v5541
      %v5546 = vunpack.c.l.b16 %v2291
      %v5547 = vunpack.c.l.b16 %v2292
      %v5548 = vpack.c.b16 %v5547, %v5546
      %v5551 = vsel %vm3279, %v5543, 0
      %5553 = vmatpush.bf16.msra.mxu0 0
      %5554 = vmatpush.bf16.msra.mxu0 0
      %5555 = vmatpush.bf16.msra.mxu0 0
      %5556 = vmatpush.bf16.msra.mxu0 0
      %5557 = vmatpush.bf16.msra.mxu0 0
      %5558 = vmatpush.bf16.msra.mxu0 0
      %5559 = vmatpush.bf16.msra.mxu0 0
      %5560 = vmatpush.bf16.msra.mxu0 %v5548
      %5561 = vmatmul.bf16.gmra.mxu0 %v5551
      %v5562 = vpop.f32.mrf.mxu0
      %v5563 = vadd.f32 0.0, %v5562
      %v5564 = vpop.f32.mrf.mxu0
      %v5565 = vadd.f32 0.0, %v5564
      %5566 = vdwg.mxu0
      %v5569 = vunpack.c.l.b16 %v5055
      %v5570 = vunpack.c.l.b16 %v5056
      %v5571 = vpack.c.b16 %v5570, %v5569
      %v5574 = vunpack.c.l.b16 %v2293
      %v5575 = vunpack.c.l.b16 %v2294
      %v5576 = vpack.c.b16 %v5575, %v5574
      %v5579 = vsel %vm3279, %v5571, 0
      %5581 = vmatpush.bf16.msra.mxu0 0
      %5582 = vmatpush.bf16.msra.mxu0 0
      %5583 = vmatpush.bf16.msra.mxu0 0
      %5584 = vmatpush.bf16.msra.mxu0 0
      %5585 = vmatpush.bf16.msra.mxu0 0
      %5586 = vmatpush.bf16.msra.mxu0 0
      %5587 = vmatpush.bf16.msra.mxu0 0
      %5588 = vmatpush.bf16.msra.mxu0 %v5576
      %5589 = vmatmul.bf16.gmra.mxu0 %v5579
      %v5590 = vpop.f32.mrf.mxu0
      %v5591 = vadd.f32 0.0, %v5590
      %v5592 = vpop.f32.mrf.mxu0
      %v5593 = vadd.f32 0.0, %v5592
      %5594 = vdwg.mxu0
      %v5597 = vunpack.c.l.b16 %v5057
      %v5598 = vunpack.c.l.b16 %v5058
      %v5599 = vpack.c.b16 %v5598, %v5597
      %v5602 = vunpack.c.l.b16 %v2295
      %v5603 = vunpack.c.l.b16 %v2296
      %v5604 = vpack.c.b16 %v5603, %v5602
      %v5607 = vsel %vm3279, %v5599, 0
      %5609 = vmatpush.bf16.msra.mxu0 0
      %5610 = vmatpush.bf16.msra.mxu0 0
      %5611 = vmatpush.bf16.msra.mxu0 0
      %5612 = vmatpush.bf16.msra.mxu0 0
      %5613 = vmatpush.bf16.msra.mxu0 0
      %5614 = vmatpush.bf16.msra.mxu0 0
      %5615 = vmatpush.bf16.msra.mxu0 0
      %5616 = vmatpush.bf16.msra.mxu0 %v5604
      %5617 = vmatmul.bf16.gmra.mxu0 %v5607
      %v5618 = vpop.f32.mrf.mxu0
      %v5619 = vadd.f32 0.0, %v5618
      %v5620 = vpop.f32.mrf.mxu0
      %v5621 = vadd.f32 0.0, %v5620
      %5622 = vdwg.mxu0
      %v5625 = vunpack.c.l.b16 %v5059
      %v5626 = vunpack.c.l.b16 %v5060
      %v5627 = vpack.c.b16 %v5626, %v5625
      %v5630 = vunpack.c.l.b16 %v2297
      %v5631 = vunpack.c.l.b16 %v2298
      %v5632 = vpack.c.b16 %v5631, %v5630
      %v5635 = vsel %vm3279, %v5627, 0
      %5637 = vmatpush.bf16.msra.mxu0 0
      %5638 = vmatpush.bf16.msra.mxu0 0
      %5639 = vmatpush.bf16.msra.mxu0 0
      %5640 = vmatpush.bf16.msra.mxu0 0
      %5641 = vmatpush.bf16.msra.mxu0 0
      %5642 = vmatpush.bf16.msra.mxu0 0
      %5643 = vmatpush.bf16.msra.mxu0 0
      %5644 = vmatpush.bf16.msra.mxu0 %v5632
      %5645 = vmatmul.bf16.gmra.mxu0 %v5635
      %v5646 = vpop.f32.mrf.mxu0
      %v5647 = vadd.f32 0.0, %v5646
      %v5648 = vpop.f32.mrf.mxu0
      %v5649 = vadd.f32 0.0, %v5648
      %5650 = vdwg.mxu0
      %v5653 = vunpack.c.l.b16 %v5061
      %v5654 = vunpack.c.l.b16 %v5062
      %v5655 = vpack.c.b16 %v5654, %v5653
      %v5658 = vunpack.c.l.b16 %v2299
      %v5659 = vunpack.c.l.b16 %v2300
      %v5660 = vpack.c.b16 %v5659, %v5658
      %v5663 = vsel %vm3279, %v5655, 0
      %5665 = vmatpush.bf16.msra.mxu0 0
      %5666 = vmatpush.bf16.msra.mxu0 0
      %5667 = vmatpush.bf16.msra.mxu0 0
      %5668 = vmatpush.bf16.msra.mxu0 0
      %5669 = vmatpush.bf16.msra.mxu0 0
      %5670 = vmatpush.bf16.msra.mxu0 0
      %5671 = vmatpush.bf16.msra.mxu0 0
      %5672 = vmatpush.bf16.msra.mxu0 %v5660
      %5673 = vmatmul.bf16.gmra.mxu0 %v5663
      %v5674 = vpop.f32.mrf.mxu0
      %v5675 = vadd.f32 0.0, %v5674
      %v5676 = vpop.f32.mrf.mxu0
      %v5677 = vadd.f32 0.0, %v5676
      %5678 = vdwg.mxu0
      %v5681 = vunpack.c.l.b16 %v5063
      %v5682 = vunpack.c.l.b16 %v5064
      %v5683 = vpack.c.b16 %v5682, %v5681
      %v5686 = vunpack.c.l.b16 %v2301
      %v5687 = vunpack.c.l.b16 %v2302
      %v5688 = vpack.c.b16 %v5687, %v5686
      %v5691 = vsel %vm3279, %v5683, 0
      %5693 = vmatpush.bf16.msra.mxu0 0
      %5694 = vmatpush.bf16.msra.mxu0 0
      %5695 = vmatpush.bf16.msra.mxu0 0
      %5696 = vmatpush.bf16.msra.mxu0 0
      %5697 = vmatpush.bf16.msra.mxu0 0
      %5698 = vmatpush.bf16.msra.mxu0 0
      %5699 = vmatpush.bf16.msra.mxu0 0
      %5700 = vmatpush.bf16.msra.mxu0 %v5688
      %5701 = vmatmul.bf16.gmra.mxu0 %v5691
      %v5702 = vpop.f32.mrf.mxu0
      %v5703 = vadd.f32 0.0, %v5702
      %v5704 = vpop.f32.mrf.mxu0
      %v5705 = vadd.f32 0.0, %v5704
      %5706 = vdwg.mxu0
      %v5709 = vunpack.c.l.b16 %v5065
      %v5710 = vunpack.c.l.b16 %v5066
      %v5711 = vpack.c.b16 %v5710, %v5709
      %v5714 = vunpack.c.l.b16 %v2303
      %v5715 = vunpack.c.l.b16 %v2304
      %v5716 = vpack.c.b16 %v5715, %v5714
      %v5719 = vsel %vm3279, %v5711, 0
      %5721 = vmatpush.bf16.msra.mxu0 0
      %5722 = vmatpush.bf16.msra.mxu0 0
      %5723 = vmatpush.bf16.msra.mxu0 0
      %5724 = vmatpush.bf16.msra.mxu0 0
      %5725 = vmatpush.bf16.msra.mxu0 0
      %5726 = vmatpush.bf16.msra.mxu0 0
      %5727 = vmatpush.bf16.msra.mxu0 0
      %5728 = vmatpush.bf16.msra.mxu0 %v5716
      %5729 = vmatmul.bf16.gmra.mxu0 %v5719
      %v5730 = vpop.f32.mrf.mxu0
      %v5731 = vadd.f32 0.0, %v5730
      %v5732 = vpop.f32.mrf.mxu0
      %v5733 = vadd.f32 0.0, %v5732
      %5734 = vdwg.mxu0
      %v5737 = vunpack.c.l.b16 %v5067
      %v5738 = vunpack.c.l.b16 %v5068
      %v5739 = vpack.c.b16 %v5738, %v5737
      %v5742 = vunpack.c.l.b16 %v2305
      %v5743 = vunpack.c.l.b16 %v2306
      %v5744 = vpack.c.b16 %v5743, %v5742
      %v5747 = vsel %vm3279, %v5739, 0
      %5749 = vmatpush.bf16.msra.mxu0 0
      %5750 = vmatpush.bf16.msra.mxu0 0
      %5751 = vmatpush.bf16.msra.mxu0 0
      %5752 = vmatpush.bf16.msra.mxu0 0
      %5753 = vmatpush.bf16.msra.mxu0 0
      %5754 = vmatpush.bf16.msra.mxu0 0
      %5755 = vmatpush.bf16.msra.mxu0 0
      %5756 = vmatpush.bf16.msra.mxu0 %v5744
      %5757 = vmatmul.bf16.gmra.mxu0 %v5747
      %v5758 = vpop.f32.mrf.mxu0
      %v5759 = vadd.f32 0.0, %v5758
      %v5760 = vpop.f32.mrf.mxu0
      %v5761 = vadd.f32 0.0, %v5760
      %5762 = vdwg.mxu0
      %v5765 = vunpack.c.l.b16 %v5069
      %v5766 = vunpack.c.l.b16 %v5070
      %v5767 = vpack.c.b16 %v5766, %v5765
      %v5770 = vunpack.c.l.b16 %v2307
      %v5771 = vunpack.c.l.b16 %v2308
      %v5772 = vpack.c.b16 %v5771, %v5770
      %v5775 = vsel %vm3279, %v5767, 0
      %5777 = vmatpush.bf16.msra.mxu0 0
      %5778 = vmatpush.bf16.msra.mxu0 0
      %5779 = vmatpush.bf16.msra.mxu0 0
      %5780 = vmatpush.bf16.msra.mxu0 0
      %5781 = vmatpush.bf16.msra.mxu0 0
      %5782 = vmatpush.bf16.msra.mxu0 0
      %5783 = vmatpush.bf16.msra.mxu0 0
      %5784 = vmatpush.bf16.msra.mxu0 %v5772
      %5785 = vmatmul.bf16.gmra.mxu0 %v5775
      %v5786 = vpop.f32.mrf.mxu0
      %v5787 = vadd.f32 0.0, %v5786
      %v5788 = vpop.f32.mrf.mxu0
      %v5789 = vadd.f32 0.0, %v5788
      %5790 = vdwg.mxu0
      %v5791 = vrot.slane %v5423, 4
      %v5792 = vsel %vm773, %v5791, %v5367
      %v5793 = vrot.slane %v5367, 4
      %v5794 = vsel %vm773, %v5423, %v5793
      %v5796 = vunpack.c.l.s4 1983009808
      %v5797 = vunpack.c.0.s8 %v5796
      %v5798 = vperm.slane %v5792, %v5797
      %v5800 = vunpack.c.l.s4 1983009808
      %v5801 = vunpack.c.0.s8 %v5800
      %v5802 = vperm.slane %v5794, %v5801
      %v5803 = vrot.slane %v5451, 4
      %v5804 = vsel %vm773, %v5803, %v5395
      %v5805 = vrot.slane %v5395, 4
      %v5806 = vsel %vm773, %v5451, %v5805
      %v5808 = vunpack.c.l.s4 1983009808
      %v5809 = vunpack.c.0.s8 %v5808
      %v5810 = vperm.slane %v5804, %v5809
      %v5812 = vunpack.c.l.s4 1983009808
      %v5813 = vunpack.c.0.s8 %v5812
      %v5814 = vperm.slane %v5806, %v5813
      %v5815 = vrot.slane %v5535, 4
      %v5816 = vsel %vm773, %v5815, %v5479
      %v5817 = vrot.slane %v5479, 4
      %v5818 = vsel %vm773, %v5535, %v5817
      %v5820 = vunpack.c.l.s4 1983009808
      %v5821 = vunpack.c.0.s8 %v5820
      %v5822 = vperm.slane %v5816, %v5821
      %v5824 = vunpack.c.l.s4 1983009808
      %v5825 = vunpack.c.0.s8 %v5824
      %v5826 = vperm.slane %v5818, %v5825
      %v5827 = vrot.slane %v5563, 4
      %v5828 = vsel %vm773, %v5827, %v5507
      %v5829 = vrot.slane %v5507, 4
      %v5830 = vsel %vm773, %v5563, %v5829
      %v5832 = vunpack.c.l.s4 1983009808
      %v5833 = vunpack.c.0.s8 %v5832
      %v5834 = vperm.slane %v5828, %v5833
      %v5836 = vunpack.c.l.s4 1983009808
      %v5837 = vunpack.c.0.s8 %v5836
      %v5838 = vperm.slane %v5830, %v5837
      %v5839 = vrot.slane %v5810, 4
      %v5840 = vsel %vm773, %v5839, %v5798
      %v5841 = vrot.slane %v5798, 4
      %v5842 = vsel %vm773, %v5810, %v5841
      %v5844 = vunpack.c.l.s4 1934713408
      %v5845 = vunpack.c.0.s8 %v5844
      %v5846 = vperm.slane %v5840, %v5845
      %v5848 = vunpack.c.l.s4 1934713408
      %v5849 = vunpack.c.0.s8 %v5848
      %v5850 = vperm.slane %v5842, %v5849
      %v5851 = vrot.slane %v5814, 4
      %v5852 = vsel %vm773, %v5851, %v5802
      %v5853 = vrot.slane %v5802, 4
      %v5854 = vsel %vm773, %v5814, %v5853
      %v5856 = vunpack.c.l.s4 1934713408
      %v5857 = vunpack.c.0.s8 %v5856
      %v5858 = vperm.slane %v5852, %v5857
      %v5860 = vunpack.c.l.s4 1934713408
      %v5861 = vunpack.c.0.s8 %v5860
      %v5862 = vperm.slane %v5854, %v5861
      %v5863 = vrot.slane %v5834, 4
      %v5864 = vsel %vm773, %v5863, %v5822
      %v5865 = vrot.slane %v5822, 4
      %v5866 = vsel %vm773, %v5834, %v5865
      %v5868 = vunpack.c.l.s4 1934713408
      %v5869 = vunpack.c.0.s8 %v5868
      %v5870 = vperm.slane %v5864, %v5869
      %v5872 = vunpack.c.l.s4 1934713408
      %v5873 = vunpack.c.0.s8 %v5872
      %v5874 = vperm.slane %v5866, %v5873
      %v5875 = vrot.slane %v5838, 4
      %v5876 = vsel %vm773, %v5875, %v5826
      %v5877 = vrot.slane %v5826, 4
      %v5878 = vsel %vm773, %v5838, %v5877
      %v5880 = vunpack.c.l.s4 1934713408
      %v5881 = vunpack.c.0.s8 %v5880
      %v5882 = vperm.slane %v5876, %v5881
      %v5884 = vunpack.c.l.s4 1934713408
      %v5885 = vunpack.c.0.s8 %v5884
      %v5886 = vperm.slane %v5878, %v5885
      %v5887 = vrot.slane %v5870, 4
      %v5888 = vsel %vm773, %v5887, %v5846
      %v5889 = vrot.slane %v5846, 4
      %v5890 = vsel %vm773, %v5870, %v5889
      %v5891 = vrot.slane %v5874, 4
      %v5892 = vsel %vm773, %v5891, %v5850
      %v5893 = vrot.slane %v5850, 4
      %v5894 = vsel %vm773, %v5874, %v5893
      %v5895 = vrot.slane %v5882, 4
      %v5896 = vsel %vm773, %v5895, %v5858
      %v5897 = vrot.slane %v5858, 4
      %v5898 = vsel %vm773, %v5882, %v5897
      %v5899 = vrot.slane %v5886, 4
      %v5900 = vsel %vm773, %v5899, %v5862
      %v5901 = vrot.slane %v5862, 4
      %v5902 = vsel %vm773, %v5886, %v5901
      %v5903 = vrot.slane %v5647, 4
      %v5904 = vsel %vm773, %v5903, %v5591
      %v5905 = vrot.slane %v5591, 4
      %v5906 = vsel %vm773, %v5647, %v5905
      %v5908 = vunpack.c.l.s4 1983009808
      %v5909 = vunpack.c.0.s8 %v5908
      %v5910 = vperm.slane %v5904, %v5909
      %v5912 = vunpack.c.l.s4 1983009808
      %v5913 = vunpack.c.0.s8 %v5912
      %v5914 = vperm.slane %v5906, %v5913
      %v5915 = vrot.slane %v5675, 4
      %v5916 = vsel %vm773, %v5915, %v5619
      %v5917 = vrot.slane %v5619, 4
      %v5918 = vsel %vm773, %v5675, %v5917
      %v5920 = vunpack.c.l.s4 1983009808
      %v5921 = vunpack.c.0.s8 %v5920
      %v5922 = vperm.slane %v5916, %v5921
      %v5924 = vunpack.c.l.s4 1983009808
      %v5925 = vunpack.c.0.s8 %v5924
      %v5926 = vperm.slane %v5918, %v5925
      %v5927 = vrot.slane %v5759, 4
      %v5928 = vsel %vm773, %v5927, %v5703
      %v5929 = vrot.slane %v5703, 4
      %v5930 = vsel %vm773, %v5759, %v5929
      %v5932 = vunpack.c.l.s4 1983009808
      %v5933 = vunpack.c.0.s8 %v5932
      %v5934 = vperm.slane %v5928, %v5933
      %v5936 = vunpack.c.l.s4 1983009808
      %v5937 = vunpack.c.0.s8 %v5936
      %v5938 = vperm.slane %v5930, %v5937
      %v5939 = vrot.slane %v5787, 4
      %v5940 = vsel %vm773, %v5939, %v5731
      %v5941 = vrot.slane %v5731, 4
      %v5942 = vsel %vm773, %v5787, %v5941
      %v5944 = vunpack.c.l.s4 1983009808
      %v5945 = vunpack.c.0.s8 %v5944
      %v5946 = vperm.slane %v5940, %v5945
      %v5948 = vunpack.c.l.s4 1983009808
      %v5949 = vunpack.c.0.s8 %v5948
      %v5950 = vperm.slane %v5942, %v5949
      %v5951 = vrot.slane %v5922, 4
      %v5952 = vsel %vm773, %v5951, %v5910
      %v5953 = vrot.slane %v5910, 4
      %v5954 = vsel %vm773, %v5922, %v5953
      %v5956 = vunpack.c.l.s4 1934713408
      %v5957 = vunpack.c.0.s8 %v5956
      %v5958 = vperm.slane %v5952, %v5957
      %v5960 = vunpack.c.l.s4 1934713408
      %v5961 = vunpack.c.0.s8 %v5960
      %v5962 = vperm.slane %v5954, %v5961
      %v5963 = vrot.slane %v5926, 4
      %v5964 = vsel %vm773, %v5963, %v5914
      %v5965 = vrot.slane %v5914, 4
      %v5966 = vsel %vm773, %v5926, %v5965
      %v5968 = vunpack.c.l.s4 1934713408
      %v5969 = vunpack.c.0.s8 %v5968
      %v5970 = vperm.slane %v5964, %v5969
      %v5972 = vunpack.c.l.s4 1934713408
      %v5973 = vunpack.c.0.s8 %v5972
      %v5974 = vperm.slane %v5966, %v5973
      %v5975 = vrot.slane %v5946, 4
      %v5976 = vsel %vm773, %v5975, %v5934
      %v5977 = vrot.slane %v5934, 4
      %v5978 = vsel %vm773, %v5946, %v5977
      %v5980 = vunpack.c.l.s4 1934713408
      %v5981 = vunpack.c.0.s8 %v5980
      %v5982 = vperm.slane %v5976, %v5981
      %v5984 = vunpack.c.l.s4 1934713408
      %v5985 = vunpack.c.0.s8 %v5984
      %v5986 = vperm.slane %v5978, %v5985
      %v5987 = vrot.slane %v5950, 4
      %v5988 = vsel %vm773, %v5987, %v5938
      %v5989 = vrot.slane %v5938, 4
      %v5990 = vsel %vm773, %v5950, %v5989
      %v5992 = vunpack.c.l.s4 1934713408
      %v5993 = vunpack.c.0.s8 %v5992
      %v5994 = vperm.slane %v5988, %v5993
      %v5996 = vunpack.c.l.s4 1934713408
      %v5997 = vunpack.c.0.s8 %v5996
      %v5998 = vperm.slane %v5990, %v5997
      %v5999 = vrot.slane %v5982, 4
      %v6000 = vsel %vm773, %v5999, %v5958
      %v6001 = vrot.slane %v5958, 4
      %v6002 = vsel %vm773, %v5982, %v6001
      %v6003 = vrot.slane %v5986, 4
      %v6004 = vsel %vm773, %v6003, %v5962
      %v6005 = vrot.slane %v5962, 4
      %v6006 = vsel %vm773, %v5986, %v6005
      %v6007 = vrot.slane %v5994, 4
      %v6008 = vsel %vm773, %v6007, %v5970
      %v6009 = vrot.slane %v5970, 4
      %v6010 = vsel %vm773, %v5994, %v6009
      %v6011 = vrot.slane %v5998, 4
      %v6012 = vsel %vm773, %v6011, %v5974
      %v6013 = vrot.slane %v5974, 4
      %v6014 = vsel %vm773, %v5998, %v6013
      %v6015 = vrot.slane %v5425, 4
      %v6016 = vsel %vm773, %v6015, %v5369
      %v6017 = vrot.slane %v5369, 4
      %v6018 = vsel %vm773, %v5425, %v6017
      %v6020 = vunpack.c.l.s4 1983009808
      %v6021 = vunpack.c.0.s8 %v6020
      %v6022 = vperm.slane %v6016, %v6021
      %v6024 = vunpack.c.l.s4 1983009808
      %v6025 = vunpack.c.0.s8 %v6024
      %v6026 = vperm.slane %v6018, %v6025
      %v6027 = vrot.slane %v5453, 4
      %v6028 = vsel %vm773, %v6027, %v5397
      %v6029 = vrot.slane %v5397, 4
      %v6030 = vsel %vm773, %v5453, %v6029
      %v6032 = vunpack.c.l.s4 1983009808
      %v6033 = vunpack.c.0.s8 %v6032
      %v6034 = vperm.slane %v6028, %v6033
      %v6036 = vunpack.c.l.s4 1983009808
      %v6037 = vunpack.c.0.s8 %v6036
      %v6038 = vperm.slane %v6030, %v6037
      %v6039 = vrot.slane %v5537, 4
      %v6040 = vsel %vm773, %v6039, %v5481
      %v6041 = vrot.slane %v5481, 4
      %v6042 = vsel %vm773, %v5537, %v6041
      %v6044 = vunpack.c.l.s4 1983009808
      %v6045 = vunpack.c.0.s8 %v6044
      %v6046 = vperm.slane %v6040, %v6045
      %v6048 = vunpack.c.l.s4 1983009808
      %v6049 = vunpack.c.0.s8 %v6048
      %v6050 = vperm.slane %v6042, %v6049
      %v6051 = vrot.slane %v5565, 4
      %v6052 = vsel %vm773, %v6051, %v5509
      %v6053 = vrot.slane %v5509, 4
      %v6054 = vsel %vm773, %v5565, %v6053
      %v6056 = vunpack.c.l.s4 1983009808
      %v6057 = vunpack.c.0.s8 %v6056
      %v6058 = vperm.slane %v6052, %v6057
      %v6060 = vunpack.c.l.s4 1983009808
      %v6061 = vunpack.c.0.s8 %v6060
      %v6062 = vperm.slane %v6054, %v6061
      %v6063 = vrot.slane %v6034, 4
      %v6064 = vsel %vm773, %v6063, %v6022
      %v6065 = vrot.slane %v6022, 4
      %v6066 = vsel %vm773, %v6034, %v6065
      %v6068 = vunpack.c.l.s4 1934713408
      %v6069 = vunpack.c.0.s8 %v6068
      %v6070 = vperm.slane %v6064, %v6069
      %v6072 = vunpack.c.l.s4 1934713408
      %v6073 = vunpack.c.0.s8 %v6072
      %v6074 = vperm.slane %v6066, %v6073
      %v6075 = vrot.slane %v6038, 4
      %v6076 = vsel %vm773, %v6075, %v6026
      %v6077 = vrot.slane %v6026, 4
      %v6078 = vsel %vm773, %v6038, %v6077
      %v6080 = vunpack.c.l.s4 1934713408
      %v6081 = vunpack.c.0.s8 %v6080
      %v6082 = vperm.slane %v6076, %v6081
      %v6084 = vunpack.c.l.s4 1934713408
      %v6085 = vunpack.c.0.s8 %v6084
      %v6086 = vperm.slane %v6078, %v6085
      %v6087 = vrot.slane %v6058, 4
      %v6088 = vsel %vm773, %v6087, %v6046
      %v6089 = vrot.slane %v6046, 4
      %v6090 = vsel %vm773, %v6058, %v6089
      %v6092 = vunpack.c.l.s4 1934713408
      %v6093 = vunpack.c.0.s8 %v6092
      %v6094 = vperm.slane %v6088, %v6093
      %v6096 = vunpack.c.l.s4 1934713408
      %v6097 = vunpack.c.0.s8 %v6096
      %v6098 = vperm.slane %v6090, %v6097
      %v6099 = vrot.slane %v6062, 4
      %v6100 = vsel %vm773, %v6099, %v6050
      %v6101 = vrot.slane %v6050, 4
      %v6102 = vsel %vm773, %v6062, %v6101
      %v6104 = vunpack.c.l.s4 1934713408
      %v6105 = vunpack.c.0.s8 %v6104
      %v6106 = vperm.slane %v6100, %v6105
      %v6108 = vunpack.c.l.s4 1934713408
      %v6109 = vunpack.c.0.s8 %v6108
      %v6110 = vperm.slane %v6102, %v6109
      %v6111 = vrot.slane %v6094, 4
      %v6112 = vsel %vm773, %v6111, %v6070
      %v6113 = vrot.slane %v6070, 4
      %v6114 = vsel %vm773, %v6094, %v6113
      %v6115 = vrot.slane %v6098, 4
      %v6116 = vsel %vm773, %v6115, %v6074
      %v6117 = vrot.slane %v6074, 4
      %v6118 = vsel %vm773, %v6098, %v6117
      %v6119 = vrot.slane %v6106, 4
      %v6120 = vsel %vm773, %v6119, %v6082
      %v6121 = vrot.slane %v6082, 4
      %v6122 = vsel %vm773, %v6106, %v6121
      %v6123 = vrot.slane %v6110, 4
      %v6124 = vsel %vm773, %v6123, %v6086
      %v6125 = vrot.slane %v6086, 4
      %v6126 = vsel %vm773, %v6110, %v6125
      %v6127 = vrot.slane %v5649, 4
      %v6128 = vsel %vm773, %v6127, %v5593
      %v6129 = vrot.slane %v5593, 4
      %v6130 = vsel %vm773, %v5649, %v6129
      %v6132 = vunpack.c.l.s4 1983009808
      %v6133 = vunpack.c.0.s8 %v6132
      %v6134 = vperm.slane %v6128, %v6133
      %v6136 = vunpack.c.l.s4 1983009808
      %v6137 = vunpack.c.0.s8 %v6136
      %v6138 = vperm.slane %v6130, %v6137
      %v6139 = vrot.slane %v5677, 4
      %v6140 = vsel %vm773, %v6139, %v5621
      %v6141 = vrot.slane %v5621, 4
      %v6142 = vsel %vm773, %v5677, %v6141
      %v6144 = vunpack.c.l.s4 1983009808
      %v6145 = vunpack.c.0.s8 %v6144
      %v6146 = vperm.slane %v6140, %v6145
      %v6148 = vunpack.c.l.s4 1983009808
      %v6149 = vunpack.c.0.s8 %v6148
      %v6150 = vperm.slane %v6142, %v6149
      %v6151 = vrot.slane %v5761, 4
      %v6152 = vsel %vm773, %v6151, %v5705
      %v6153 = vrot.slane %v5705, 4
      %v6154 = vsel %vm773, %v5761, %v6153
      %v6156 = vunpack.c.l.s4 1983009808
      %v6157 = vunpack.c.0.s8 %v6156
      %v6158 = vperm.slane %v6152, %v6157
      %v6160 = vunpack.c.l.s4 1983009808
      %v6161 = vunpack.c.0.s8 %v6160
      %v6162 = vperm.slane %v6154, %v6161
      %v6163 = vrot.slane %v5789, 4
      %v6164 = vsel %vm773, %v6163, %v5733
      %v6165 = vrot.slane %v5733, 4
      %v6166 = vsel %vm773, %v5789, %v6165
      %v6168 = vunpack.c.l.s4 1983009808
      %v6169 = vunpack.c.0.s8 %v6168
      %v6170 = vperm.slane %v6164, %v6169
      %v6172 = vunpack.c.l.s4 1983009808
      %v6173 = vunpack.c.0.s8 %v6172
      %v6174 = vperm.slane %v6166, %v6173
      %v6175 = vrot.slane %v6146, 4
      %v6176 = vsel %vm773, %v6175, %v6134
      %v6177 = vrot.slane %v6134, 4
      %v6178 = vsel %vm773, %v6146, %v6177
      %v6180 = vunpack.c.l.s4 1934713408
      %v6181 = vunpack.c.0.s8 %v6180
      %v6182 = vperm.slane %v6176, %v6181
      %v6184 = vunpack.c.l.s4 1934713408
      %v6185 = vunpack.c.0.s8 %v6184
      %v6186 = vperm.slane %v6178, %v6185
      %v6187 = vrot.slane %v6150, 4
      %v6188 = vsel %vm773, %v6187, %v6138
      %v6189 = vrot.slane %v6138, 4
      %v6190 = vsel %vm773, %v6150, %v6189
      %v6192 = vunpack.c.l.s4 1934713408
      %v6193 = vunpack.c.0.s8 %v6192
      %v6194 = vperm.slane %v6188, %v6193
      %v6196 = vunpack.c.l.s4 1934713408
      %v6197 = vunpack.c.0.s8 %v6196
      %v6198 = vperm.slane %v6190, %v6197
      %v6199 = vrot.slane %v6170, 4
      %v6200 = vsel %vm773, %v6199, %v6158
      %v6201 = vrot.slane %v6158, 4
      %v6202 = vsel %vm773, %v6170, %v6201
      %v6204 = vunpack.c.l.s4 1934713408
      %v6205 = vunpack.c.0.s8 %v6204
      %v6206 = vperm.slane %v6200, %v6205
      %v6208 = vunpack.c.l.s4 1934713408
      %v6209 = vunpack.c.0.s8 %v6208
      %v6210 = vperm.slane %v6202, %v6209
      %v6211 = vrot.slane %v6174, 4
      %v6212 = vsel %vm773, %v6211, %v6162
      %v6213 = vrot.slane %v6162, 4
      %v6214 = vsel %vm773, %v6174, %v6213
      %v6216 = vunpack.c.l.s4 1934713408
      %v6217 = vunpack.c.0.s8 %v6216
      %v6218 = vperm.slane %v6212, %v6217
      %v6220 = vunpack.c.l.s4 1934713408
      %v6221 = vunpack.c.0.s8 %v6220
      %v6222 = vperm.slane %v6214, %v6221
      %v6223 = vrot.slane %v6206, 4
      %v6224 = vsel %vm773, %v6223, %v6182
      %v6225 = vrot.slane %v6182, 4
      %v6226 = vsel %vm773, %v6206, %v6225
      %v6227 = vrot.slane %v6210, 4
      %v6228 = vsel %vm773, %v6227, %v6186
      %v6229 = vrot.slane %v6186, 4
      %v6230 = vsel %vm773, %v6210, %v6229
      %v6231 = vrot.slane %v6218, 4
      %v6232 = vsel %vm773, %v6231, %v6194
      %v6233 = vrot.slane %v6194, 4
      %v6234 = vsel %vm773, %v6218, %v6233
      %v6235 = vrot.slane %v6222, 4
      %v6236 = vsel %vm773, %v6235, %v6198
      %v6237 = vrot.slane %v6198, 4
      %v6238 = vsel %vm773, %v6222, %v6237
      %v6241 = vunpack.c.l.b16 %v5311
      %v6242 = vunpack.c.l.b16 %v5312
      %v6243 = vpack.c.b16 %v6242, %v6241
      %v6246 = vunpack.c.l.b16 %v2181
      %v6247 = vunpack.c.l.b16 %v2182
      %v6248 = vpack.c.b16 %v6247, %v6246
      %v6251 = vsel %vm3279, %v6243, 0
      %6253 = vmatpush.bf16.msra.mxu0 0
      %6254 = vmatpush.bf16.msra.mxu0 0
      %6255 = vmatpush.bf16.msra.mxu0 0
      %6256 = vmatpush.bf16.msra.mxu0 0
      %6257 = vmatpush.bf16.msra.mxu0 0
      %6258 = vmatpush.bf16.msra.mxu0 0
      %6259 = vmatpush.bf16.msra.mxu0 0
      %6260 = vmatpush.bf16.msra.mxu0 %v6248
      %6261 = vmatmul.bf16.gmra.mxu0 %v6251
      %v6262 = vpop.f32.mrf.mxu0
      %v6263 = vadd.f32 0.0, %v6262
      %v6264 = vpop.f32.mrf.mxu0
      %v6265 = vadd.f32 0.0, %v6264
      %6266 = vdwg.mxu0
      %v6269 = vunpack.c.l.b16 %v5313
      %v6270 = vunpack.c.l.b16 %v5314
      %v6271 = vpack.c.b16 %v6270, %v6269
      %v6274 = vunpack.c.l.b16 %v2183
      %v6275 = vunpack.c.l.b16 %v2184
      %v6276 = vpack.c.b16 %v6275, %v6274
      %v6279 = vsel %vm3279, %v6271, 0
      %6281 = vmatpush.bf16.msra.mxu0 0
      %6282 = vmatpush.bf16.msra.mxu0 0
      %6283 = vmatpush.bf16.msra.mxu0 0
      %6284 = vmatpush.bf16.msra.mxu0 0
      %6285 = vmatpush.bf16.msra.mxu0 0
      %6286 = vmatpush.bf16.msra.mxu0 0
      %6287 = vmatpush.bf16.msra.mxu0 0
      %6288 = vmatpush.bf16.msra.mxu0 %v6276
      %6289 = vmatmul.bf16.gmra.mxu0 %v6279
      %v6290 = vpop.f32.mrf.mxu0
      %v6291 = vadd.f32 0.0, %v6290
      %v6292 = vpop.f32.mrf.mxu0
      %v6293 = vadd.f32 0.0, %v6292
      %6294 = vdwg.mxu0
      %v6297 = vunpack.c.l.b16 %v5315
      %v6298 = vunpack.c.l.b16 %v5316
      %v6299 = vpack.c.b16 %v6298, %v6297
      %v6302 = vunpack.c.l.b16 %v2185
      %v6303 = vunpack.c.l.b16 %v2186
      %v6304 = vpack.c.b16 %v6303, %v6302
      %v6307 = vsel %vm3279, %v6299, 0
      %6309 = vmatpush.bf16.msra.mxu0 0
      %6310 = vmatpush.bf16.msra.mxu0 0
      %6311 = vmatpush.bf16.msra.mxu0 0
      %6312 = vmatpush.bf16.msra.mxu0 0
      %6313 = vmatpush.bf16.msra.mxu0 0
      %6314 = vmatpush.bf16.msra.mxu0 0
      %6315 = vmatpush.bf16.msra.mxu0 0
      %6316 = vmatpush.bf16.msra.mxu0 %v6304
      %6317 = vmatmul.bf16.gmra.mxu0 %v6307
      %v6318 = vpop.f32.mrf.mxu0
      %v6319 = vadd.f32 0.0, %v6318
      %v6320 = vpop.f32.mrf.mxu0
      %v6321 = vadd.f32 0.0, %v6320
      %6322 = vdwg.mxu0
      %v6325 = vunpack.c.l.b16 %v5317
      %v6326 = vunpack.c.l.b16 %v5318
      %v6327 = vpack.c.b16 %v6326, %v6325
      %v6330 = vunpack.c.l.b16 %v2187
      %v6331 = vunpack.c.l.b16 %v2188
      %v6332 = vpack.c.b16 %v6331, %v6330
      %v6335 = vsel %vm3279, %v6327, 0
      %6337 = vmatpush.bf16.msra.mxu0 0
      %6338 = vmatpush.bf16.msra.mxu0 0
      %6339 = vmatpush.bf16.msra.mxu0 0
      %6340 = vmatpush.bf16.msra.mxu0 0
      %6341 = vmatpush.bf16.msra.mxu0 0
      %6342 = vmatpush.bf16.msra.mxu0 0
      %6343 = vmatpush.bf16.msra.mxu0 0
      %6344 = vmatpush.bf16.msra.mxu0 %v6332
      %6345 = vmatmul.bf16.gmra.mxu0 %v6335
      %v6346 = vpop.f32.mrf.mxu0
      %v6347 = vadd.f32 0.0, %v6346
      %v6348 = vpop.f32.mrf.mxu0
      %v6349 = vadd.f32 0.0, %v6348
      %6350 = vdwg.mxu0
      %v6353 = vunpack.c.l.b16 %v5319
      %v6354 = vunpack.c.l.b16 %v5320
      %v6355 = vpack.c.b16 %v6354, %v6353
      %v6358 = vunpack.c.l.b16 %v2189
      %v6359 = vunpack.c.l.b16 %v2190
      %v6360 = vpack.c.b16 %v6359, %v6358
      %v6363 = vsel %vm3279, %v6355, 0
      %6365 = vmatpush.bf16.msra.mxu0 0
      %6366 = vmatpush.bf16.msra.mxu0 0
      %6367 = vmatpush.bf16.msra.mxu0 0
      %6368 = vmatpush.bf16.msra.mxu0 0
      %6369 = vmatpush.bf16.msra.mxu0 0
      %6370 = vmatpush.bf16.msra.mxu0 0
      %6371 = vmatpush.bf16.msra.mxu0 0
      %6372 = vmatpush.bf16.msra.mxu0 %v6360
      %6373 = vmatmul.bf16.gmra.mxu0 %v6363
      %v6374 = vpop.f32.mrf.mxu0
      %v6375 = vadd.f32 0.0, %v6374
      %v6376 = vpop.f32.mrf.mxu0
      %v6377 = vadd.f32 0.0, %v6376
      %6378 = vdwg.mxu0
      %v6381 = vunpack.c.l.b16 %v5321
      %v6382 = vunpack.c.l.b16 %v5322
      %v6383 = vpack.c.b16 %v6382, %v6381
      %v6386 = vunpack.c.l.b16 %v2191
      %v6387 = vunpack.c.l.b16 %v2192
      %v6388 = vpack.c.b16 %v6387, %v6386
      %v6391 = vsel %vm3279, %v6383, 0
      %6393 = vmatpush.bf16.msra.mxu0 0
      %6394 = vmatpush.bf16.msra.mxu0 0
      %6395 = vmatpush.bf16.msra.mxu0 0
      %6396 = vmatpush.bf16.msra.mxu0 0
      %6397 = vmatpush.bf16.msra.mxu0 0
      %6398 = vmatpush.bf16.msra.mxu0 0
      %6399 = vmatpush.bf16.msra.mxu0 0
      %6400 = vmatpush.bf16.msra.mxu0 %v6388
      %6401 = vmatmul.bf16.gmra.mxu0 %v6391
      %v6402 = vpop.f32.mrf.mxu0
      %v6403 = vadd.f32 0.0, %v6402
      %v6404 = vpop.f32.mrf.mxu0
      %v6405 = vadd.f32 0.0, %v6404
      %6406 = vdwg.mxu0
      %v6409 = vunpack.c.l.b16 %v5323
      %v6410 = vunpack.c.l.b16 %v5324
      %v6411 = vpack.c.b16 %v6410, %v6409
      %v6414 = vunpack.c.l.b16 %v2193
      %v6415 = vunpack.c.l.b16 %v2194
      %v6416 = vpack.c.b16 %v6415, %v6414
      %v6419 = vsel %vm3279, %v6411, 0
      %6421 = vmatpush.bf16.msra.mxu0 0
      %6422 = vmatpush.bf16.msra.mxu0 0
      %6423 = vmatpush.bf16.msra.mxu0 0
      %6424 = vmatpush.bf16.msra.mxu0 0
      %6425 = vmatpush.bf16.msra.mxu0 0
      %6426 = vmatpush.bf16.msra.mxu0 0
      %6427 = vmatpush.bf16.msra.mxu0 0
      %6428 = vmatpush.bf16.msra.mxu0 %v6416
      %6429 = vmatmul.bf16.gmra.mxu0 %v6419
      %v6430 = vpop.f32.mrf.mxu0
      %v6431 = vadd.f32 0.0, %v6430
      %v6432 = vpop.f32.mrf.mxu0
      %v6433 = vadd.f32 0.0, %v6432
      %6434 = vdwg.mxu0
      %v6437 = vunpack.c.l.b16 %v5325
      %v6438 = vunpack.c.l.b16 %v5326
      %v6439 = vpack.c.b16 %v6438, %v6437
      %v6442 = vunpack.c.l.b16 %v2195
      %v6443 = vunpack.c.l.b16 %v2196
      %v6444 = vpack.c.b16 %v6443, %v6442
      %v6447 = vsel %vm3279, %v6439, 0
      %6449 = vmatpush.bf16.msra.mxu0 0
      %6450 = vmatpush.bf16.msra.mxu0 0
      %6451 = vmatpush.bf16.msra.mxu0 0
      %6452 = vmatpush.bf16.msra.mxu0 0
      %6453 = vmatpush.bf16.msra.mxu0 0
      %6454 = vmatpush.bf16.msra.mxu0 0
      %6455 = vmatpush.bf16.msra.mxu0 0
      %6456 = vmatpush.bf16.msra.mxu0 %v6444
      %6457 = vmatmul.bf16.gmra.mxu0 %v6447
      %v6458 = vpop.f32.mrf.mxu0
      %v6459 = vadd.f32 0.0, %v6458
      %v6460 = vpop.f32.mrf.mxu0
      %v6461 = vadd.f32 0.0, %v6460
      %6462 = vdwg.mxu0
      %v6465 = vunpack.c.l.b16 %v5327
      %v6466 = vunpack.c.l.b16 %v5328
      %v6467 = vpack.c.b16 %v6466, %v6465
      %v6470 = vunpack.c.l.b16 %v2197
      %v6471 = vunpack.c.l.b16 %v2198
      %v6472 = vpack.c.b16 %v6471, %v6470
      %v6475 = vsel %vm3279, %v6467, 0
      %6477 = vmatpush.bf16.msra.mxu0 0
      %6478 = vmatpush.bf16.msra.mxu0 0
      %6479 = vmatpush.bf16.msra.mxu0 0
      %6480 = vmatpush.bf16.msra.mxu0 0
      %6481 = vmatpush.bf16.msra.mxu0 0
      %6482 = vmatpush.bf16.msra.mxu0 0
      %6483 = vmatpush.bf16.msra.mxu0 0
      %6484 = vmatpush.bf16.msra.mxu0 %v6472
      %6485 = vmatmul.bf16.gmra.mxu0 %v6475
      %v6486 = vpop.f32.mrf.mxu0
      %v6487 = vadd.f32 0.0, %v6486
      %v6488 = vpop.f32.mrf.mxu0
      %v6489 = vadd.f32 0.0, %v6488
      %6490 = vdwg.mxu0
      %v6493 = vunpack.c.l.b16 %v5329
      %v6494 = vunpack.c.l.b16 %v5330
      %v6495 = vpack.c.b16 %v6494, %v6493
      %v6498 = vunpack.c.l.b16 %v2199
      %v6499 = vunpack.c.l.b16 %v2200
      %v6500 = vpack.c.b16 %v6499, %v6498
      %v6503 = vsel %vm3279, %v6495, 0
      %6505 = vmatpush.bf16.msra.mxu0 0
      %6506 = vmatpush.bf16.msra.mxu0 0
      %6507 = vmatpush.bf16.msra.mxu0 0
      %6508 = vmatpush.bf16.msra.mxu0 0
      %6509 = vmatpush.bf16.msra.mxu0 0
      %6510 = vmatpush.bf16.msra.mxu0 0
      %6511 = vmatpush.bf16.msra.mxu0 0
      %6512 = vmatpush.bf16.msra.mxu0 %v6500
      %6513 = vmatmul.bf16.gmra.mxu0 %v6503
      %v6514 = vpop.f32.mrf.mxu0
      %v6515 = vadd.f32 0.0, %v6514
      %v6516 = vpop.f32.mrf.mxu0
      %v6517 = vadd.f32 0.0, %v6516
      %6518 = vdwg.mxu0
      %v6521 = vunpack.c.l.b16 %v5331
      %v6522 = vunpack.c.l.b16 %v5332
      %v6523 = vpack.c.b16 %v6522, %v6521
      %v6526 = vunpack.c.l.b16 %v2201
      %v6527 = vunpack.c.l.b16 %v2202
      %v6528 = vpack.c.b16 %v6527, %v6526
      %v6531 = vsel %vm3279, %v6523, 0
      %6533 = vmatpush.bf16.msra.mxu0 0
      %6534 = vmatpush.bf16.msra.mxu0 0
      %6535 = vmatpush.bf16.msra.mxu0 0
      %6536 = vmatpush.bf16.msra.mxu0 0
      %6537 = vmatpush.bf16.msra.mxu0 0
      %6538 = vmatpush.bf16.msra.mxu0 0
      %6539 = vmatpush.bf16.msra.mxu0 0
      %6540 = vmatpush.bf16.msra.mxu0 %v6528
      %6541 = vmatmul.bf16.gmra.mxu0 %v6531
      %v6542 = vpop.f32.mrf.mxu0
      %v6543 = vadd.f32 0.0, %v6542
      %v6544 = vpop.f32.mrf.mxu0
      %v6545 = vadd.f32 0.0, %v6544
      %6546 = vdwg.mxu0
      %v6549 = vunpack.c.l.b16 %v5333
      %v6550 = vunpack.c.l.b16 %v5334
      %v6551 = vpack.c.b16 %v6550, %v6549
      %v6554 = vunpack.c.l.b16 %v2203
      %v6555 = vunpack.c.l.b16 %v2204
      %v6556 = vpack.c.b16 %v6555, %v6554
      %v6559 = vsel %vm3279, %v6551, 0
      %6561 = vmatpush.bf16.msra.mxu0 0
      %6562 = vmatpush.bf16.msra.mxu0 0
      %6563 = vmatpush.bf16.msra.mxu0 0
      %6564 = vmatpush.bf16.msra.mxu0 0
      %6565 = vmatpush.bf16.msra.mxu0 0
      %6566 = vmatpush.bf16.msra.mxu0 0
      %6567 = vmatpush.bf16.msra.mxu0 0
      %6568 = vmatpush.bf16.msra.mxu0 %v6556
      %6569 = vmatmul.bf16.gmra.mxu0 %v6559
      %v6570 = vpop.f32.mrf.mxu0
      %v6571 = vadd.f32 0.0, %v6570
      %v6572 = vpop.f32.mrf.mxu0
      %v6573 = vadd.f32 0.0, %v6572
      %6574 = vdwg.mxu0
      %v6577 = vunpack.c.l.b16 %v5335
      %v6578 = vunpack.c.l.b16 %v5336
      %v6579 = vpack.c.b16 %v6578, %v6577
      %v6582 = vunpack.c.l.b16 %v2205
      %v6583 = vunpack.c.l.b16 %v2206
      %v6584 = vpack.c.b16 %v6583, %v6582
      %v6587 = vsel %vm3279, %v6579, 0
      %6589 = vmatpush.bf16.msra.mxu0 0
      %6590 = vmatpush.bf16.msra.mxu0 0
      %6591 = vmatpush.bf16.msra.mxu0 0
      %6592 = vmatpush.bf16.msra.mxu0 0
      %6593 = vmatpush.bf16.msra.mxu0 0
      %6594 = vmatpush.bf16.msra.mxu0 0
      %6595 = vmatpush.bf16.msra.mxu0 0
      %6596 = vmatpush.bf16.msra.mxu0 %v6584
      %6597 = vmatmul.bf16.gmra.mxu0 %v6587
      %v6598 = vpop.f32.mrf.mxu0
      %v6599 = vadd.f32 0.0, %v6598
      %v6600 = vpop.f32.mrf.mxu0
      %v6601 = vadd.f32 0.0, %v6600
      %6602 = vdwg.mxu0
      %v6605 = vunpack.c.l.b16 %v5337
      %v6606 = vunpack.c.l.b16 %v5338
      %v6607 = vpack.c.b16 %v6606, %v6605
      %v6610 = vunpack.c.l.b16 %v2207
      %v6611 = vunpack.c.l.b16 %v2208
      %v6612 = vpack.c.b16 %v6611, %v6610
      %v6615 = vsel %vm3279, %v6607, 0
      %6617 = vmatpush.bf16.msra.mxu0 0
      %6618 = vmatpush.bf16.msra.mxu0 0
      %6619 = vmatpush.bf16.msra.mxu0 0
      %6620 = vmatpush.bf16.msra.mxu0 0
      %6621 = vmatpush.bf16.msra.mxu0 0
      %6622 = vmatpush.bf16.msra.mxu0 0
      %6623 = vmatpush.bf16.msra.mxu0 0
      %6624 = vmatpush.bf16.msra.mxu0 %v6612
      %6625 = vmatmul.bf16.gmra.mxu0 %v6615
      %v6626 = vpop.f32.mrf.mxu0
      %v6627 = vadd.f32 0.0, %v6626
      %v6628 = vpop.f32.mrf.mxu0
      %v6629 = vadd.f32 0.0, %v6628
      %6630 = vdwg.mxu0
      %v6633 = vunpack.c.l.b16 %v5339
      %v6634 = vunpack.c.l.b16 %v5340
      %v6635 = vpack.c.b16 %v6634, %v6633
      %v6638 = vunpack.c.l.b16 %v2209
      %v6639 = vunpack.c.l.b16 %v2210
      %v6640 = vpack.c.b16 %v6639, %v6638
      %v6643 = vsel %vm3279, %v6635, 0
      %6645 = vmatpush.bf16.msra.mxu0 0
      %6646 = vmatpush.bf16.msra.mxu0 0
      %6647 = vmatpush.bf16.msra.mxu0 0
      %6648 = vmatpush.bf16.msra.mxu0 0
      %6649 = vmatpush.bf16.msra.mxu0 0
      %6650 = vmatpush.bf16.msra.mxu0 0
      %6651 = vmatpush.bf16.msra.mxu0 0
      %6652 = vmatpush.bf16.msra.mxu0 %v6640
      %6653 = vmatmul.bf16.gmra.mxu0 %v6643
      %v6654 = vpop.f32.mrf.mxu0
      %v6655 = vadd.f32 0.0, %v6654
      %v6656 = vpop.f32.mrf.mxu0
      %v6657 = vadd.f32 0.0, %v6656
      %6658 = vdwg.mxu0
      %v6661 = vunpack.c.l.b16 %v5341
      %v6662 = vunpack.c.l.b16 %v5342
      %v6663 = vpack.c.b16 %v6662, %v6661
      %v6666 = vunpack.c.l.b16 %v2211
      %v6667 = vunpack.c.l.b16 %v2212
      %v6668 = vpack.c.b16 %v6667, %v6666
      %v6671 = vsel %vm3279, %v6663, 0
      %6673 = vmatpush.bf16.msra.mxu0 0
      %6674 = vmatpush.bf16.msra.mxu0 0
      %6675 = vmatpush.bf16.msra.mxu0 0
      %6676 = vmatpush.bf16.msra.mxu0 0
      %6677 = vmatpush.bf16.msra.mxu0 0
      %6678 = vmatpush.bf16.msra.mxu0 0
      %6679 = vmatpush.bf16.msra.mxu0 0
      %6680 = vmatpush.bf16.msra.mxu0 %v6668
      %6681 = vmatmul.bf16.gmra.mxu0 %v6671
      %v6682 = vpop.f32.mrf.mxu0
      %v6683 = vadd.f32 0.0, %v6682
      %v6684 = vpop.f32.mrf.mxu0
      %v6685 = vadd.f32 0.0, %v6684
      %6686 = vdwg.mxu0
      %s6687 = sld [smem:[#allocation2]]
      %v6688 = vadd.f32 %v5888, %v6263
      %v6689 = vadd.f32 %v6000, %v6265
      %v6690 = vadd.f32 %v5890, %v6291
      %v6691 = vadd.f32 %v6002, %v6293
      %v6692 = vadd.f32 %v5892, %v6319
      %v6693 = vadd.f32 %v6004, %v6321
      %v6694 = vadd.f32 %v5894, %v6347
      %v6695 = vadd.f32 %v6006, %v6349
      %v6696 = vadd.f32 %v5896, %v6375
      %v6697 = vadd.f32 %v6008, %v6377
      %v6698 = vadd.f32 %v5898, %v6403
      %v6699 = vadd.f32 %v6010, %v6405
      %v6700 = vadd.f32 %v5900, %v6431
      %v6701 = vadd.f32 %v6012, %v6433
      %v6702 = vadd.f32 %v5902, %v6459
      %v6703 = vadd.f32 %v6014, %v6461
      %v6704 = vadd.f32 %v6112, %v6487
      %v6705 = vadd.f32 %v6224, %v6489
      %v6706 = vadd.f32 %v6114, %v6515
      %v6707 = vadd.f32 %v6226, %v6517
      %v6708 = vadd.f32 %v6116, %v6543
      %v6709 = vadd.f32 %v6228, %v6545
      %v6710 = vadd.f32 %v6118, %v6571
      %v6711 = vadd.f32 %v6230, %v6573
      %v6712 = vadd.f32 %v6120, %v6599
      %v6713 = vadd.f32 %v6232, %v6601
      %v6714 = vadd.f32 %v6122, %v6627
      %v6715 = vadd.f32 %v6234, %v6629
      %v6716 = vadd.f32 %v6124, %v6655
      %v6717 = vadd.f32 %v6236, %v6657
      %v6718 = vadd.f32 %v6126, %v6683
      %v6719 = vadd.f32 %v6238, %v6685
      %6720 = vxpose.xlu0.b32.start [1/16] %v6688, 128
      %6721 = vxpose.xlu0.b32.cont [2/16] %v6689, 128
      %6722 = vxpose.xlu0.b32.cont [3/16] %v6690, 128
      %6723 = vxpose.xlu0.b32.cont [4/16] %v6691, 128
      %6724 = vxpose.xlu0.b32.cont [5/16] %v6692, 128
      %6725 = vxpose.xlu0.b32.cont [6/16] %v6693, 128
      %6726 = vxpose.xlu0.b32.cont [7/16] %v6694, 128
      %6727 = vxpose.xlu0.b32.cont [8/16] %v6695, 128
      %6728 = vxpose.xlu0.b32.cont [9/16] %v6696, 128
      %6729 = vxpose.xlu0.b32.cont [10/16] %v6697, 128
      %6730 = vxpose.xlu0.b32.cont [11/16] %v6698, 128
      %6731 = vxpose.xlu0.b32.cont [12/16] %v6699, 128
      %6732 = vxpose.xlu0.b32.cont [13/16] %v6700, 128
      %6733 = vxpose.xlu0.b32.cont [14/16] %v6701, 128
      %6734 = vxpose.xlu0.b32.cont [15/16] %v6702, 128
      %6735 = vxpose.xlu0.b32.end [16/16] %v6703, 128
      %v6736 = vpop.trf.xlu0
      %v6737 = vpop.trf.xlu0
      %v6738 = vpop.trf.xlu0
      %v6739 = vpop.trf.xlu0
      %v6740 = vpop.trf.xlu0
      %v6741 = vpop.trf.xlu0
      %v6742 = vpop.trf.xlu0
      %v6743 = vpop.trf.xlu0
      %v6744 = vpop.trf.xlu0
      %v6745 = vpop.trf.xlu0
      %v6746 = vpop.trf.xlu0
      %v6747 = vpop.trf.xlu0
      %v6748 = vpop.trf.xlu0
      %v6749 = vpop.trf.xlu0
      %v6750 = vpop.trf.xlu0
      %v6751 = vpop.trf.xlu0
      %6752 = vxpose.xlu0.b32.start [1/16] %v6704, 128
      %6753 = vxpose.xlu0.b32.cont [2/16] %v6705, 128
      %6754 = vxpose.xlu0.b32.cont [3/16] %v6706, 128
      %6755 = vxpose.xlu0.b32.cont [4/16] %v6707, 128
      %6756 = vxpose.xlu0.b32.cont [5/16] %v6708, 128
      %6757 = vxpose.xlu0.b32.cont [6/16] %v6709, 128
      %6758 = vxpose.xlu0.b32.cont [7/16] %v6710, 128
      %6759 = vxpose.xlu0.b32.cont [8/16] %v6711, 128
      %6760 = vxpose.xlu0.b32.cont [9/16] %v6712, 128
      %6761 = vxpose.xlu0.b32.cont [10/16] %v6713, 128
      %6762 = vxpose.xlu0.b32.cont [11/16] %v6714, 128
      %6763 = vxpose.xlu0.b32.cont [12/16] %v6715, 128
      %6764 = vxpose.xlu0.b32.cont [13/16] %v6716, 128
      %6765 = vxpose.xlu0.b32.cont [14/16] %v6717, 128
      %6766 = vxpose.xlu0.b32.cont [15/16] %v6718, 128
      %6767 = vxpose.xlu0.b32.end [16/16] %v6719, 128
      %v6768 = vpop.trf.xlu0
      %v6769 = vpop.trf.xlu0
      %v6770 = vpop.trf.xlu0
      %v6771 = vpop.trf.xlu0
      %v6772 = vpop.trf.xlu0
      %v6773 = vpop.trf.xlu0
      %v6774 = vpop.trf.xlu0
      %v6775 = vpop.trf.xlu0
      %v6776 = vpop.trf.xlu0
      %v6777 = vpop.trf.xlu0
      %v6778 = vpop.trf.xlu0
      %v6779 = vpop.trf.xlu0
      %v6780 = vpop.trf.xlu0
      %v6781 = vpop.trf.xlu0
      %v6782 = vpop.trf.xlu0
      %v6783 = vpop.trf.xlu0
      %v6784 = vstv %s6687
      %v6785 = vmul.f32 %v6784, %v6736
      %v6786 = vmul.f32 %v6784, %v6768
      %v6787 = vmul.f32 %v6784, %v6737
      %v6788 = vmul.f32 %v6784, %v6769
      %v6789 = vmul.f32 %v6784, %v6738
      %v6790 = vmul.f32 %v6784, %v6770
      %v6791 = vmul.f32 %v6784, %v6739
      %v6792 = vmul.f32 %v6784, %v6771
      %v6793 = vadd.f32 %v6785, %v308
      %v6794 = vadd.f32 %v6786, %v309
      %v6795 = vadd.f32 %v6787, %v310
      %v6796 = vadd.f32 %v6788, %v311
      %v6797 = vadd.f32 %v6789, %v312
      %v6798 = vadd.f32 %v6790, %v313
      %v6799 = vadd.f32 %v6791, %v314
      %v6800 = vadd.f32 %v6792, %v315
      %6801 = vst [vmem:[%s306] sm:$0xff] %v6793
      %6802 = vst [vmem:[%s306 + $0x8] sm:$0xff] %v6794
      %6803 = vst [vmem:[%s306 + $0x10] sm:$0xff] %v6795
      %6804 = vst [vmem:[%s306 + $0x18] sm:$0xff] %v6796
      %6805 = vst [vmem:[%s306 + $0x20] sm:$0xff] %v6797
      %6806 = vst [vmem:[%s306 + $0x28] sm:$0xff] %v6798
      %6807 = vst [vmem:[%s306 + $0x30] sm:$0xff] %v6799
      %6808 = vst [vmem:[%s306 + $0x38] sm:$0xff] %v6800
      %p6809 = scmp.lt.s32.totalorder %s20, 1
      %s6810 = scalar_select %p6809, %s20, 1
      %s6811 = smul.addr %s6810, 8
      %s6812 = smul.addr %s6811, 8
      %s6813 = scalar_lea.vmem %s8, %s6812
      // Predicated region
      $region53: #{criss_cross_attention.1} parent=51 // pred_check
        %p6814 = pneg %p211
      $region54: #{criss_cross_attention.1} parent=51 // pred_check_branch
        %6816 = sbr.rel (%p6814) target = $region56
      $region55: #{criss_cross_attention.1} parent=51 // pred_region
        _
      $region56: #{criss_cross_attention.1} parent=51 // pred_fallthru
        _
    $region52: #{criss_cross_attention.1} parent=5 // pred_fallthru
      _
    %p6817 = scmp.le.s32.totalorder 2, %s15
    // Predicated region
    $region57: #{criss_cross_attention.1} parent=5 // pred_check
      %p6818 = pneg %p6817
    $region58: #{criss_cross_attention.1} parent=5 // pred_check_branch
      %6820 = sbr.rel (%p6818) target = $region60
    $region59: #{criss_cross_attention.1} parent=5 // pred_region
      %s6821 = ssub.s32 %s15, 2
      // Predicated region
      $region61: #{criss_cross_attention.1} parent=59 // pred_check
        %p6822 = pneg %p217
      $region62: #{criss_cross_attention.1} parent=59 // pred_check_branch
        %6824 = sbr.rel (%p6822) target = $region64
      $region63: #{criss_cross_attention.1} parent=59 // pred_region
        %p6825 = scmp.lt.s32.totalorder %s21, 1
        %s6826 = scalar_select %p6825, %s21, 1
        %s6827 = smul.addr %s6826, 8
        %s6828 = smul.addr %s6827, 8
        %s6829 = scalar_lea.vmem %s8, %s6828
      $region64: #{criss_cross_attention.1} parent=59 // pred_fallthru
        _
    $region60: #{criss_cross_attention.1} parent=5 // pred_fallthru
      _
  $region6: #{criss_cross_attention.1} parent=0 // loop_footer
    %s19 = sadd.s32 1, %s15
  $region7: #{criss_cross_attention.1} parent=0 // loop_footer_branch
    %14 = sbr.rel target = $region3
  $region8: #{criss_cross_attention.1} parent=0 // loop_exit
    _

</llo_original>
